<compile_context>
chip_gen: v5e
topology: v5e:2x2
jax: 0.10.0
libtpu: 0.0.40
codegen_flags: <defaults>
</compile_context>

<pallas_src>
import functools

import numpy as np
import jax
import jax.numpy as jnp
from jax import lax
from jax.experimental import pallas as pl
from jax.experimental.pallas import tpu as pltpu

HIDDEN = 64   # hidden_dim
FREQ = 10     # freq_dim
OUT = 16      # output_dim
GATE = 4 * HIDDEN + FREQ   # fused gate width, layout [ i | ste | o | c | fre ]


def _hardsigmoid(v):
    # torch.nn.Hardsigmoid: clip(x/6 + 0.5, 0, 1); multiply, not divide.
    return jnp.clip(v * (1.0 / 6.0) + 0.5, 0.0, 1.0)


def _unroll_for(n):
    # Full unroll for short chunks; otherwise unroll by 8 when it divides.
    if n <= 32:
        return True
    return 8 if n % 8 == 0 else 1


# ----------------------------- Pallas kernel --------------------------------

def _sfm_kernel(xz_ref, tw_ref,
                U_all, U_a, b_a, W_p, b_p, w_fc, b_fc,
                out_ref,
                h_scr, sre_scr, sim_scr,
                *, t_chunk, t_last):
    """One grid step processes t_chunk (or t_last for the final chunk) steps.

    xz_ref : (t_chunk, bs, GATE)  precomputed x@W_all + b_all, time-major
    tw_ref : (FREQ, 2, FREQ, 1)   period-10 cos/sin table (re at [.,0], im at [.,1])
    Recurrent state (h, S_re, S_im) persists in VMEM scratch across chunks.
    """
    c_idx = pl.program_id(0)
    n_chunks = pl.num_programs(0)
    H, F = HIDDEN, FREQ

    @pl.when(c_idx == 0)
    def _():
        h_scr[...] = jnp.zeros_like(h_scr)
        sre_scr[...] = jnp.zeros_like(sre_scr)
        sim_scr[...] = jnp.zeros_like(sim_scr)

    U = U_all[...]       # (H, GATE) fused recurrent weights (loop-invariant RHS)
    ua = U_a[...]        # (F, 1)
    ba = b_a[...]        # (1, H)
    c_base = c_idx * t_chunk

    def step(tau, carry):
        h, S_re, S_im = carry

        # one fused recurrent matmul: (bs,H) @ (H,266)
        z = xz_ref[tau] + jnp.dot(h, U, preferred_element_type=jnp.float32)

        g_hs = _hardsigmoid(z[:, 0:3 * H])        # i | ste | o in one pass
        i_g = g_hs[:, 0:H]
        ste = g_hs[:, H:2 * H]
        o_g = g_hs[:, 2 * H:3 * H]
        c_g = i_g * jnp.tanh(z[:, 3 * H:4 * H])   # (bs, H)
        fre = _hardsigmoid(z[:, 4 * H:4 * H + F]) # (bs, F)

        # frequency-domain state, layout (bs, F, H): HIDDEN on the lane axis
        f = fre[:, :, None] * ste[:, None, :]     # (bs, F, H)
        # period-10 twiddle lookup: cos/sin(2*pi*(t+1)*k/F) == table[(t+1)%F]
        m = (c_base + tau + 1) % F
        tw = tw_ref[m]                            # (2, F, 1)
        re = tw[0]                                # (F, 1)
        im = tw[1]                                # (F, 1)
        c3 = c_g[:, None, :]                      # (bs, 1, H)

        S_re_n = f * S_re + c3 * re[None, :, :]   # (bs, F, H)
        S_im_n = f * S_im + c3 * im[None, :, :]

        A = S_re_n * S_re_n + S_im_n * S_im_n     # (bs, F, H)
        # contraction over F with U_a — sublane reduction (F is axis -2)
        A_a = jnp.sum(A * ua[None, :, :], axis=1) # (bs, H)
        a = jnp.tanh(A_a + ba)
        h_n = o_g * a                             # (bs, H)
        return h_n, S_re_n, S_im_n

    carry0 = (h_scr[...], sre_scr[...], sim_scr[...])

    if t_last == t_chunk:
        # every chunk is full: one select-free loop, no runtime branch
        h, S_re, S_im = lax.fori_loop(0, t_chunk, step, carry0,
                                      unroll=_unroll_for(t_chunk))
    else:
        # run exactly the valid number of steps on the last chunk; no per-step
        # masking anywhere (state simply never advances past T).
        h, S_re, S_im = lax.cond(
            c_idx == n_chunks - 1,
            lambda c: lax.fori_loop(0, t_last, step, c,
                                    unroll=_unroll_for(t_last)),
            lambda c: lax.fori_loop(0, t_chunk, step, c,
                                    unroll=_unroll_for(t_chunk)),
            carry0)

    h_scr[...] = h
    sre_scr[...] = S_re
    sim_scr[...] = S_im

    @pl.when(c_idx == n_chunks - 1)
    def _():
        # Two-stage head kept as in the reference (p = h@W_p+b_p; y = p@w_fc+b_fc)
        # to stay bit-consistent with the module; folding W_p@w_fc would shift
        # numerics past the test tolerance for a negligible one-shot win.
        p = jnp.dot(h, W_p[...], preferred_element_type=jnp.float32) + b_p[...]
        y = jnp.dot(p, w_fc[...], preferred_element_type=jnp.float32) + b_fc[...]
        out_ref[...] = y


# ------------------------------- wrapper -------------------------------------

def sfm_forward(x_g1, P):
    """x_g1: (bs, T, K, d) float32. Returns {"pred": (bs, 1)}."""
    bs, T, K, d = x_g1.shape
    D = K * d
    H, F = HIDDEN, FREQ

    # Fused weight layout [ i | ste | o | c | fre ] (must match kernel slices).
    W_all = jnp.concatenate(
        [P["W_i"], P["W_ste"], P["W_o"], P["W_c"], P["W_fre"]], axis=1)  # (D, GATE)
    b_all = jnp.concatenate(
        [P["b_i"], P["b_ste"], P["b_o"], P["b_c"], P["b_fre"]], axis=1)  # (1, GATE)
    U_all = jnp.concatenate(
        [P["U_i"], P["U_ste"], P["U_o"], P["U_c"], P["U_fre"]], axis=1)  # (H, GATE)

    # Hoisted input projections: one large MXU-friendly matmul for all T.
    x_flat = x_g1.reshape(bs * T, D).astype(jnp.float32)
    xz = (x_flat @ W_all + b_all).reshape(bs, T, GATE)
    xz = jnp.transpose(xz, (1, 0, 2))                       # (T, bs, GATE)

    # Period-FREQ twiddle table: table[m] = (cos, sin)(2*pi*m*k/F), m=0..F-1.
    # Since (t+1)*k/F differs from ((t+1) mod F)*k/F by an integer, this is the
    # same value the reference computes (and better conditioned for large t).
    m_arr = jnp.arange(F, dtype=jnp.float32)[:, None]               # (F, 1)
    freqs = jnp.arange(F, dtype=jnp.float32)[None, :] / float(F)    # (1, F)
    omega = (2.0 * np.pi) * m_arr * freqs                           # (F, F)
    tw = jnp.stack([jnp.cos(omega), jnp.sin(omega)], axis=1)[..., None]  # (F,2,F,1)

    # Time chunking: amortize the ~0.35us per-grid-step overhead.  With the tw
    # stream removed, a 256-step chunk is ~3 MiB/buffer — double-buffered it
    # fits v5e's 16 MiB default scoped VMEM and v7x's 64 MiB physical VMEM.
    t_chunk = min(256, ((T + 7) // 8) * 8)
    n_chunks = -(-T // t_chunk)
    T_pad = n_chunks * t_chunk
    t_last = T - (n_chunks - 1) * t_chunk            # exact steps in last chunk
    if T_pad > T:
        # padded rows are never read (last chunk runs only t_last steps)
        xz = jnp.pad(xz, ((0, T_pad - T), (0, 0), (0, 0)))

    consts = [U_all, P["U_a"], P["b_a"], P["W_p"], P["b_p"], P["w_fc"], P["b_fc"]]

    def const_spec(shape):
        nd = len(shape)
        return pl.BlockSpec(shape, lambda c, _nd=nd: (0,) * _nd)

    kernel = functools.partial(_sfm_kernel, t_chunk=t_chunk, t_last=t_last)

    out = pl.pallas_call(
        kernel,
        out_shape=jax.ShapeDtypeStruct((bs, 1), jnp.float32),
        grid_spec=pltpu.PrefetchScalarGridSpec(
            num_scalar_prefetch=0,
            grid=(n_chunks,),
            in_specs=[
                pl.BlockSpec((t_chunk, bs, GATE), lambda c: (c, 0, 0)),
                const_spec(tw.shape),
            ] + [const_spec(p.shape) for p in consts],
            out_specs=pl.BlockSpec((bs, 1), lambda c: (0, 0)),
            scratch_shapes=[
                pltpu.VMEM((bs, H), jnp.float32),        # h
                pltpu.VMEM((bs, F, H), jnp.float32),     # S_re (HIDDEN on lanes)
                pltpu.VMEM((bs, F, H), jnp.float32),     # S_im
            ],
        ),
        compiler_params=pltpu.CompilerParams(
            dimension_semantics=("arbitrary",),
            vmem_limit_bytes=32 * 1024 * 1024),
    )(xz, tw, *consts)
    return {"pred": out}


# --------------------------- parameter init (deterministic) -----------------

def _xavier_uniform(key, shape):
    fan_in, fan_out = shape
    lim = float(np.sqrt(6.0 / (fan_in + fan_out)))
    return jax.random.uniform(key, shape, jnp.float32, -lim, lim)


def _orthogonal(key, shape):
    rows, cols = shape
    n = max(rows, cols)
    a = jax.random.normal(key, (n, min(rows, cols)), jnp.float32)
    q, _ = jnp.linalg.qr(a)
    q = q[:n, : min(rows, cols)]
    if rows >= cols:
        return q[:rows, :cols]
    return q.T[:rows, :cols]


def make_params(key, input_dim):
    ks = jax.random.split(key, 16)
    P = {
        "W_i": _xavier_uniform(ks[0], (input_dim, HIDDEN)),
        "U_i": _orthogonal(ks[1], (HIDDEN, HIDDEN)),
        "b_i": jnp.zeros((1, HIDDEN), jnp.float32),
        "W_ste": _xavier_uniform(ks[2], (input_dim, HIDDEN)),
        "U_ste": _orthogonal(ks[3], (HIDDEN, HIDDEN)),
        "b_ste": jnp.ones((1, HIDDEN), jnp.float32),
        "W_fre": _xavier_uniform(ks[4], (input_dim, FREQ)),
        "U_fre": _orthogonal(ks[5], (HIDDEN, FREQ)),
        "b_fre": jnp.ones((1, FREQ), jnp.float32),
        "W_c": _xavier_uniform(ks[6], (input_dim, HIDDEN)),
        "U_c": _orthogonal(ks[7], (HIDDEN, HIDDEN)),
        "b_c": jnp.zeros((1, HIDDEN), jnp.float32),
        "W_o": _xavier_uniform(ks[8], (input_dim, HIDDEN)),
        "U_o": _orthogonal(ks[9], (HIDDEN, HIDDEN)),
        "b_o": jnp.zeros((1, HIDDEN), jnp.float32),
        # U_a is (freq_dim, 1), same as torch
        "U_a": _orthogonal(ks[10], (FREQ, 1)),
        "b_a": jnp.zeros((1, HIDDEN), jnp.float32),
        "W_p": _xavier_uniform(ks[11], (HIDDEN, OUT)),
        "b_p": jnp.zeros((1, OUT), jnp.float32),
        # fc_out: Linear(OUT, 1) -> weight.T stored as (OUT, 1)
        "w_fc": _xavier_uniform(ks[12], (OUT, 1)),
        "b_fc": jnp.zeros((1, 1), jnp.float32),
    }
    return P


# --------------------------- pure-JAX reference ------------------------------

def sfm_ref(x_g1, P):
    bs, T, K, d = x_g1.shape
    x_seq = x_g1.reshape(bs, T, K * d)
    h = jnp.zeros((bs, HIDDEN), jnp.float32)
    S_re = jnp.zeros((bs, HIDDEN, FREQ), jnp.float32)
    S_im = jnp.zeros((bs, HIDDEN, FREQ), jnp.float32)
    frequency = jnp.arange(FREQ, dtype=jnp.float32) / FREQ
    hs = _hardsigmoid
    for t in range(T):
        x = x_seq[:, t, :]
        x_i = x @ P["W_i"] + P["b_i"]
        x_ste = x @ P["W_ste"] + P["b_ste"]
        x_fre = x @ P["W_fre"] + P["b_fre"]
        x_c = x @ P["W_c"] + P["b_c"]
        x_o = x @ P["W_o"] + P["b_o"]
        i_g = hs(x_i + h @ P["U_i"])
        ste = hs(x_ste + h @ P["U_ste"])
        fre = hs(x_fre + h @ P["U_fre"])
        f = ste[:, :, None] * fre[:, None, :]
        c = i_g * jnp.tanh(x_c + h @ P["U_c"])
        omega = 2.0 * np.pi * float(t + 1) * frequency
        re = jnp.cos(omega)
        im = jnp.sin(omega)
        S_re = f * S_re + c[:, :, None] * re
        S_im = f * S_im + c[:, :, None] * im
        A = S_re ** 2 + S_im ** 2
        A_a = (A.reshape(-1, FREQ) @ P["U_a"]).reshape(bs, HIDDEN)
        a = jnp.tanh(A_a + P["b_a"])
        o = hs(x_o + h @ P["U_o"])
        h = o * a
    p_out = h @ P["W_p"] + P["b_p"]
    y = p_out @ P["w_fc"] + P["b_fc"]
    return y


if __name__ == "__main__":
    key = jax.random.PRNGKey(0)
    k_x, k_p = jax.random.split(key)

    bs, T, K, d = 2, 8, 4, 4          # input_dim = K*d = 16
    x_g1 = jax.random.normal(k_x, (bs, T, K, d), jnp.float32)
    params = make_params(k_p, K * d)

    out = sfm_forward(x_g1, params)
    pred = jax.block_until_ready(out["pred"])

    ref = jax.block_until_ready(sfm_ref(x_g1, params))
    assert pred.shape == (bs, 1)
    assert np.allclose(np.asarray(pred), np.asarray(ref), rtol=1e-4, atol=3e-5), (
        f"mismatch: {np.asarray(pred)} vs {np.asarray(ref)}"
    )
    print("KERNEL_OK")
</pallas_src>

<mosaic_0001>
module attributes {stable_mosaic.version = 11 : i64} {
  func.func @_sfm_kernel(%arg0: i32, %arg1: memref<8x2x266xf32, #tpu.memory_space<vmem>>, %arg2: memref<10x2x10x1xf32, #tpu.memory_space<vmem>>, %arg3: memref<64x266xf32, #tpu.memory_space<vmem>>, %arg4: memref<10x1xf32, #tpu.memory_space<vmem>>, %arg5: memref<1x64xf32, #tpu.memory_space<vmem>>, %arg6: memref<64x16xf32, #tpu.memory_space<vmem>>, %arg7: memref<1x16xf32, #tpu.memory_space<vmem>>, %arg8: memref<16x1xf32, #tpu.memory_space<vmem>>, %arg9: memref<1x1xf32, #tpu.memory_space<vmem>>, %arg10: memref<2x1xf32, #tpu.memory_space<vmem>>, %arg11: memref<2x64xf32, #tpu.memory_space<vmem>>, %arg12: memref<2x10x64xf32, #tpu.memory_space<vmem>>, %arg13: memref<2x10x64xf32, #tpu.memory_space<vmem>>) attributes {dimension_semantics = [#tpu.dimension_semantics<arbitrary>], iteration_bounds = array<i64: 1>, scalar_prefetch = 0 : i64, scratch_operands = 3 : i64, tpu.core_type = #tpu.core_type<tc>, window_params = [{transform_indices = @transform_0, window_bounds = array<i64: 8, 2, 266>}, {pipeline_mode = #tpu.pipeline_mode<synchronous>, transform_indices = @transform_1, window_bounds = array<i64: 10, 2, 10, 1>}, {pipeline_mode = #tpu.pipeline_mode<synchronous>, transform_indices = @transform_2, window_bounds = array<i64: 64, 266>}, {pipeline_mode = #tpu.pipeline_mode<synchronous>, transform_indices = @transform_3, window_bounds = array<i64: 10, 1>}, {pipeline_mode = #tpu.pipeline_mode<synchronous>, transform_indices = @transform_4, window_bounds = array<i64: 1, 64>}, {pipeline_mode = #tpu.pipeline_mode<synchronous>, transform_indices = @transform_5, window_bounds = array<i64: 64, 16>}, {pipeline_mode = #tpu.pipeline_mode<synchronous>, transform_indices = @transform_6, window_bounds = array<i64: 1, 16>}, {pipeline_mode = #tpu.pipeline_mode<synchronous>, transform_indices = @transform_7, window_bounds = array<i64: 16, 1>}, {pipeline_mode = #tpu.pipeline_mode<synchronous>, transform_indices = @transform_8, window_bounds = array<i64: 1, 1>}, {pipeline_mode = #tpu.pipeline_mode<synchronous>, transform_indices = @transform_9, window_bounds = array<i64: 2, 1>}]} {
    %c0_i32 = arith.constant 0 : i32
    %0 = arith.cmpi eq, %arg0, %c0_i32 : i32
    %1 = arith.extui %0 : i1 to i32
    %c0_i32_0 = arith.constant 0 : i32
    %2 = arith.cmpi ne, %1, %c0_i32_0 : i32
    scf.if %2 {
      %cst_200 = arith.constant 0.000000e+00 : f32
      %632 = vector.broadcast %cst_200 : f32 to vector<2x64xf32>
      %c0_201 = arith.constant 0 : index
      %c0_202 = arith.constant 0 : index
      %633 = vector.load %arg11[%c0_201, %c0_202] : memref<2x64xf32, #tpu.memory_space<vmem>>, vector<2x64xf32>
      tpu.vector_store %arg11[%c0_201, %c0_202], %632 {strides = array<i32>} : memref<2x64xf32, #tpu.memory_space<vmem>>, vector<2x64xf32>,
      %cst_203 = arith.constant 0.000000e+00 : f32
      %634 = vector.broadcast %cst_203 : f32 to vector<2x10x64xf32>
      %c0_204 = arith.constant 0 : index
      %c0_205 = arith.constant 0 : index
      %c0_206 = arith.constant 0 : index
      %635 = vector.load %arg12[%c0_204, %c0_205, %c0_206] : memref<2x10x64xf32, #tpu.memory_space<vmem>>, vector<2x10x64xf32>
      tpu.vector_store %arg12[%c0_204, %c0_205, %c0_206], %634 {strides = array<i32>} : memref<2x10x64xf32, #tpu.memory_space<vmem>>, vector<2x10x64xf32>,
      %cst_207 = arith.constant 0.000000e+00 : f32
      %636 = vector.broadcast %cst_207 : f32 to vector<2x10x64xf32>
      %c0_208 = arith.constant 0 : index
      %c0_209 = arith.constant 0 : index
      %c0_210 = arith.constant 0 : index
      %637 = vector.load %arg13[%c0_208, %c0_209, %c0_210] : memref<2x10x64xf32, #tpu.memory_space<vmem>>, vector<2x10x64xf32>
      tpu.vector_store %arg13[%c0_208, %c0_209, %c0_210], %636 {strides = array<i32>} : memref<2x10x64xf32, #tpu.memory_space<vmem>>, vector<2x10x64xf32>,
    } else {
    }
    %c0 = arith.constant 0 : index
    %c0_1 = arith.constant 0 : index
    %3 = vector.load %arg3[%c0, %c0_1] : memref<64x266xf32, #tpu.memory_space<vmem>>, vector<64x266xf32>
    %c0_2 = arith.constant 0 : index
    %c0_3 = arith.constant 0 : index
    %4 = vector.load %arg4[%c0_2, %c0_3] : memref<10x1xf32, #tpu.memory_space<vmem>>, vector<10x1xf32>
    %c0_4 = arith.constant 0 : index
    %c0_5 = arith.constant 0 : index
    %5 = vector.load %arg5[%c0_4, %c0_5] : memref<1x64xf32, #tpu.memory_space<vmem>>, vector<1x64xf32>
    %c8_i32 = arith.constant 8 : i32
    %6 = arith.muli %arg0, %c8_i32 : i32
    %c0_6 = arith.constant 0 : index
    %c0_7 = arith.constant 0 : index
    %7 = vector.load %arg11[%c0_6, %c0_7] : memref<2x64xf32, #tpu.memory_space<vmem>>, vector<2x64xf32>
    %c0_8 = arith.constant 0 : index
    %c0_9 = arith.constant 0 : index
    %c0_10 = arith.constant 0 : index
    %8 = vector.load %arg12[%c0_8, %c0_9, %c0_10] : memref<2x10x64xf32, #tpu.memory_space<vmem>>, vector<2x10x64xf32>
    %c0_11 = arith.constant 0 : index
    %c0_12 = arith.constant 0 : index
    %c0_13 = arith.constant 0 : index
    %9 = vector.load %arg13[%c0_11, %c0_12, %c0_13] : memref<2x10x64xf32, #tpu.memory_space<vmem>>, vector<2x10x64xf32>
    %c0_i32_14 = arith.constant 0 : i32
    %10 = arith.index_cast %c0_i32_14 : i32 to index
    %c0_15 = arith.constant 0 : index
    %c0_16 = arith.constant 0 : index
    %11 = vector.load %arg1[%10, %c0_15, %c0_16] : memref<8x2x266xf32, #tpu.memory_space<vmem>>, vector<1x2x266xf32>
    %12 = vector.shape_cast %11 : vector<1x2x266xf32> to vector<2x266xf32>
    %cst = arith.constant dense<0.000000e+00> : vector<2x266xf32>
    %13 = tpu.matmul %7, %3, %cst {dimension_numbers = #tpu.dot_dimension_numbers<[1], [0], [0], [1], [0, 0, 1, 1], [], []>} : vector<2x64xf32>, vector<64x266xf32>, vector<2x266xf32> -> vector<2x266xf32>
    %14 = arith.addf %12, %13 : vector<2x266xf32>
    %15 = vector.extract_strided_slice %14 {offsets = [0, 0], sizes = [2, 192], strides = [1, 1]} : vector<2x266xf32> to vector<2x192xf32>
    %cst_17 = arith.constant 0.166666672 : f32
    %16 = vector.broadcast %cst_17 : f32 to vector<2x192xf32>
    %17 = arith.mulf %15, %16 : vector<2x192xf32>
    %cst_18 = arith.constant 5.000000e-01 : f32
    %18 = vector.broadcast %cst_18 : f32 to vector<2x192xf32>
    %19 = arith.addf %17, %18 : vector<2x192xf32>
    %cst_19 = arith.constant 0.000000e+00 : f32
    %cst_20 = arith.constant 1.000000e+00 : f32
    %20 = vector.broadcast %cst_19 : f32 to vector<2x192xf32>
    %21 = arith.maximumf %20, %19 : vector<2x192xf32>
    %22 = vector.broadcast %cst_20 : f32 to vector<2x192xf32>
    %23 = arith.minimumf %22, %21 : vector<2x192xf32>
    %24 = vector.extract_strided_slice %23 {offsets = [0, 0], sizes = [2, 64], strides = [1, 1]} : vector<2x192xf32> to vector<2x64xf32>
    %25 = vector.extract_strided_slice %23 {offsets = [0, 64], sizes = [2, 64], strides = [1, 1]} : vector<2x192xf32> to vector<2x64xf32>
    %26 = vector.extract_strided_slice %23 {offsets = [0, 128], sizes = [2, 64], strides = [1, 1]} : vector<2x192xf32> to vector<2x64xf32>
    %27 = vector.extract_strided_slice %14 {offsets = [0, 192], sizes = [2, 64], strides = [1, 1]} : vector<2x266xf32> to vector<2x64xf32>
    %28 = math.tanh %27 : vector<2x64xf32>
    %29 = arith.mulf %24, %28 : vector<2x64xf32>
    %30 = vector.extract_strided_slice %14 {offsets = [0, 256], sizes = [2, 10], strides = [1, 1]} : vector<2x266xf32> to vector<2x10xf32>
    %cst_21 = arith.constant 0.166666672 : f32
    %31 = vector.broadcast %cst_21 : f32 to vector<2x10xf32>
    %32 = arith.mulf %30, %31 : vector<2x10xf32>
    %cst_22 = arith.constant 5.000000e-01 : f32
    %33 = vector.broadcast %cst_22 : f32 to vector<2x10xf32>
    %34 = arith.addf %32, %33 : vector<2x10xf32>
    %cst_23 = arith.constant 0.000000e+00 : f32
    %cst_24 = arith.constant 1.000000e+00 : f32
    %35 = vector.broadcast %cst_23 : f32 to vector<2x10xf32>
    %36 = arith.maximumf %35, %34 : vector<2x10xf32>
    %37 = vector.broadcast %cst_24 : f32 to vector<2x10xf32>
    %38 = arith.minimumf %37, %36 : vector<2x10xf32>
    %39 = vector.shape_cast %38 : vector<2x10xf32> to vector<2x10x1xf32>
    %40 = vector.shape_cast %25 : vector<2x64xf32> to vector<2x1x64xf32>
    %41 = vector.broadcast %39 : vector<2x10x1xf32> to vector<2x10x64xf32>
    %42 = vector.broadcast %40 : vector<2x1x64xf32> to vector<2x10x64xf32>
    %43 = arith.mulf %41, %42 : vector<2x10x64xf32>
    %44 = arith.addi %6, %c0_i32_14 : i32
    %c1_i32 = arith.constant 1 : i32
    %45 = arith.addi %44, %c1_i32 : i32
    %c10_i32 = arith.constant 10 : i32
    %c0_i32_25 = arith.constant 0 : i32
    %46 = arith.cmpi eq, %c10_i32, %c0_i32_25 : i32
    %c1_i32_26 = arith.constant 1 : i32
    %47 = arith.select %46, %c1_i32_26, %c10_i32 : i32
    %48 = arith.remsi %45, %47 : i32
    %c0_i32_27 = arith.constant 0 : i32
    %49 = arith.cmpi ne, %48, %c0_i32_27 : i32
    %c0_i32_28 = arith.constant 0 : i32
    %50 = arith.cmpi slt, %48, %c0_i32_28 : i32
    %c0_i32_29 = arith.constant 0 : i32
    %51 = arith.cmpi slt, %47, %c0_i32_29 : i32
    %52 = arith.xori %50, %51 : i1
    %53 = arith.andi %52, %49 : i1
    %54 = arith.addi %48, %47 : i32
    %55 = arith.select %53, %54, %48 : i32
    %56 = arith.index_cast %55 : i32 to index
    %c0_30 = arith.constant 0 : index
    %c0_31 = arith.constant 0 : index
    %c0_32 = arith.constant 0 : index
    %57 = vector.load %arg2[%56, %c0_30, %c0_31, %c0_32] : memref<10x2x10x1xf32, #tpu.memory_space<vmem>>, vector<1x2x10x1xf32>
    %58 = vector.shape_cast %57 : vector<1x2x10x1xf32> to vector<2x10x1xf32>
    %59 = vector.extract_strided_slice %58 {offsets = [0, 0, 0], sizes = [1, 10, 1], strides = [1, 1, 1]} : vector<2x10x1xf32> to vector<1x10x1xf32>
    %60 = vector.shape_cast %59 : vector<1x10x1xf32> to vector<10x1xf32>
    %61 = vector.extract_strided_slice %58 {offsets = [1, 0, 0], sizes = [1, 10, 1], strides = [1, 1, 1]} : vector<2x10x1xf32> to vector<1x10x1xf32>
    %62 = vector.shape_cast %61 : vector<1x10x1xf32> to vector<10x1xf32>
    %63 = vector.shape_cast %29 : vector<2x64xf32> to vector<2x1x64xf32>
    %64 = arith.mulf %43, %8 : vector<2x10x64xf32>
    %65 = vector.shape_cast %60 : vector<10x1xf32> to vector<1x10x1xf32>
    %66 = vector.broadcast %63 : vector<2x1x64xf32> to vector<2x10x64xf32>
    %67 = vector.broadcast %65 : vector<1x10x1xf32> to vector<2x10x64xf32>
    %68 = arith.mulf %66, %67 : vector<2x10x64xf32>
    %69 = arith.addf %64, %68 : vector<2x10x64xf32>
    %70 = arith.mulf %43, %9 : vector<2x10x64xf32>
    %71 = vector.shape_cast %62 : vector<10x1xf32> to vector<1x10x1xf32>
    %72 = vector.broadcast %63 : vector<2x1x64xf32> to vector<2x10x64xf32>
    %73 = vector.broadcast %71 : vector<1x10x1xf32> to vector<2x10x64xf32>
    %74 = arith.mulf %72, %73 : vector<2x10x64xf32>
    %75 = arith.addf %70, %74 : vector<2x10x64xf32>
    %76 = arith.mulf %69, %69 : vector<2x10x64xf32>
    %77 = arith.mulf %75, %75 : vector<2x10x64xf32>
    %78 = arith.addf %76, %77 : vector<2x10x64xf32>
    %79 = vector.shape_cast %4 : vector<10x1xf32> to vector<1x10x1xf32>
    %80 = vector.broadcast %79 : vector<1x10x1xf32> to vector<2x10x64xf32>
    %81 = arith.mulf %78, %80 : vector<2x10x64xf32>
    %cst_33 = arith.constant dense<0.000000e+00> : vector<2x64xf32>
    %82 = vector.multi_reduction <add>, %81, %cst_33 [1] : vector<2x10x64xf32> to vector<2x64xf32>
    %83 = vector.broadcast %5 : vector<1x64xf32> to vector<2x64xf32>
    %84 = arith.addf %82, %83 : vector<2x64xf32>
    %85 = math.tanh %84 : vector<2x64xf32>
    %86 = arith.mulf %26, %85 : vector<2x64xf32>
    %c1_i32_34 = arith.constant 1 : i32
    %87 = arith.index_cast %c1_i32_34 : i32 to index
    %c0_35 = arith.constant 0 : index
    %c0_36 = arith.constant 0 : index
    %88 = vector.load %arg1[%87, %c0_35, %c0_36] : memref<8x2x266xf32, #tpu.memory_space<vmem>>, vector<1x2x266xf32>
    %89 = vector.shape_cast %88 : vector<1x2x266xf32> to vector<2x266xf32>
    %cst_37 = arith.constant dense<0.000000e+00> : vector<2x266xf32>
    %90 = tpu.matmul %86, %3, %cst_37 {dimension_numbers = #tpu.dot_dimension_numbers<[1], [0], [0], [1], [0, 0, 1, 1], [], []>} : vector<2x64xf32>, vector<64x266xf32>, vector<2x266xf32> -> vector<2x266xf32>
    %91 = arith.addf %89, %90 : vector<2x266xf32>
    %92 = vector.extract_strided_slice %91 {offsets = [0, 0], sizes = [2, 192], strides = [1, 1]} : vector<2x266xf32> to vector<2x192xf32>
    %cst_38 = arith.constant 0.166666672 : f32
    %93 = vector.broadcast %cst_38 : f32 to vector<2x192xf32>
    %94 = arith.mulf %92, %93 : vector<2x192xf32>
    %cst_39 = arith.constant 5.000000e-01 : f32
    %95 = vector.broadcast %cst_39 : f32 to vector<2x192xf32>
    %96 = arith.addf %94, %95 : vector<2x192xf32>
    %cst_40 = arith.constant 0.000000e+00 : f32
    %cst_41 = arith.constant 1.000000e+00 : f32
    %97 = vector.broadcast %cst_40 : f32 to vector<2x192xf32>
    %98 = arith.maximumf %97, %96 : vector<2x192xf32>
    %99 = vector.broadcast %cst_41 : f32 to vector<2x192xf32>
    %100 = arith.minimumf %99, %98 : vector<2x192xf32>
    %101 = vector.extract_strided_slice %100 {offsets = [0, 0], sizes = [2, 64], strides = [1, 1]} : vector<2x192xf32> to vector<2x64xf32>
    %102 = vector.extract_strided_slice %100 {offsets = [0, 64], sizes = [2, 64], strides = [1, 1]} : vector<2x192xf32> to vector<2x64xf32>
    %103 = vector.extract_strided_slice %100 {offsets = [0, 128], sizes = [2, 64], strides = [1, 1]} : vector<2x192xf32> to vector<2x64xf32>
    %104 = vector.extract_strided_slice %91 {offsets = [0, 192], sizes = [2, 64], strides = [1, 1]} : vector<2x266xf32> to vector<2x64xf32>
    %105 = math.tanh %104 : vector<2x64xf32>
    %106 = arith.mulf %101, %105 : vector<2x64xf32>
    %107 = vector.extract_strided_slice %91 {offsets = [0, 256], sizes = [2, 10], strides = [1, 1]} : vector<2x266xf32> to vector<2x10xf32>
    %cst_42 = arith.constant 0.166666672 : f32
    %108 = vector.broadcast %cst_42 : f32 to vector<2x10xf32>
    %109 = arith.mulf %107, %108 : vector<2x10xf32>
    %cst_43 = arith.constant 5.000000e-01 : f32
    %110 = vector.broadcast %cst_43 : f32 to vector<2x10xf32>
    %111 = arith.addf %109, %110 : vector<2x10xf32>
    %cst_44 = arith.constant 0.000000e+00 : f32
    %cst_45 = arith.constant 1.000000e+00 : f32
    %112 = vector.broadcast %cst_44 : f32 to vector<2x10xf32>
    %113 = arith.maximumf %112, %111 : vector<2x10xf32>
    %114 = vector.broadcast %cst_45 : f32 to vector<2x10xf32>
    %115 = arith.minimumf %114, %113 : vector<2x10xf32>
    %116 = vector.shape_cast %115 : vector<2x10xf32> to vector<2x10x1xf32>
    %117 = vector.shape_cast %102 : vector<2x64xf32> to vector<2x1x64xf32>
    %118 = vector.broadcast %116 : vector<2x10x1xf32> to vector<2x10x64xf32>
    %119 = vector.broadcast %117 : vector<2x1x64xf32> to vector<2x10x64xf32>
    %120 = arith.mulf %118, %119 : vector<2x10x64xf32>
    %121 = arith.addi %6, %c1_i32_34 : i32
    %c1_i32_46 = arith.constant 1 : i32
    %122 = arith.addi %121, %c1_i32_46 : i32
    %c10_i32_47 = arith.constant 10 : i32
    %c0_i32_48 = arith.constant 0 : i32
    %123 = arith.cmpi eq, %c10_i32_47, %c0_i32_48 : i32
    %c1_i32_49 = arith.constant 1 : i32
    %124 = arith.select %123, %c1_i32_49, %c10_i32_47 : i32
    %125 = arith.remsi %122, %124 : i32
    %c0_i32_50 = arith.constant 0 : i32
    %126 = arith.cmpi ne, %125, %c0_i32_50 : i32
    %c0_i32_51 = arith.constant 0 : i32
    %127 = arith.cmpi slt, %125, %c0_i32_51 : i32
    %c0_i32_52 = arith.constant 0 : i32
    %128 = arith.cmpi slt, %124, %c0_i32_52 : i32
    %129 = arith.xori %127, %128 : i1
    %130 = arith.andi %129, %126 : i1
    %131 = arith.addi %125, %124 : i32
    %132 = arith.select %130, %131, %125 : i32
    %133 = arith.index_cast %132 : i32 to index
    %c0_53 = arith.constant 0 : index
    %c0_54 = arith.constant 0 : index
    %c0_55 = arith.constant 0 : index
    %134 = vector.load %arg2[%133, %c0_53, %c0_54, %c0_55] : memref<10x2x10x1xf32, #tpu.memory_space<vmem>>, vector<1x2x10x1xf32>
    %135 = vector.shape_cast %134 : vector<1x2x10x1xf32> to vector<2x10x1xf32>
    %136 = vector.extract_strided_slice %135 {offsets = [0, 0, 0], sizes = [1, 10, 1], strides = [1, 1, 1]} : vector<2x10x1xf32> to vector<1x10x1xf32>
    %137 = vector.shape_cast %136 : vector<1x10x1xf32> to vector<10x1xf32>
    %138 = vector.extract_strided_slice %135 {offsets = [1, 0, 0], sizes = [1, 10, 1], strides = [1, 1, 1]} : vector<2x10x1xf32> to vector<1x10x1xf32>
    %139 = vector.shape_cast %138 : vector<1x10x1xf32> to vector<10x1xf32>
    %140 = vector.shape_cast %106 : vector<2x64xf32> to vector<2x1x64xf32>
    %141 = arith.mulf %120, %69 : vector<2x10x64xf32>
    %142 = vector.shape_cast %137 : vector<10x1xf32> to vector<1x10x1xf32>
    %143 = vector.broadcast %140 : vector<2x1x64xf32> to vector<2x10x64xf32>
    %144 = vector.broadcast %142 : vector<1x10x1xf32> to vector<2x10x64xf32>
    %145 = arith.mulf %143, %144 : vector<2x10x64xf32>
    %146 = arith.addf %141, %145 : vector<2x10x64xf32>
    %147 = arith.mulf %120, %75 : vector<2x10x64xf32>
    %148 = vector.shape_cast %139 : vector<10x1xf32> to vector<1x10x1xf32>
    %149 = vector.broadcast %140 : vector<2x1x64xf32> to vector<2x10x64xf32>
    %150 = vector.broadcast %148 : vector<1x10x1xf32> to vector<2x10x64xf32>
    %151 = arith.mulf %149, %150 : vector<2x10x64xf32>
    %152 = arith.addf %147, %151 : vector<2x10x64xf32>
    %153 = arith.mulf %146, %146 : vector<2x10x64xf32>
    %154 = arith.mulf %152, %152 : vector<2x10x64xf32>
    %155 = arith.addf %153, %154 : vector<2x10x64xf32>
    %156 = vector.shape_cast %4 : vector<10x1xf32> to vector<1x10x1xf32>
    %157 = vector.broadcast %156 : vector<1x10x1xf32> to vector<2x10x64xf32>
    %158 = arith.mulf %155, %157 : vector<2x10x64xf32>
    %cst_56 = arith.constant dense<0.000000e+00> : vector<2x64xf32>
    %159 = vector.multi_reduction <add>, %158, %cst_56 [1] : vector<2x10x64xf32> to vector<2x64xf32>
    %160 = vector.broadcast %5 : vector<1x64xf32> to vector<2x64xf32>
    %161 = arith.addf %159, %160 : vector<2x64xf32>
    %162 = math.tanh %161 : vector<2x64xf32>
    %163 = arith.mulf %103, %162 : vector<2x64xf32>
    %c2_i32 = arith.constant 2 : i32
    %164 = arith.index_cast %c2_i32 : i32 to index
    %c0_57 = arith.constant 0 : index
    %c0_58 = arith.constant 0 : index
    %165 = vector.load %arg1[%164, %c0_57, %c0_58] : memref<8x2x266xf32, #tpu.memory_space<vmem>>, vector<1x2x266xf32>
    %166 = vector.shape_cast %165 : vector<1x2x266xf32> to vector<2x266xf32>
    %cst_59 = arith.constant dense<0.000000e+00> : vector<2x266xf32>
    %167 = tpu.matmul %163, %3, %cst_59 {dimension_numbers = #tpu.dot_dimension_numbers<[1], [0], [0], [1], [0, 0, 1, 1], [], []>} : vector<2x64xf32>, vector<64x266xf32>, vector<2x266xf32> -> vector<2x266xf32>
    %168 = arith.addf %166, %167 : vector<2x266xf32>
    %169 = vector.extract_strided_slice %168 {offsets = [0, 0], sizes = [2, 192], strides = [1, 1]} : vector<2x266xf32> to vector<2x192xf32>
    %cst_60 = arith.constant 0.166666672 : f32
    %170 = vector.broadcast %cst_60 : f32 to vector<2x192xf32>
    %171 = arith.mulf %169, %170 : vector<2x192xf32>
    %cst_61 = arith.constant 5.000000e-01 : f32
    %172 = vector.broadcast %cst_61 : f32 to vector<2x192xf32>
    %173 = arith.addf %171, %172 : vector<2x192xf32>
    %cst_62 = arith.constant 0.000000e+00 : f32
    %cst_63 = arith.constant 1.000000e+00 : f32
    %174 = vector.broadcast %cst_62 : f32 to vector<2x192xf32>
    %175 = arith.maximumf %174, %173 : vector<2x192xf32>
    %176 = vector.broadcast %cst_63 : f32 to vector<2x192xf32>
    %177 = arith.minimumf %176, %175 : vector<2x192xf32>
    %178 = vector.extract_strided_slice %177 {offsets = [0, 0], sizes = [2, 64], strides = [1, 1]} : vector<2x192xf32> to vector<2x64xf32>
    %179 = vector.extract_strided_slice %177 {offsets = [0, 64], sizes = [2, 64], strides = [1, 1]} : vector<2x192xf32> to vector<2x64xf32>
    %180 = vector.extract_strided_slice %177 {offsets = [0, 128], sizes = [2, 64], strides = [1, 1]} : vector<2x192xf32> to vector<2x64xf32>
    %181 = vector.extract_strided_slice %168 {offsets = [0, 192], sizes = [2, 64], strides = [1, 1]} : vector<2x266xf32> to vector<2x64xf32>
    %182 = math.tanh %181 : vector<2x64xf32>
    %183 = arith.mulf %178, %182 : vector<2x64xf32>
    %184 = vector.extract_strided_slice %168 {offsets = [0, 256], sizes = [2, 10], strides = [1, 1]} : vector<2x266xf32> to vector<2x10xf32>
    %cst_64 = arith.constant 0.166666672 : f32
    %185 = vector.broadcast %cst_64 : f32 to vector<2x10xf32>
    %186 = arith.mulf %184, %185 : vector<2x10xf32>
    %cst_65 = arith.constant 5.000000e-01 : f32
    %187 = vector.broadcast %cst_65 : f32 to vector<2x10xf32>
    %188 = arith.addf %186, %187 : vector<2x10xf32>
    %cst_66 = arith.constant 0.000000e+00 : f32
    %cst_67 = arith.constant 1.000000e+00 : f32
    %189 = vector.broadcast %cst_66 : f32 to vector<2x10xf32>
    %190 = arith.maximumf %189, %188 : vector<2x10xf32>
    %191 = vector.broadcast %cst_67 : f32 to vector<2x10xf32>
    %192 = arith.minimumf %191, %190 : vector<2x10xf32>
    %193 = vector.shape_cast %192 : vector<2x10xf32> to vector<2x10x1xf32>
    %194 = vector.shape_cast %179 : vector<2x64xf32> to vector<2x1x64xf32>
    %195 = vector.broadcast %193 : vector<2x10x1xf32> to vector<2x10x64xf32>
    %196 = vector.broadcast %194 : vector<2x1x64xf32> to vector<2x10x64xf32>
    %197 = arith.mulf %195, %196 : vector<2x10x64xf32>
    %198 = arith.addi %6, %c2_i32 : i32
    %c1_i32_68 = arith.constant 1 : i32
    %199 = arith.addi %198, %c1_i32_68 : i32
    %c10_i32_69 = arith.constant 10 : i32
    %c0_i32_70 = arith.constant 0 : i32
    %200 = arith.cmpi eq, %c10_i32_69, %c0_i32_70 : i32
    %c1_i32_71 = arith.constant 1 : i32
    %201 = arith.select %200, %c1_i32_71, %c10_i32_69 : i32
    %202 = arith.remsi %199, %201 : i32
    %c0_i32_72 = arith.constant 0 : i32
    %203 = arith.cmpi ne, %202, %c0_i32_72 : i32
    %c0_i32_73 = arith.constant 0 : i32
    %204 = arith.cmpi slt, %202, %c0_i32_73 : i32
    %c0_i32_74 = arith.constant 0 : i32
    %205 = arith.cmpi slt, %201, %c0_i32_74 : i32
    %206 = arith.xori %204, %205 : i1
    %207 = arith.andi %206, %203 : i1
    %208 = arith.addi %202, %201 : i32
    %209 = arith.select %207, %208, %202 : i32
    %210 = arith.index_cast %209 : i32 to index
    %c0_75 = arith.constant 0 : index
    %c0_76 = arith.constant 0 : index
    %c0_77 = arith.constant 0 : index
    %211 = vector.load %arg2[%210, %c0_75, %c0_76, %c0_77] : memref<10x2x10x1xf32, #tpu.memory_space<vmem>>, vector<1x2x10x1xf32>
    %212 = vector.shape_cast %211 : vector<1x2x10x1xf32> to vector<2x10x1xf32>
    %213 = vector.extract_strided_slice %212 {offsets = [0, 0, 0], sizes = [1, 10, 1], strides = [1, 1, 1]} : vector<2x10x1xf32> to vector<1x10x1xf32>
    %214 = vector.shape_cast %213 : vector<1x10x1xf32> to vector<10x1xf32>
    %215 = vector.extract_strided_slice %212 {offsets = [1, 0, 0], sizes = [1, 10, 1], strides = [1, 1, 1]} : vector<2x10x1xf32> to vector<1x10x1xf32>
    %216 = vector.shape_cast %215 : vector<1x10x1xf32> to vector<10x1xf32>
    %217 = vector.shape_cast %183 : vector<2x64xf32> to vector<2x1x64xf32>
    %218 = arith.mulf %197, %146 : vector<2x10x64xf32>
    %219 = vector.shape_cast %214 : vector<10x1xf32> to vector<1x10x1xf32>
    %220 = vector.broadcast %217 : vector<2x1x64xf32> to vector<2x10x64xf32>
    %221 = vector.broadcast %219 : vector<1x10x1xf32> to vector<2x10x64xf32>
    %222 = arith.mulf %220, %221 : vector<2x10x64xf32>
    %223 = arith.addf %218, %222 : vector<2x10x64xf32>
    %224 = arith.mulf %197, %152 : vector<2x10x64xf32>
    %225 = vector.shape_cast %216 : vector<10x1xf32> to vector<1x10x1xf32>
    %226 = vector.broadcast %217 : vector<2x1x64xf32> to vector<2x10x64xf32>
    %227 = vector.broadcast %225 : vector<1x10x1xf32> to vector<2x10x64xf32>
    %228 = arith.mulf %226, %227 : vector<2x10x64xf32>
    %229 = arith.addf %224, %228 : vector<2x10x64xf32>
    %230 = arith.mulf %223, %223 : vector<2x10x64xf32>
    %231 = arith.mulf %229, %229 : vector<2x10x64xf32>
    %232 = arith.addf %230, %231 : vector<2x10x64xf32>
    %233 = vector.shape_cast %4 : vector<10x1xf32> to vector<1x10x1xf32>
    %234 = vector.broadcast %233 : vector<1x10x1xf32> to vector<2x10x64xf32>
    %235 = arith.mulf %232, %234 : vector<2x10x64xf32>
    %cst_78 = arith.constant dense<0.000000e+00> : vector<2x64xf32>
    %236 = vector.multi_reduction <add>, %235, %cst_78 [1] : vector<2x10x64xf32> to vector<2x64xf32>
    %237 = vector.broadcast %5 : vector<1x64xf32> to vector<2x64xf32>
    %238 = arith.addf %236, %237 : vector<2x64xf32>
    %239 = math.tanh %238 : vector<2x64xf32>
    %240 = arith.mulf %180, %239 : vector<2x64xf32>
    %c3_i32 = arith.constant 3 : i32
    %241 = arith.index_cast %c3_i32 : i32 to index
    %c0_79 = arith.constant 0 : index
    %c0_80 = arith.constant 0 : index
    %242 = vector.load %arg1[%241, %c0_79, %c0_80] : memref<8x2x266xf32, #tpu.memory_space<vmem>>, vector<1x2x266xf32>
    %243 = vector.shape_cast %242 : vector<1x2x266xf32> to vector<2x266xf32>
    %cst_81 = arith.constant dense<0.000000e+00> : vector<2x266xf32>
    %244 = tpu.matmul %240, %3, %cst_81 {dimension_numbers = #tpu.dot_dimension_numbers<[1], [0], [0], [1], [0, 0, 1, 1], [], []>} : vector<2x64xf32>, vector<64x266xf32>, vector<2x266xf32> -> vector<2x266xf32>
    %245 = arith.addf %243, %244 : vector<2x266xf32>
    %246 = vector.extract_strided_slice %245 {offsets = [0, 0], sizes = [2, 192], strides = [1, 1]} : vector<2x266xf32> to vector<2x192xf32>
    %cst_82 = arith.constant 0.166666672 : f32
    %247 = vector.broadcast %cst_82 : f32 to vector<2x192xf32>
    %248 = arith.mulf %246, %247 : vector<2x192xf32>
    %cst_83 = arith.constant 5.000000e-01 : f32
    %249 = vector.broadcast %cst_83 : f32 to vector<2x192xf32>
    %250 = arith.addf %248, %249 : vector<2x192xf32>
    %cst_84 = arith.constant 0.000000e+00 : f32
    %cst_85 = arith.constant 1.000000e+00 : f32
    %251 = vector.broadcast %cst_84 : f32 to vector<2x192xf32>
    %252 = arith.maximumf %251, %250 : vector<2x192xf32>
    %253 = vector.broadcast %cst_85 : f32 to vector<2x192xf32>
    %254 = arith.minimumf %253, %252 : vector<2x192xf32>
    %255 = vector.extract_strided_slice %254 {offsets = [0, 0], sizes = [2, 64], strides = [1, 1]} : vector<2x192xf32> to vector<2x64xf32>
    %256 = vector.extract_strided_slice %254 {offsets = [0, 64], sizes = [2, 64], strides = [1, 1]} : vector<2x192xf32> to vector<2x64xf32>
    %257 = vector.extract_strided_slice %254 {offsets = [0, 128], sizes = [2, 64], strides = [1, 1]} : vector<2x192xf32> to vector<2x64xf32>
    %258 = vector.extract_strided_slice %245 {offsets = [0, 192], sizes = [2, 64], strides = [1, 1]} : vector<2x266xf32> to vector<2x64xf32>
    %259 = math.tanh %258 : vector<2x64xf32>
    %260 = arith.mulf %255, %259 : vector<2x64xf32>
    %261 = vector.extract_strided_slice %245 {offsets = [0, 256], sizes = [2, 10], strides = [1, 1]} : vector<2x266xf32> to vector<2x10xf32>
    %cst_86 = arith.constant 0.166666672 : f32
    %262 = vector.broadcast %cst_86 : f32 to vector<2x10xf32>
    %263 = arith.mulf %261, %262 : vector<2x10xf32>
    %cst_87 = arith.constant 5.000000e-01 : f32
    %264 = vector.broadcast %cst_87 : f32 to vector<2x10xf32>
    %265 = arith.addf %263, %264 : vector<2x10xf32>
    %cst_88 = arith.constant 0.000000e+00 : f32
    %cst_89 = arith.constant 1.000000e+00 : f32
    %266 = vector.broadcast %cst_88 : f32 to vector<2x10xf32>
    %267 = arith.maximumf %266, %265 : vector<2x10xf32>
    %268 = vector.broadcast %cst_89 : f32 to vector<2x10xf32>
    %269 = arith.minimumf %268, %267 : vector<2x10xf32>
    %270 = vector.shape_cast %269 : vector<2x10xf32> to vector<2x10x1xf32>
    %271 = vector.shape_cast %256 : vector<2x64xf32> to vector<2x1x64xf32>
    %272 = vector.broadcast %270 : vector<2x10x1xf32> to vector<2x10x64xf32>
    %273 = vector.broadcast %271 : vector<2x1x64xf32> to vector<2x10x64xf32>
    %274 = arith.mulf %272, %273 : vector<2x10x64xf32>
    %275 = arith.addi %6, %c3_i32 : i32
    %c1_i32_90 = arith.constant 1 : i32
    %276 = arith.addi %275, %c1_i32_90 : i32
    %c10_i32_91 = arith.constant 10 : i32
    %c0_i32_92 = arith.constant 0 : i32
    %277 = arith.cmpi eq, %c10_i32_91, %c0_i32_92 : i32
    %c1_i32_93 = arith.constant 1 : i32
    %278 = arith.select %277, %c1_i32_93, %c10_i32_91 : i32
    %279 = arith.remsi %276, %278 : i32
    %c0_i32_94 = arith.constant 0 : i32
    %280 = arith.cmpi ne, %279, %c0_i32_94 : i32
    %c0_i32_95 = arith.constant 0 : i32
    %281 = arith.cmpi slt, %279, %c0_i32_95 : i32
    %c0_i32_96 = arith.constant 0 : i32
    %282 = arith.cmpi slt, %278, %c0_i32_96 : i32
    %283 = arith.xori %281, %282 : i1
    %284 = arith.andi %283, %280 : i1
    %285 = arith.addi %279, %278 : i32
    %286 = arith.select %284, %285, %279 : i32
    %287 = arith.index_cast %286 : i32 to index
    %c0_97 = arith.constant 0 : index
    %c0_98 = arith.constant 0 : index
    %c0_99 = arith.constant 0 : index
    %288 = vector.load %arg2[%287, %c0_97, %c0_98, %c0_99] : memref<10x2x10x1xf32, #tpu.memory_space<vmem>>, vector<1x2x10x1xf32>
    %289 = vector.shape_cast %288 : vector<1x2x10x1xf32> to vector<2x10x1xf32>
    %290 = vector.extract_strided_slice %289 {offsets = [0, 0, 0], sizes = [1, 10, 1], strides = [1, 1, 1]} : vector<2x10x1xf32> to vector<1x10x1xf32>
    %291 = vector.shape_cast %290 : vector<1x10x1xf32> to vector<10x1xf32>
    %292 = vector.extract_strided_slice %289 {offsets = [1, 0, 0], sizes = [1, 10, 1], strides = [1, 1, 1]} : vector<2x10x1xf32> to vector<1x10x1xf32>
    %293 = vector.shape_cast %292 : vector<1x10x1xf32> to vector<10x1xf32>
    %294 = vector.shape_cast %260 : vector<2x64xf32> to vector<2x1x64xf32>
    %295 = arith.mulf %274, %223 : vector<2x10x64xf32>
    %296 = vector.shape_cast %291 : vector<10x1xf32> to vector<1x10x1xf32>
    %297 = vector.broadcast %294 : vector<2x1x64xf32> to vector<2x10x64xf32>
    %298 = vector.broadcast %296 : vector<1x10x1xf32> to vector<2x10x64xf32>
    %299 = arith.mulf %297, %298 : vector<2x10x64xf32>
    %300 = arith.addf %295, %299 : vector<2x10x64xf32>
    %301 = arith.mulf %274, %229 : vector<2x10x64xf32>
    %302 = vector.shape_cast %293 : vector<10x1xf32> to vector<1x10x1xf32>
    %303 = vector.broadcast %294 : vector<2x1x64xf32> to vector<2x10x64xf32>
    %304 = vector.broadcast %302 : vector<1x10x1xf32> to vector<2x10x64xf32>
    %305 = arith.mulf %303, %304 : vector<2x10x64xf32>
    %306 = arith.addf %301, %305 : vector<2x10x64xf32>
    %307 = arith.mulf %300, %300 : vector<2x10x64xf32>
    %308 = arith.mulf %306, %306 : vector<2x10x64xf32>
    %309 = arith.addf %307, %308 : vector<2x10x64xf32>
    %310 = vector.shape_cast %4 : vector<10x1xf32> to vector<1x10x1xf32>
    %311 = vector.broadcast %310 : vector<1x10x1xf32> to vector<2x10x64xf32>
    %312 = arith.mulf %309, %311 : vector<2x10x64xf32>
    %cst_100 = arith.constant dense<0.000000e+00> : vector<2x64xf32>
    %313 = vector.multi_reduction <add>, %312, %cst_100 [1] : vector<2x10x64xf32> to vector<2x64xf32>
    %314 = vector.broadcast %5 : vector<1x64xf32> to vector<2x64xf32>
    %315 = arith.addf %313, %314 : vector<2x64xf32>
    %316 = math.tanh %315 : vector<2x64xf32>
    %317 = arith.mulf %257, %316 : vector<2x64xf32>
    %c4_i32 = arith.constant 4 : i32
    %318 = arith.index_cast %c4_i32 : i32 to index
    %c0_101 = arith.constant 0 : index
    %c0_102 = arith.constant 0 : index
    %319 = vector.load %arg1[%318, %c0_101, %c0_102] : memref<8x2x266xf32, #tpu.memory_space<vmem>>, vector<1x2x266xf32>
    %320 = vector.shape_cast %319 : vector<1x2x266xf32> to vector<2x266xf32>
    %cst_103 = arith.constant dense<0.000000e+00> : vector<2x266xf32>
    %321 = tpu.matmul %317, %3, %cst_103 {dimension_numbers = #tpu.dot_dimension_numbers<[1], [0], [0], [1], [0, 0, 1, 1], [], []>} : vector<2x64xf32>, vector<64x266xf32>, vector<2x266xf32> -> vector<2x266xf32>
    %322 = arith.addf %320, %321 : vector<2x266xf32>
    %323 = vector.extract_strided_slice %322 {offsets = [0, 0], sizes = [2, 192], strides = [1, 1]} : vector<2x266xf32> to vector<2x192xf32>
    %cst_104 = arith.constant 0.166666672 : f32
    %324 = vector.broadcast %cst_104 : f32 to vector<2x192xf32>
    %325 = arith.mulf %323, %324 : vector<2x192xf32>
    %cst_105 = arith.constant 5.000000e-01 : f32
    %326 = vector.broadcast %cst_105 : f32 to vector<2x192xf32>
    %327 = arith.addf %325, %326 : vector<2x192xf32>
    %cst_106 = arith.constant 0.000000e+00 : f32
    %cst_107 = arith.constant 1.000000e+00 : f32
    %328 = vector.broadcast %cst_106 : f32 to vector<2x192xf32>
    %329 = arith.maximumf %328, %327 : vector<2x192xf32>
    %330 = vector.broadcast %cst_107 : f32 to vector<2x192xf32>
    %331 = arith.minimumf %330, %329 : vector<2x192xf32>
    %332 = vector.extract_strided_slice %331 {offsets = [0, 0], sizes = [2, 64], strides = [1, 1]} : vector<2x192xf32> to vector<2x64xf32>
    %333 = vector.extract_strided_slice %331 {offsets = [0, 64], sizes = [2, 64], strides = [1, 1]} : vector<2x192xf32> to vector<2x64xf32>
    %334 = vector.extract_strided_slice %331 {offsets = [0, 128], sizes = [2, 64], strides = [1, 1]} : vector<2x192xf32> to vector<2x64xf32>
    %335 = vector.extract_strided_slice %322 {offsets = [0, 192], sizes = [2, 64], strides = [1, 1]} : vector<2x266xf32> to vector<2x64xf32>
    %336 = math.tanh %335 : vector<2x64xf32>
    %337 = arith.mulf %332, %336 : vector<2x64xf32>
    %338 = vector.extract_strided_slice %322 {offsets = [0, 256], sizes = [2, 10], strides = [1, 1]} : vector<2x266xf32> to vector<2x10xf32>
    %cst_108 = arith.constant 0.166666672 : f32
    %339 = vector.broadcast %cst_108 : f32 to vector<2x10xf32>
    %340 = arith.mulf %338, %339 : vector<2x10xf32>
    %cst_109 = arith.constant 5.000000e-01 : f32
    %341 = vector.broadcast %cst_109 : f32 to vector<2x10xf32>
    %342 = arith.addf %340, %341 : vector<2x10xf32>
    %cst_110 = arith.constant 0.000000e+00 : f32
    %cst_111 = arith.constant 1.000000e+00 : f32
    %343 = vector.broadcast %cst_110 : f32 to vector<2x10xf32>
    %344 = arith.maximumf %343, %342 : vector<2x10xf32>
    %345 = vector.broadcast %cst_111 : f32 to vector<2x10xf32>
    %346 = arith.minimumf %345, %344 : vector<2x10xf32>
    %347 = vector.shape_cast %346 : vector<2x10xf32> to vector<2x10x1xf32>
    %348 = vector.shape_cast %333 : vector<2x64xf32> to vector<2x1x64xf32>
    %349 = vector.broadcast %347 : vector<2x10x1xf32> to vector<2x10x64xf32>
    %350 = vector.broadcast %348 : vector<2x1x64xf32> to vector<2x10x64xf32>
    %351 = arith.mulf %349, %350 : vector<2x10x64xf32>
    %352 = arith.addi %6, %c4_i32 : i32
    %c1_i32_112 = arith.constant 1 : i32
    %353 = arith.addi %352, %c1_i32_112 : i32
    %c10_i32_113 = arith.constant 10 : i32
    %c0_i32_114 = arith.constant 0 : i32
    %354 = arith.cmpi eq, %c10_i32_113, %c0_i32_114 : i32
    %c1_i32_115 = arith.constant 1 : i32
    %355 = arith.select %354, %c1_i32_115, %c10_i32_113 : i32
    %356 = arith.remsi %353, %355 : i32
    %c0_i32_116 = arith.constant 0 : i32
    %357 = arith.cmpi ne, %356, %c0_i32_116 : i32
    %c0_i32_117 = arith.constant 0 : i32
    %358 = arith.cmpi slt, %356, %c0_i32_117 : i32
    %c0_i32_118 = arith.constant 0 : i32
    %359 = arith.cmpi slt, %355, %c0_i32_118 : i32
    %360 = arith.xori %358, %359 : i1
    %361 = arith.andi %360, %357 : i1
    %362 = arith.addi %356, %355 : i32
    %363 = arith.select %361, %362, %356 : i32
    %364 = arith.index_cast %363 : i32 to index
    %c0_119 = arith.constant 0 : index
    %c0_120 = arith.constant 0 : index
    %c0_121 = arith.constant 0 : index
    %365 = vector.load %arg2[%364, %c0_119, %c0_120, %c0_121] : memref<10x2x10x1xf32, #tpu.memory_space<vmem>>, vector<1x2x10x1xf32>
    %366 = vector.shape_cast %365 : vector<1x2x10x1xf32> to vector<2x10x1xf32>
    %367 = vector.extract_strided_slice %366 {offsets = [0, 0, 0], sizes = [1, 10, 1], strides = [1, 1, 1]} : vector<2x10x1xf32> to vector<1x10x1xf32>
    %368 = vector.shape_cast %367 : vector<1x10x1xf32> to vector<10x1xf32>
    %369 = vector.extract_strided_slice %366 {offsets = [1, 0, 0], sizes = [1, 10, 1], strides = [1, 1, 1]} : vector<2x10x1xf32> to vector<1x10x1xf32>
    %370 = vector.shape_cast %369 : vector<1x10x1xf32> to vector<10x1xf32>
    %371 = vector.shape_cast %337 : vector<2x64xf32> to vector<2x1x64xf32>
    %372 = arith.mulf %351, %300 : vector<2x10x64xf32>
    %373 = vector.shape_cast %368 : vector<10x1xf32> to vector<1x10x1xf32>
    %374 = vector.broadcast %371 : vector<2x1x64xf32> to vector<2x10x64xf32>
    %375 = vector.broadcast %373 : vector<1x10x1xf32> to vector<2x10x64xf32>
    %376 = arith.mulf %374, %375 : vector<2x10x64xf32>
    %377 = arith.addf %372, %376 : vector<2x10x64xf32>
    %378 = arith.mulf %351, %306 : vector<2x10x64xf32>
    %379 = vector.shape_cast %370 : vector<10x1xf32> to vector<1x10x1xf32>
    %380 = vector.broadcast %371 : vector<2x1x64xf32> to vector<2x10x64xf32>
    %381 = vector.broadcast %379 : vector<1x10x1xf32> to vector<2x10x64xf32>
    %382 = arith.mulf %380, %381 : vector<2x10x64xf32>
    %383 = arith.addf %378, %382 : vector<2x10x64xf32>
    %384 = arith.mulf %377, %377 : vector<2x10x64xf32>
    %385 = arith.mulf %383, %383 : vector<2x10x64xf32>
    %386 = arith.addf %384, %385 : vector<2x10x64xf32>
    %387 = vector.shape_cast %4 : vector<10x1xf32> to vector<1x10x1xf32>
    %388 = vector.broadcast %387 : vector<1x10x1xf32> to vector<2x10x64xf32>
    %389 = arith.mulf %386, %388 : vector<2x10x64xf32>
    %cst_122 = arith.constant dense<0.000000e+00> : vector<2x64xf32>
    %390 = vector.multi_reduction <add>, %389, %cst_122 [1] : vector<2x10x64xf32> to vector<2x64xf32>
    %391 = vector.broadcast %5 : vector<1x64xf32> to vector<2x64xf32>
    %392 = arith.addf %390, %391 : vector<2x64xf32>
    %393 = math.tanh %392 : vector<2x64xf32>
    %394 = arith.mulf %334, %393 : vector<2x64xf32>
    %c5_i32 = arith.constant 5 : i32
    %395 = arith.index_cast %c5_i32 : i32 to index
    %c0_123 = arith.constant 0 : index
    %c0_124 = arith.constant 0 : index
    %396 = vector.load %arg1[%395, %c0_123, %c0_124] : memref<8x2x266xf32, #tpu.memory_space<vmem>>, vector<1x2x266xf32>
    %397 = vector.shape_cast %396 : vector<1x2x266xf32> to vector<2x266xf32>
    %cst_125 = arith.constant dense<0.000000e+00> : vector<2x266xf32>
    %398 = tpu.matmul %394, %3, %cst_125 {dimension_numbers = #tpu.dot_dimension_numbers<[1], [0], [0], [1], [0, 0, 1, 1], [], []>} : vector<2x64xf32>, vector<64x266xf32>, vector<2x266xf32> -> vector<2x266xf32>
    %399 = arith.addf %397, %398 : vector<2x266xf32>
    %400 = vector.extract_strided_slice %399 {offsets = [0, 0], sizes = [2, 192], strides = [1, 1]} : vector<2x266xf32> to vector<2x192xf32>
    %cst_126 = arith.constant 0.166666672 : f32
    %401 = vector.broadcast %cst_126 : f32 to vector<2x192xf32>
    %402 = arith.mulf %400, %401 : vector<2x192xf32>
    %cst_127 = arith.constant 5.000000e-01 : f32
    %403 = vector.broadcast %cst_127 : f32 to vector<2x192xf32>
    %404 = arith.addf %402, %403 : vector<2x192xf32>
    %cst_128 = arith.constant 0.000000e+00 : f32
    %cst_129 = arith.constant 1.000000e+00 : f32
    %405 = vector.broadcast %cst_128 : f32 to vector<2x192xf32>
    %406 = arith.maximumf %405, %404 : vector<2x192xf32>
    %407 = vector.broadcast %cst_129 : f32 to vector<2x192xf32>
    %408 = arith.minimumf %407, %406 : vector<2x192xf32>
    %409 = vector.extract_strided_slice %408 {offsets = [0, 0], sizes = [2, 64], strides = [1, 1]} : vector<2x192xf32> to vector<2x64xf32>
    %410 = vector.extract_strided_slice %408 {offsets = [0, 64], sizes = [2, 64], strides = [1, 1]} : vector<2x192xf32> to vector<2x64xf32>
    %411 = vector.extract_strided_slice %408 {offsets = [0, 128], sizes = [2, 64], strides = [1, 1]} : vector<2x192xf32> to vector<2x64xf32>
    %412 = vector.extract_strided_slice %399 {offsets = [0, 192], sizes = [2, 64], strides = [1, 1]} : vector<2x266xf32> to vector<2x64xf32>
    %413 = math.tanh %412 : vector<2x64xf32>
    %414 = arith.mulf %409, %413 : vector<2x64xf32>
    %415 = vector.extract_strided_slice %399 {offsets = [0, 256], sizes = [2, 10], strides = [1, 1]} : vector<2x266xf32> to vector<2x10xf32>
    %cst_130 = arith.constant 0.166666672 : f32
    %416 = vector.broadcast %cst_130 : f32 to vector<2x10xf32>
    %417 = arith.mulf %415, %416 : vector<2x10xf32>
    %cst_131 = arith.constant 5.000000e-01 : f32
    %418 = vector.broadcast %cst_131 : f32 to vector<2x10xf32>
    %419 = arith.addf %417, %418 : vector<2x10xf32>
    %cst_132 = arith.constant 0.000000e+00 : f32
    %cst_133 = arith.constant 1.000000e+00 : f32
    %420 = vector.broadcast %cst_132 : f32 to vector<2x10xf32>
    %421 = arith.maximumf %420, %419 : vector<2x10xf32>
    %422 = vector.broadcast %cst_133 : f32 to vector<2x10xf32>
    %423 = arith.minimumf %422, %421 : vector<2x10xf32>
    %424 = vector.shape_cast %423 : vector<2x10xf32> to vector<2x10x1xf32>
    %425 = vector.shape_cast %410 : vector<2x64xf32> to vector<2x1x64xf32>
    %426 = vector.broadcast %424 : vector<2x10x1xf32> to vector<2x10x64xf32>
    %427 = vector.broadcast %425 : vector<2x1x64xf32> to vector<2x10x64xf32>
    %428 = arith.mulf %426, %427 : vector<2x10x64xf32>
    %429 = arith.addi %6, %c5_i32 : i32
    %c1_i32_134 = arith.constant 1 : i32
    %430 = arith.addi %429, %c1_i32_134 : i32
    %c10_i32_135 = arith.constant 10 : i32
    %c0_i32_136 = arith.constant 0 : i32
    %431 = arith.cmpi eq, %c10_i32_135, %c0_i32_136 : i32
    %c1_i32_137 = arith.constant 1 : i32
    %432 = arith.select %431, %c1_i32_137, %c10_i32_135 : i32
    %433 = arith.remsi %430, %432 : i32
    %c0_i32_138 = arith.constant 0 : i32
    %434 = arith.cmpi ne, %433, %c0_i32_138 : i32
    %c0_i32_139 = arith.constant 0 : i32
    %435 = arith.cmpi slt, %433, %c0_i32_139 : i32
    %c0_i32_140 = arith.constant 0 : i32
    %436 = arith.cmpi slt, %432, %c0_i32_140 : i32
    %437 = arith.xori %435, %436 : i1
    %438 = arith.andi %437, %434 : i1
    %439 = arith.addi %433, %432 : i32
    %440 = arith.select %438, %439, %433 : i32
    %441 = arith.index_cast %440 : i32 to index
    %c0_141 = arith.constant 0 : index
    %c0_142 = arith.constant 0 : index
    %c0_143 = arith.constant 0 : index
    %442 = vector.load %arg2[%441, %c0_141, %c0_142, %c0_143] : memref<10x2x10x1xf32, #tpu.memory_space<vmem>>, vector<1x2x10x1xf32>
    %443 = vector.shape_cast %442 : vector<1x2x10x1xf32> to vector<2x10x1xf32>
    %444 = vector.extract_strided_slice %443 {offsets = [0, 0, 0], sizes = [1, 10, 1], strides = [1, 1, 1]} : vector<2x10x1xf32> to vector<1x10x1xf32>
    %445 = vector.shape_cast %444 : vector<1x10x1xf32> to vector<10x1xf32>
    %446 = vector.extract_strided_slice %443 {offsets = [1, 0, 0], sizes = [1, 10, 1], strides = [1, 1, 1]} : vector<2x10x1xf32> to vector<1x10x1xf32>
    %447 = vector.shape_cast %446 : vector<1x10x1xf32> to vector<10x1xf32>
    %448 = vector.shape_cast %414 : vector<2x64xf32> to vector<2x1x64xf32>
    %449 = arith.mulf %428, %377 : vector<2x10x64xf32>
    %450 = vector.shape_cast %445 : vector<10x1xf32> to vector<1x10x1xf32>
    %451 = vector.broadcast %448 : vector<2x1x64xf32> to vector<2x10x64xf32>
    %452 = vector.broadcast %450 : vector<1x10x1xf32> to vector<2x10x64xf32>
    %453 = arith.mulf %451, %452 : vector<2x10x64xf32>
    %454 = arith.addf %449, %453 : vector<2x10x64xf32>
    %455 = arith.mulf %428, %383 : vector<2x10x64xf32>
    %456 = vector.shape_cast %447 : vector<10x1xf32> to vector<1x10x1xf32>
    %457 = vector.broadcast %448 : vector<2x1x64xf32> to vector<2x10x64xf32>
    %458 = vector.broadcast %456 : vector<1x10x1xf32> to vector<2x10x64xf32>
    %459 = arith.mulf %457, %458 : vector<2x10x64xf32>
    %460 = arith.addf %455, %459 : vector<2x10x64xf32>
    %461 = arith.mulf %454, %454 : vector<2x10x64xf32>
    %462 = arith.mulf %460, %460 : vector<2x10x64xf32>
    %463 = arith.addf %461, %462 : vector<2x10x64xf32>
    %464 = vector.shape_cast %4 : vector<10x1xf32> to vector<1x10x1xf32>
    %465 = vector.broadcast %464 : vector<1x10x1xf32> to vector<2x10x64xf32>
    %466 = arith.mulf %463, %465 : vector<2x10x64xf32>
    %cst_144 = arith.constant dense<0.000000e+00> : vector<2x64xf32>
    %467 = vector.multi_reduction <add>, %466, %cst_144 [1] : vector<2x10x64xf32> to vector<2x64xf32>
    %468 = vector.broadcast %5 : vector<1x64xf32> to vector<2x64xf32>
    %469 = arith.addf %467, %468 : vector<2x64xf32>
    %470 = math.tanh %469 : vector<2x64xf32>
    %471 = arith.mulf %411, %470 : vector<2x64xf32>
    %c6_i32 = arith.constant 6 : i32
    %472 = arith.index_cast %c6_i32 : i32 to index
    %c0_145 = arith.constant 0 : index
    %c0_146 = arith.constant 0 : index
    %473 = vector.load %arg1[%472, %c0_145, %c0_146] : memref<8x2x266xf32, #tpu.memory_space<vmem>>, vector<1x2x266xf32>
    %474 = vector.shape_cast %473 : vector<1x2x266xf32> to vector<2x266xf32>
    %cst_147 = arith.constant dense<0.000000e+00> : vector<2x266xf32>
    %475 = tpu.matmul %471, %3, %cst_147 {dimension_numbers = #tpu.dot_dimension_numbers<[1], [0], [0], [1], [0, 0, 1, 1], [], []>} : vector<2x64xf32>, vector<64x266xf32>, vector<2x266xf32> -> vector<2x266xf32>
    %476 = arith.addf %474, %475 : vector<2x266xf32>
    %477 = vector.extract_strided_slice %476 {offsets = [0, 0], sizes = [2, 192], strides = [1, 1]} : vector<2x266xf32> to vector<2x192xf32>
    %cst_148 = arith.constant 0.166666672 : f32
    %478 = vector.broadcast %cst_148 : f32 to vector<2x192xf32>
    %479 = arith.mulf %477, %478 : vector<2x192xf32>
    %cst_149 = arith.constant 5.000000e-01 : f32
    %480 = vector.broadcast %cst_149 : f32 to vector<2x192xf32>
    %481 = arith.addf %479, %480 : vector<2x192xf32>
    %cst_150 = arith.constant 0.000000e+00 : f32
    %cst_151 = arith.constant 1.000000e+00 : f32
    %482 = vector.broadcast %cst_150 : f32 to vector<2x192xf32>
    %483 = arith.maximumf %482, %481 : vector<2x192xf32>
    %484 = vector.broadcast %cst_151 : f32 to vector<2x192xf32>
    %485 = arith.minimumf %484, %483 : vector<2x192xf32>
    %486 = vector.extract_strided_slice %485 {offsets = [0, 0], sizes = [2, 64], strides = [1, 1]} : vector<2x192xf32> to vector<2x64xf32>
    %487 = vector.extract_strided_slice %485 {offsets = [0, 64], sizes = [2, 64], strides = [1, 1]} : vector<2x192xf32> to vector<2x64xf32>
    %488 = vector.extract_strided_slice %485 {offsets = [0, 128], sizes = [2, 64], strides = [1, 1]} : vector<2x192xf32> to vector<2x64xf32>
    %489 = vector.extract_strided_slice %476 {offsets = [0, 192], sizes = [2, 64], strides = [1, 1]} : vector<2x266xf32> to vector<2x64xf32>
    %490 = math.tanh %489 : vector<2x64xf32>
    %491 = arith.mulf %486, %490 : vector<2x64xf32>
    %492 = vector.extract_strided_slice %476 {offsets = [0, 256], sizes = [2, 10], strides = [1, 1]} : vector<2x266xf32> to vector<2x10xf32>
    %cst_152 = arith.constant 0.166666672 : f32
    %493 = vector.broadcast %cst_152 : f32 to vector<2x10xf32>
    %494 = arith.mulf %492, %493 : vector<2x10xf32>
    %cst_153 = arith.constant 5.000000e-01 : f32
    %495 = vector.broadcast %cst_153 : f32 to vector<2x10xf32>
    %496 = arith.addf %494, %495 : vector<2x10xf32>
    %cst_154 = arith.constant 0.000000e+00 : f32
    %cst_155 = arith.constant 1.000000e+00 : f32
    %497 = vector.broadcast %cst_154 : f32 to vector<2x10xf32>
    %498 = arith.maximumf %497, %496 : vector<2x10xf32>
    %499 = vector.broadcast %cst_155 : f32 to vector<2x10xf32>
    %500 = arith.minimumf %499, %498 : vector<2x10xf32>
    %501 = vector.shape_cast %500 : vector<2x10xf32> to vector<2x10x1xf32>
    %502 = vector.shape_cast %487 : vector<2x64xf32> to vector<2x1x64xf32>
    %503 = vector.broadcast %501 : vector<2x10x1xf32> to vector<2x10x64xf32>
    %504 = vector.broadcast %502 : vector<2x1x64xf32> to vector<2x10x64xf32>
    %505 = arith.mulf %503, %504 : vector<2x10x64xf32>
    %506 = arith.addi %6, %c6_i32 : i32
    %c1_i32_156 = arith.constant 1 : i32
    %507 = arith.addi %506, %c1_i32_156 : i32
    %c10_i32_157 = arith.constant 10 : i32
    %c0_i32_158 = arith.constant 0 : i32
    %508 = arith.cmpi eq, %c10_i32_157, %c0_i32_158 : i32
    %c1_i32_159 = arith.constant 1 : i32
    %509 = arith.select %508, %c1_i32_159, %c10_i32_157 : i32
    %510 = arith.remsi %507, %509 : i32
    %c0_i32_160 = arith.constant 0 : i32
    %511 = arith.cmpi ne, %510, %c0_i32_160 : i32
    %c0_i32_161 = arith.constant 0 : i32
    %512 = arith.cmpi slt, %510, %c0_i32_161 : i32
    %c0_i32_162 = arith.constant 0 : i32
    %513 = arith.cmpi slt, %509, %c0_i32_162 : i32
    %514 = arith.xori %512, %513 : i1
    %515 = arith.andi %514, %511 : i1
    %516 = arith.addi %510, %509 : i32
    %517 = arith.select %515, %516, %510 : i32
    %518 = arith.index_cast %517 : i32 to index
    %c0_163 = arith.constant 0 : index
    %c0_164 = arith.constant 0 : index
    %c0_165 = arith.constant 0 : index
    %519 = vector.load %arg2[%518, %c0_163, %c0_164, %c0_165] : memref<10x2x10x1xf32, #tpu.memory_space<vmem>>, vector<1x2x10x1xf32>
    %520 = vector.shape_cast %519 : vector<1x2x10x1xf32> to vector<2x10x1xf32>
    %521 = vector.extract_strided_slice %520 {offsets = [0, 0, 0], sizes = [1, 10, 1], strides = [1, 1, 1]} : vector<2x10x1xf32> to vector<1x10x1xf32>
    %522 = vector.shape_cast %521 : vector<1x10x1xf32> to vector<10x1xf32>
    %523 = vector.extract_strided_slice %520 {offsets = [1, 0, 0], sizes = [1, 10, 1], strides = [1, 1, 1]} : vector<2x10x1xf32> to vector<1x10x1xf32>
    %524 = vector.shape_cast %523 : vector<1x10x1xf32> to vector<10x1xf32>
    %525 = vector.shape_cast %491 : vector<2x64xf32> to vector<2x1x64xf32>
    %526 = arith.mulf %505, %454 : vector<2x10x64xf32>
    %527 = vector.shape_cast %522 : vector<10x1xf32> to vector<1x10x1xf32>
    %528 = vector.broadcast %525 : vector<2x1x64xf32> to vector<2x10x64xf32>
    %529 = vector.broadcast %527 : vector<1x10x1xf32> to vector<2x10x64xf32>
    %530 = arith.mulf %528, %529 : vector<2x10x64xf32>
    %531 = arith.addf %526, %530 : vector<2x10x64xf32>
    %532 = arith.mulf %505, %460 : vector<2x10x64xf32>
    %533 = vector.shape_cast %524 : vector<10x1xf32> to vector<1x10x1xf32>
    %534 = vector.broadcast %525 : vector<2x1x64xf32> to vector<2x10x64xf32>
    %535 = vector.broadcast %533 : vector<1x10x1xf32> to vector<2x10x64xf32>
    %536 = arith.mulf %534, %535 : vector<2x10x64xf32>
    %537 = arith.addf %532, %536 : vector<2x10x64xf32>
    %538 = arith.mulf %531, %531 : vector<2x10x64xf32>
    %539 = arith.mulf %537, %537 : vector<2x10x64xf32>
    %540 = arith.addf %538, %539 : vector<2x10x64xf32>
    %541 = vector.shape_cast %4 : vector<10x1xf32> to vector<1x10x1xf32>
    %542 = vector.broadcast %541 : vector<1x10x1xf32> to vector<2x10x64xf32>
    %543 = arith.mulf %540, %542 : vector<2x10x64xf32>
    %cst_166 = arith.constant dense<0.000000e+00> : vector<2x64xf32>
    %544 = vector.multi_reduction <add>, %543, %cst_166 [1] : vector<2x10x64xf32> to vector<2x64xf32>
    %545 = vector.broadcast %5 : vector<1x64xf32> to vector<2x64xf32>
    %546 = arith.addf %544, %545 : vector<2x64xf32>
    %547 = math.tanh %546 : vector<2x64xf32>
    %548 = arith.mulf %488, %547 : vector<2x64xf32>
    %c7_i32 = arith.constant 7 : i32
    %549 = arith.index_cast %c7_i32 : i32 to index
    %c0_167 = arith.constant 0 : index
    %c0_168 = arith.constant 0 : index
    %550 = vector.load %arg1[%549, %c0_167, %c0_168] : memref<8x2x266xf32, #tpu.memory_space<vmem>>, vector<1x2x266xf32>
    %551 = vector.shape_cast %550 : vector<1x2x266xf32> to vector<2x266xf32>
    %cst_169 = arith.constant dense<0.000000e+00> : vector<2x266xf32>
    %552 = tpu.matmul %548, %3, %cst_169 {dimension_numbers = #tpu.dot_dimension_numbers<[1], [0], [0], [1], [0, 0, 1, 1], [], []>} : vector<2x64xf32>, vector<64x266xf32>, vector<2x266xf32> -> vector<2x266xf32>
    %553 = arith.addf %551, %552 : vector<2x266xf32>
    %554 = vector.extract_strided_slice %553 {offsets = [0, 0], sizes = [2, 192], strides = [1, 1]} : vector<2x266xf32> to vector<2x192xf32>
    %cst_170 = arith.constant 0.166666672 : f32
    %555 = vector.broadcast %cst_170 : f32 to vector<2x192xf32>
    %556 = arith.mulf %554, %555 : vector<2x192xf32>
    %cst_171 = arith.constant 5.000000e-01 : f32
    %557 = vector.broadcast %cst_171 : f32 to vector<2x192xf32>
    %558 = arith.addf %556, %557 : vector<2x192xf32>
    %cst_172 = arith.constant 0.000000e+00 : f32
    %cst_173 = arith.constant 1.000000e+00 : f32
    %559 = vector.broadcast %cst_172 : f32 to vector<2x192xf32>
    %560 = arith.maximumf %559, %558 : vector<2x192xf32>
    %561 = vector.broadcast %cst_173 : f32 to vector<2x192xf32>
    %562 = arith.minimumf %561, %560 : vector<2x192xf32>
    %563 = vector.extract_strided_slice %562 {offsets = [0, 0], sizes = [2, 64], strides = [1, 1]} : vector<2x192xf32> to vector<2x64xf32>
    %564 = vector.extract_strided_slice %562 {offsets = [0, 64], sizes = [2, 64], strides = [1, 1]} : vector<2x192xf32> to vector<2x64xf32>
    %565 = vector.extract_strided_slice %562 {offsets = [0, 128], sizes = [2, 64], strides = [1, 1]} : vector<2x192xf32> to vector<2x64xf32>
    %566 = vector.extract_strided_slice %553 {offsets = [0, 192], sizes = [2, 64], strides = [1, 1]} : vector<2x266xf32> to vector<2x64xf32>
    %567 = math.tanh %566 : vector<2x64xf32>
    %568 = arith.mulf %563, %567 : vector<2x64xf32>
    %569 = vector.extract_strided_slice %553 {offsets = [0, 256], sizes = [2, 10], strides = [1, 1]} : vector<2x266xf32> to vector<2x10xf32>
    %cst_174 = arith.constant 0.166666672 : f32
    %570 = vector.broadcast %cst_174 : f32 to vector<2x10xf32>
    %571 = arith.mulf %569, %570 : vector<2x10xf32>
    %cst_175 = arith.constant 5.000000e-01 : f32
    %572 = vector.broadcast %cst_175 : f32 to vector<2x10xf32>
    %573 = arith.addf %571, %572 : vector<2x10xf32>
    %cst_176 = arith.constant 0.000000e+00 : f32
    %cst_177 = arith.constant 1.000000e+00 : f32
    %574 = vector.broadcast %cst_176 : f32 to vector<2x10xf32>
    %575 = arith.maximumf %574, %573 : vector<2x10xf32>
    %576 = vector.broadcast %cst_177 : f32 to vector<2x10xf32>
    %577 = arith.minimumf %576, %575 : vector<2x10xf32>
    %578 = vector.shape_cast %577 : vector<2x10xf32> to vector<2x10x1xf32>
    %579 = vector.shape_cast %564 : vector<2x64xf32> to vector<2x1x64xf32>
    %580 = vector.broadcast %578 : vector<2x10x1xf32> to vector<2x10x64xf32>
    %581 = vector.broadcast %579 : vector<2x1x64xf32> to vector<2x10x64xf32>
    %582 = arith.mulf %580, %581 : vector<2x10x64xf32>
    %583 = arith.addi %6, %c7_i32 : i32
    %c1_i32_178 = arith.constant 1 : i32
    %584 = arith.addi %583, %c1_i32_178 : i32
    %c10_i32_179 = arith.constant 10 : i32
    %c0_i32_180 = arith.constant 0 : i32
    %585 = arith.cmpi eq, %c10_i32_179, %c0_i32_180 : i32
    %c1_i32_181 = arith.constant 1 : i32
    %586 = arith.select %585, %c1_i32_181, %c10_i32_179 : i32
    %587 = arith.remsi %584, %586 : i32
    %c0_i32_182 = arith.constant 0 : i32
    %588 = arith.cmpi ne, %587, %c0_i32_182 : i32
    %c0_i32_183 = arith.constant 0 : i32
    %589 = arith.cmpi slt, %587, %c0_i32_183 : i32
    %c0_i32_184 = arith.constant 0 : i32
    %590 = arith.cmpi slt, %586, %c0_i32_184 : i32
    %591 = arith.xori %589, %590 : i1
    %592 = arith.andi %591, %588 : i1
    %593 = arith.addi %587, %586 : i32
    %594 = arith.select %592, %593, %587 : i32
    %595 = arith.index_cast %594 : i32 to index
    %c0_185 = arith.constant 0 : index
    %c0_186 = arith.constant 0 : index
    %c0_187 = arith.constant 0 : index
    %596 = vector.load %arg2[%595, %c0_185, %c0_186, %c0_187] : memref<10x2x10x1xf32, #tpu.memory_space<vmem>>, vector<1x2x10x1xf32>
    %597 = vector.shape_cast %596 : vector<1x2x10x1xf32> to vector<2x10x1xf32>
    %598 = vector.extract_strided_slice %597 {offsets = [0, 0, 0], sizes = [1, 10, 1], strides = [1, 1, 1]} : vector<2x10x1xf32> to vector<1x10x1xf32>
    %599 = vector.shape_cast %598 : vector<1x10x1xf32> to vector<10x1xf32>
    %600 = vector.extract_strided_slice %597 {offsets = [1, 0, 0], sizes = [1, 10, 1], strides = [1, 1, 1]} : vector<2x10x1xf32> to vector<1x10x1xf32>
    %601 = vector.shape_cast %600 : vector<1x10x1xf32> to vector<10x1xf32>
    %602 = vector.shape_cast %568 : vector<2x64xf32> to vector<2x1x64xf32>
    %603 = arith.mulf %582, %531 : vector<2x10x64xf32>
    %604 = vector.shape_cast %599 : vector<10x1xf32> to vector<1x10x1xf32>
    %605 = vector.broadcast %602 : vector<2x1x64xf32> to vector<2x10x64xf32>
    %606 = vector.broadcast %604 : vector<1x10x1xf32> to vector<2x10x64xf32>
    %607 = arith.mulf %605, %606 : vector<2x10x64xf32>
    %608 = arith.addf %603, %607 : vector<2x10x64xf32>
    %609 = arith.mulf %582, %537 : vector<2x10x64xf32>
    %610 = vector.shape_cast %601 : vector<10x1xf32> to vector<1x10x1xf32>
    %611 = vector.broadcast %602 : vector<2x1x64xf32> to vector<2x10x64xf32>
    %612 = vector.broadcast %610 : vector<1x10x1xf32> to vector<2x10x64xf32>
    %613 = arith.mulf %611, %612 : vector<2x10x64xf32>
    %614 = arith.addf %609, %613 : vector<2x10x64xf32>
    %615 = arith.mulf %608, %608 : vector<2x10x64xf32>
    %616 = arith.mulf %614, %614 : vector<2x10x64xf32>
    %617 = arith.addf %615, %616 : vector<2x10x64xf32>
    %618 = vector.shape_cast %4 : vector<10x1xf32> to vector<1x10x1xf32>
    %619 = vector.broadcast %618 : vector<1x10x1xf32> to vector<2x10x64xf32>
    %620 = arith.mulf %617, %619 : vector<2x10x64xf32>
    %cst_188 = arith.constant dense<0.000000e+00> : vector<2x64xf32>
    %621 = vector.multi_reduction <add>, %620, %cst_188 [1] : vector<2x10x64xf32> to vector<2x64xf32>
    %622 = vector.broadcast %5 : vector<1x64xf32> to vector<2x64xf32>
    %623 = arith.addf %621, %622 : vector<2x64xf32>
    %624 = math.tanh %623 : vector<2x64xf32>
    %625 = arith.mulf %565, %624 : vector<2x64xf32>
    %c8_i32_189 = arith.constant 8 : i32
    %c0_190 = arith.constant 0 : index
    %c0_191 = arith.constant 0 : index
    %626 = vector.load %arg11[%c0_190, %c0_191] : memref<2x64xf32, #tpu.memory_space<vmem>>, vector<2x64xf32>
    tpu.vector_store %arg11[%c0_190, %c0_191], %625 {strides = array<i32>} : memref<2x64xf32, #tpu.memory_space<vmem>>, vector<2x64xf32>,
    %c0_192 = arith.constant 0 : index
    %c0_193 = arith.constant 0 : index
    %c0_194 = arith.constant 0 : index
    %627 = vector.load %arg12[%c0_192, %c0_193, %c0_194] : memref<2x10x64xf32, #tpu.memory_space<vmem>>, vector<2x10x64xf32>
    tpu.vector_store %arg12[%c0_192, %c0_193, %c0_194], %608 {strides = array<i32>} : memref<2x10x64xf32, #tpu.memory_space<vmem>>, vector<2x10x64xf32>,
    %c0_195 = arith.constant 0 : index
    %c0_196 = arith.constant 0 : index
    %c0_197 = arith.constant 0 : index
    %628 = vector.load %arg13[%c0_195, %c0_196, %c0_197] : memref<2x10x64xf32, #tpu.memory_space<vmem>>, vector<2x10x64xf32>
    tpu.vector_store %arg13[%c0_195, %c0_196, %c0_197], %614 {strides = array<i32>} : memref<2x10x64xf32, #tpu.memory_space<vmem>>, vector<2x10x64xf32>,
    %c0_i32_198 = arith.constant 0 : i32
    %629 = arith.cmpi eq, %arg0, %c0_i32_198 : i32
    %630 = arith.extui %629 : i1 to i32
    %c0_i32_199 = arith.constant 0 : i32
    %631 = arith.cmpi ne, %630, %c0_i32_199 : i32
    scf.if %631 {
      %c0_200 = arith.constant 0 : index
      %c0_201 = arith.constant 0 : index
      %632 = vector.load %arg6[%c0_200, %c0_201] : memref<64x16xf32, #tpu.memory_space<vmem>>, vector<64x16xf32>
      %cst_202 = arith.constant dense<0.000000e+00> : vector<2x16xf32>
      %633 = tpu.matmul %625, %632, %cst_202 {dimension_numbers = #tpu.dot_dimension_numbers<[1], [0], [0], [1], [0, 0, 1, 1], [], []>} : vector<2x64xf32>, vector<64x16xf32>, vector<2x16xf32> -> vector<2x16xf32>
      %c0_203 = arith.constant 0 : index
      %c0_204 = arith.constant 0 : index
      %634 = vector.load %arg7[%c0_203, %c0_204] : memref<1x16xf32, #tpu.memory_space<vmem>>, vector<1x16xf32>
      %635 = vector.broadcast %634 : vector<1x16xf32> to vector<2x16xf32>
      %636 = arith.addf %633, %635 : vector<2x16xf32>
      %c0_205 = arith.constant 0 : index
      %c0_206 = arith.constant 0 : index
      %637 = vector.load %arg8[%c0_205, %c0_206] : memref<16x1xf32, #tpu.memory_space<vmem>>, vector<16x1xf32>
      %cst_207 = arith.constant dense<0.000000e+00> : vector<2x1xf32>
      %638 = tpu.matmul %636, %637, %cst_207 {dimension_numbers = #tpu.dot_dimension_numbers<[1], [0], [0], [1], [0, 0, 1, 1], [], []>} : vector<2x16xf32>, vector<16x1xf32>, vector<2x1xf32> -> vector<2x1xf32>
      %c0_208 = arith.constant 0 : index
      %c0_209 = arith.constant 0 : index
      %639 = vector.load %arg9[%c0_208, %c0_209] : memref<1x1xf32, #tpu.memory_space<vmem>>, vector<1x1xf32>
      %640 = vector.broadcast %639 : vector<1x1xf32> to vector<2x1xf32>
      %641 = arith.addf %638, %640 : vector<2x1xf32>
      %c0_210 = arith.constant 0 : index
      %c0_211 = arith.constant 0 : index
      %642 = vector.load %arg10[%c0_210, %c0_211] : memref<2x1xf32, #tpu.memory_space<vmem>>, vector<2x1xf32>
      tpu.vector_store %arg10[%c0_210, %c0_211], %641 {strides = array<i32>} : memref<2x1xf32, #tpu.memory_space<vmem>>, vector<2x1xf32>,
    } else {
    }
    return
  }
  func.func @transform_0(%arg0: i32) -> (i32, i32, i32) {
    %c0_i32 = arith.constant 0 : i32
    %c0_i32_0 = arith.constant 0 : i32
    %c0_i32_1 = arith.constant 0 : i32
    return %arg0, %c0_i32, %c0_i32_0 : i32, i32, i32
  }
  func.func @transform_1(%arg0: i32) -> (i32, i32, i32, i32) {
    %c0_i32 = arith.constant 0 : i32
    %c0_i32_0 = arith.constant 0 : i32
    %c0_i32_1 = arith.constant 0 : i32
    %c0_i32_2 = arith.constant 0 : i32
    %c0_i32_3 = arith.constant 0 : i32
    return %c0_i32, %c0_i32_0, %c0_i32_1, %c0_i32_2 : i32, i32, i32, i32
  }
  func.func @transform_2(%arg0: i32) -> (i32, i32) {
    %c0_i32 = arith.constant 0 : i32
    %c0_i32_0 = arith.constant 0 : i32
    %c0_i32_1 = arith.constant 0 : i32
    return %c0_i32, %c0_i32_0 : i32, i32
  }
  func.func @transform_3(%arg0: i32) -> (i32, i32) {
    %c0_i32 = arith.constant 0 : i32
    %c0_i32_0 = arith.constant 0 : i32
    %c0_i32_1 = arith.constant 0 : i32
    return %c0_i32, %c0_i32_0 : i32, i32
  }
  func.func @transform_4(%arg0: i32) -> (i32, i32) {
    %c0_i32 = arith.constant 0 : i32
    %c0_i32_0 = arith.constant 0 : i32
    %c0_i32_1 = arith.constant 0 : i32
    return %c0_i32, %c0_i32_0 : i32, i32
  }
  func.func @transform_5(%arg0: i32) -> (i32, i32) {
    %c0_i32 = arith.constant 0 : i32
    %c0_i32_0 = arith.constant 0 : i32
    %c0_i32_1 = arith.constant 0 : i32
    return %c0_i32, %c0_i32_0 : i32, i32
  }
  func.func @transform_6(%arg0: i32) -> (i32, i32) {
    %c0_i32 = arith.constant 0 : i32
    %c0_i32_0 = arith.constant 0 : i32
    %c0_i32_1 = arith.constant 0 : i32
    return %c0_i32, %c0_i32_0 : i32, i32
  }
  func.func @transform_7(%arg0: i32) -> (i32, i32) {
    %c0_i32 = arith.constant 0 : i32
    %c0_i32_0 = arith.constant 0 : i32
    %c0_i32_1 = arith.constant 0 : i32
    return %c0_i32, %c0_i32_0 : i32, i32
  }
  func.func @transform_8(%arg0: i32) -> (i32, i32) {
    %c0_i32 = arith.constant 0 : i32
    %c0_i32_0 = arith.constant 0 : i32
    %c0_i32_1 = arith.constant 0 : i32
    return %c0_i32, %c0_i32_0 : i32, i32
  }
  func.func @transform_9(%arg0: i32) -> (i32, i32) {
    %c0_i32 = arith.constant 0 : i32
    %c0_i32_0 = arith.constant 0 : i32
    %c0_i32_1 = arith.constant 0 : i32
    return %c0_i32, %c0_i32_0 : i32, i32
  }
}

</mosaic_0001>

<llo_original>
// kernel: tpu_custom_call.1
$region0: #{tpu_custom_call.1}
  #allocation0 [shape = 'u32[]', space=smem, size = 0x4, offset = 0x4, fixed_abs, tag = 'smem constant byte address 0x4 - core index']
  #allocation1 [shape = 'u32[72,128]{1,0:T(1,128)}', space=vmem, size = 0x9000, scoped, tag = 'internal scratch']
  #allocation2 [shape = 'f32[2,64]{1,0:T(2,128)}', space=vmem, size = 0x400, scoped, tag = 'scratch operand']
  #allocation3 [shape = 'f32[2,10,64]{2,1,0:T(8,128)}', space=vmem, size = 0x4000, scoped, tag = 'scratch operand']
  #allocation4 [shape = 'f32[2,10,64]{2,1,0:T(8,128)}', space=vmem, size = 0x4000, scoped, tag = 'scratch operand']
  #allocation5 [shape = 'f32[1,1]{1,0:T(1,128)S(1)}', space=vmem, size = 0x200, scoped, tag = 'scoped memory for tpu_custom_call.1']
  %s0 = inlined_call_operand.vmem [shape: f32[8,2,266], index: 0, kind: input, shape index: {}]
  %s1 = inlined_call_operand.vmem [shape: f32[10,2,10,1], index: 1, kind: input, shape index: {}]
  %s2 = inlined_call_operand.vmem [shape: f32[64,266], index: 2, kind: input, shape index: {}]
  %s3 = inlined_call_operand.vmem [shape: f32[10,1], index: 3, kind: input, shape index: {}]
  %s4 = inlined_call_operand.vmem [shape: f32[1,64], index: 4, kind: input, shape index: {}]
  %s5 = inlined_call_operand.vmem [shape: f32[64,16], index: 5, kind: input, shape index: {}]
  %s6 = inlined_call_operand.vmem [shape: f32[1,16], index: 6, kind: input, shape index: {}]
  %s7 = inlined_call_operand.vmem [shape: f32[16,1], index: 7, kind: input, shape index: {}]
  %s8 = inlined_call_operand.<no memory space> [shape: f32[1,1], index: 8, kind: input, shape index: {}]
  %s9 = inlined_call_operand.vmem [shape: f32[2,1], index: 9, kind: output, shape index: {}]
  %s10 = sld [smem:[#allocation0]]
  $region54: #{tpu_custom_call.1} parent=0
    _
  %s12 = ssub.s32 1, %s10
  %s13 = scalar_select 0, %s12, %s10
  %v14 = vstv %s8
  %15 = vst [vmem:[#allocation5] sm:$0x1] %v14
  // Predicated region
  $region2: #{tpu_custom_call.1} parent=0 // pred_check
    _
  $region3: #{tpu_custom_call.1} parent=0 // pred_check_branch
    %17 = sbr.rel (0) target = $region5
  $region4: #{tpu_custom_call.1} parent=0 // pred_region
    _
  $region5: #{tpu_custom_call.1} parent=0 // pred_fallthru
    _
  // Predicated region
  $region6: #{tpu_custom_call.1} parent=0 // pred_check
    _
  $region7: #{tpu_custom_call.1} parent=0 // pred_check_branch
    %19 = sbr.rel (0) target = $region9
  $region8: #{tpu_custom_call.1} parent=0 // pred_region
    _
  $region9: #{tpu_custom_call.1} parent=0 // pred_fallthru
    _
  // Predicated region
  $region10: #{tpu_custom_call.1} parent=0 // pred_check
    _
  $region11: #{tpu_custom_call.1} parent=0 // pred_check_branch
    %21 = sbr.rel (0) target = $region13
  $region12: #{tpu_custom_call.1} parent=0 // pred_region
    _
  $region13: #{tpu_custom_call.1} parent=0 // pred_fallthru
    _
  // Predicated region
  $region14: #{tpu_custom_call.1} parent=0 // pred_check
    _
  $region15: #{tpu_custom_call.1} parent=0 // pred_check_branch
    %23 = sbr.rel (0) target = $region17
  $region16: #{tpu_custom_call.1} parent=0 // pred_region
    _
  $region17: #{tpu_custom_call.1} parent=0 // pred_fallthru
    _
  // Predicated region
  $region18: #{tpu_custom_call.1} parent=0 // pred_check
    _
  $region19: #{tpu_custom_call.1} parent=0 // pred_check_branch
    %25 = sbr.rel (0) target = $region21
  $region20: #{tpu_custom_call.1} parent=0 // pred_region
    _
  $region21: #{tpu_custom_call.1} parent=0 // pred_fallthru
    _
  // Predicated region
  $region22: #{tpu_custom_call.1} parent=0 // pred_check
    _
  $region23: #{tpu_custom_call.1} parent=0 // pred_check_branch
    %27 = sbr.rel (0) target = $region25
  $region24: #{tpu_custom_call.1} parent=0 // pred_region
    _
  $region25: #{tpu_custom_call.1} parent=0 // pred_fallthru
    _
  // Predicated region
  $region26: #{tpu_custom_call.1} parent=0 // pred_check
    _
  $region27: #{tpu_custom_call.1} parent=0 // pred_check_branch
    %29 = sbr.rel (0) target = $region29
  $region28: #{tpu_custom_call.1} parent=0 // pred_region
    _
  $region29: #{tpu_custom_call.1} parent=0 // pred_fallthru
    _
  // Predicated region
  $region30: #{tpu_custom_call.1} parent=0 // pred_check
    _
  $region31: #{tpu_custom_call.1} parent=0 // pred_check_branch
    %31 = sbr.rel (0) target = $region33
  $region32: #{tpu_custom_call.1} parent=0 // pred_region
    _
  $region33: #{tpu_custom_call.1} parent=0 // pred_fallthru
    _
  // Predicated region
  $region34: #{tpu_custom_call.1} parent=0 // pred_check
    _
  $region35: #{tpu_custom_call.1} parent=0 // pred_check_branch
    %33 = sbr.rel (0) target = $region37
  $region36: #{tpu_custom_call.1} parent=0 // pred_region
    _
  $region37: #{tpu_custom_call.1} parent=0 // pred_fallthru
    _
  %p34 = scmp.eq.s32.totalorder 0, 0
  // Predicated region
  $region38: #{tpu_custom_call.1} parent=0 // pred_check
    %p35 = pneg %p34
  $region39: #{tpu_custom_call.1} parent=0 // pred_check_branch
    %37 = sbr.rel (%p35) target = $region41
  $region40: #{tpu_custom_call.1} parent=0 // pred_region
    %vm38 = vcmask 517120
    %39 = vst.msk [vmem:[#allocation2] sm:$0x3] %vm38, 0.0
    %vm40 = vcmask 523264
    %41 = vst.msk [vmem:[#allocation3] sm:$0xff] %vm40, 0.0
    %42 = vst.msk [vmem:[#allocation3 + $0x8] sm:$0x3] %vm38, 0.0
    %43 = vst.msk [vmem:[#allocation3 + $0x10] sm:$0xff] %vm40, 0.0
    %44 = vst.msk [vmem:[#allocation3 + $0x18] sm:$0x3] %vm38, 0.0
    %45 = vst.msk [vmem:[#allocation4] sm:$0xff] %vm40, 0.0
    %46 = vst.msk [vmem:[#allocation4 + $0x8] sm:$0x3] %vm38, 0.0
    %47 = vst.msk [vmem:[#allocation4 + $0x10] sm:$0xff] %vm40, 0.0
    %48 = vst.msk [vmem:[#allocation4 + $0x18] sm:$0x3] %vm38, 0.0
  $region41: #{tpu_custom_call.1} parent=0 // pred_fallthru
    _
  %v49 = vld [vmem:[%s2] sm:$0xff]
  %v50 = vld [vmem:[%s2 + $0x8] sm:$0xff]
  %v51 = vld [vmem:[%s2 + $0x10] sm:$0xff]
  %v52 = vld [vmem:[%s2 + $0x18] sm:$0xff]
  %v53 = vld [vmem:[%s2 + $0x20] sm:$0xff]
  %v54 = vld [vmem:[%s2 + $0x28] sm:$0xff]
  %v55 = vld [vmem:[%s2 + $0x30] sm:$0xff]
  %v56 = vld [vmem:[%s2 + $0x38] sm:$0xff]
  %v57 = vld [vmem:[%s2 + $0x40] sm:$0xff]
  %v58 = vld [vmem:[%s2 + $0x48] sm:$0xff]
  %v59 = vld [vmem:[%s2 + $0x50] sm:$0xff]
  %v60 = vld [vmem:[%s2 + $0x58] sm:$0xff]
  %v61 = vld [vmem:[%s2 + $0x60] sm:$0xff]
  %v62 = vld [vmem:[%s2 + $0x68] sm:$0xff]
  %v63 = vld [vmem:[%s2 + $0x70] sm:$0xff]
  %v64 = vld [vmem:[%s2 + $0x78] sm:$0xff]
  %v65 = vld [vmem:[%s2 + $0x80] sm:$0xff]
  %v66 = vld [vmem:[%s2 + $0x88] sm:$0xff]
  %v67 = vld [vmem:[%s2 + $0x90] sm:$0xff]
  %v68 = vld [vmem:[%s2 + $0x98] sm:$0xff]
  %v69 = vld [vmem:[%s2 + $0xa0] sm:$0xff]
  %v70 = vld [vmem:[%s2 + $0xa8] sm:$0xff]
  %v71 = vld [vmem:[%s2 + $0xb0] sm:$0xff]
  %v72 = vld [vmem:[%s2 + $0xb8] sm:$0xff]
  %v73 = vld [vmem:[%s3] sm:$0xff]
  %v74 = vld [vmem:[%s3 + $0x8] sm:$0x3]
  %v75 = vld [vmem:[%s4] sm:$0x1]
  %s76 = smul.u32 0, 8
  %v77 = vld [vmem:[#allocation2] sm:$0x3]
  %v78 = vld [vmem:[#allocation3] sm:$0xff]
  %v79 = vld [vmem:[#allocation3 + $0x8] sm:$0x3]
  %v80 = vld [vmem:[#allocation3 + $0x10] sm:$0xff]
  %v81 = vld [vmem:[#allocation3 + $0x18] sm:$0x3]
  %v82 = vld [vmem:[#allocation4] sm:$0xff]
  %v83 = vld [vmem:[#allocation4 + $0x8] sm:$0x3]
  %v84 = vld [vmem:[#allocation4 + $0x10] sm:$0xff]
  %v85 = vld [vmem:[#allocation4 + $0x18] sm:$0x3]
  %v86 = vld [vmem:[%s0] sm:$0x3f]
  %vm87 = vcmask 523264
  %v89 = vsel %vm87, %v77, 0
  %91 = vmatpush.msra.mxu0 0.0
  %92 = vmatpush.msra.mxu0 0.0
  %93 = vmatpush.msra.mxu0 0.0
  %94 = vmatpush.msra.mxu0 0.0
  %95 = vmatpush.msra.mxu0 0.0
  %96 = vmatpush.msra.mxu0 0.0
  %97 = vmatpush.msra.mxu0 0.0
  %98 = vmatpush.msra.mxu0 0.0
  %99 = vmatpush.msra.mxu0 %v70
  %100 = vmatpush.msra.mxu0 %v67
  %101 = vmatpush.msra.mxu0 %v64
  %102 = vmatpush.msra.mxu0 %v61
  %103 = vmatpush.msra.mxu0 %v58
  %104 = vmatpush.msra.mxu0 %v55
  %105 = vmatpush.msra.mxu0 %v52
  %106 = vmatpush.msra.mxu0 %v49
  %107 = vmatmul.f32.gmra.mxu0 %v89
  %v108 = vpop.f32.mrf.mxu0
  %v109 = vadd.f32 0.0, %v108
  %110 = vdwg.mxu0
  %111 = vmatpush.msra.mxu0 0.0
  %112 = vmatpush.msra.mxu0 0.0
  %113 = vmatpush.msra.mxu0 0.0
  %114 = vmatpush.msra.mxu0 0.0
  %115 = vmatpush.msra.mxu0 0.0
  %116 = vmatpush.msra.mxu0 0.0
  %117 = vmatpush.msra.mxu0 0.0
  %118 = vmatpush.msra.mxu0 0.0
  %119 = vmatpush.msra.mxu0 %v71
  %120 = vmatpush.msra.mxu0 %v68
  %121 = vmatpush.msra.mxu0 %v65
  %122 = vmatpush.msra.mxu0 %v62
  %123 = vmatpush.msra.mxu0 %v59
  %124 = vmatpush.msra.mxu0 %v56
  %125 = vmatpush.msra.mxu0 %v53
  %126 = vmatpush.msra.mxu0 %v50
  %127 = vmatmul.f32.gmra.mxu0 %v89
  %v128 = vpop.f32.mrf.mxu0
  %v129 = vadd.f32 0.0, %v128
  %130 = vdwg.mxu0
  %131 = vmatpush.msra.mxu0 0.0
  %132 = vmatpush.msra.mxu0 0.0
  %133 = vmatpush.msra.mxu0 0.0
  %134 = vmatpush.msra.mxu0 0.0
  %135 = vmatpush.msra.mxu0 0.0
  %136 = vmatpush.msra.mxu0 0.0
  %137 = vmatpush.msra.mxu0 0.0
  %138 = vmatpush.msra.mxu0 0.0
  %139 = vmatpush.msra.mxu0 %v72
  %140 = vmatpush.msra.mxu0 %v69
  %141 = vmatpush.msra.mxu0 %v66
  %142 = vmatpush.msra.mxu0 %v63
  %143 = vmatpush.msra.mxu0 %v60
  %144 = vmatpush.msra.mxu0 %v57
  %145 = vmatpush.msra.mxu0 %v54
  %146 = vmatpush.msra.mxu0 %v51
  %147 = vmatmul.f32.gmra.mxu0 %v89
  %v148 = vpop.f32.mrf.mxu0
  %v149 = vadd.f32 0.0, %v148
  %150 = vdwg.mxu0
  %v154 = vrot.slane %v129, 6
  %v155 = vrot.slane %v149, 4
  %vm156 = vcmask 1041408
  %v157 = vsel %vm156, %v109, %v154
  %vm158 = vcmask 1043456
  %v159 = vsel %vm158, %v157, %v155
  %v161 = vadd.f32 %v86, %v159
  %v162 = vmul.f32 %v161, 0.16666667
  %v163 = vadd.f32 %v162, 0.5
  %v164 = vmax.f32 %v163, 0.0
  %v165 = vmin.f32 %v164, 1.0
  %167 = vrot.lane.b32.xlu0 %v161, 64
  %v168 = vpop.permute.xlu0 %167
  %v169 = vrot.slane %v168, 2
  %v171 = vtanh.pop %v169
  %v172 = vmul.f32 %v165, %v171
  %v173 = vrot.slane %v161, 4
  %v175 = vmul.f32 %v173, 0.16666667
  %v176 = vadd.f32 %v175, 0.5
  %v177 = vmax.f32 %v176, 0.0
  %v178 = vmin.f32 %v177, 1.0
  %v179 = vperm.slane %v178, 0
  %v180 = vlaneseq
  %v181 = vshrl.u32 %v180, 7
  %183 = vset.pattern.permute.xlu0 %v181
  %184 = vperm.xlu0 %183, %v179
  %v185 = vpop.permute.xlu0 %184
  %v186 = vlaneseq
  %v187 = vshrl.u32 %v186, 7
  %v188 = vadd.s32 %v187, 8
  %189 = vset.pattern.permute.xlu0 %v188
  %190 = vperm.xlu0 %189, %v179
  %v191 = vpop.permute.xlu0 %190
  %v192 = vperm.slane %v178, 1
  %v193 = vlaneseq
  %v194 = vshrl.u32 %v193, 7
  %196 = vset.pattern.permute.xlu0 %v194
  %197 = vperm.xlu0 %196, %v192
  %v198 = vpop.permute.xlu0 %197
  %v199 = vlaneseq
  %v200 = vshrl.u32 %v199, 7
  %v201 = vadd.s32 %v200, 8
  %202 = vset.pattern.permute.xlu0 %v201
  %203 = vperm.xlu0 %202, %v192
  %v204 = vpop.permute.xlu0 %203
  %v206 = vrot.slane %v165, 1
  %v207 = vrot.slane %v165, 2
  %v208 = vrot.slane %v165, 3
  %vm209 = vcmask 1040384
  %v210 = vsel %vm209, %v165, %v206
  %vm211 = vcmask 1042434
  %v212 = vsel %vm211, %v207, %v208
  %v213 = vsel %vm156, %v210, %v212
  %vm214 = vcmask 1041409
  %v215 = vsel %vm214, %v165, %v206
  %vm216 = vcmask 1043459
  %v217 = vsel %vm216, %v207, %v208
  %vm218 = vcmask 1042433
  %v219 = vsel %vm218, %v215, %v217
  %v220 = vrot.slane %v219, 1
  %v221 = vperm.slane %v213, 0
  %v222 = vperm.slane %v220, 0
  %v225 = vmul.f32 %v185, %v221
  %v226 = vmul.f32 %v191, %v221
  %v227 = vmul.f32 %v198, %v222
  %v228 = vmul.f32 %v204, %v222
  %s229 = sadd.s32 %s76, 1
  %p230 = scmp.lt.s32.totalorder %s229, 0
  %s231 = ssub.s32 0, %s229
  %s232 = scalar_select %p230, %s231, %s229
  %s233 = sdiv.u32.pop %s232, 10
  %s234 = srem.u32.pop %s232, 10
  %s235 = ssub.s32 0, %s234
  %s236 = scalar_select %p230, %s235, %s234
  %p237 = scmp.ne.s32.totalorder %s236, 0
  %p238 = scmp.lt.s32.totalorder %s236, 0
  %p239 = pnand %p238, %p237
  %p240 = pneg %p239
  %s241 = sadd.s32 %s236, 10
  %s242 = scalar_select %p240, %s241, %s236
  %s243 = smul.u32 %s242, 32
  %s244 = scalar_lea.vmem %s1, %s243
  %v245 = vld [vmem:[%s244] sm:$0xff]
  %v246 = vld [vmem:[%s244 + $0x8] sm:$0x3]
  %v247 = vld [vmem:[%s244 + $0x10] sm:$0xff]
  %v248 = vld [vmem:[%s244 + $0x18] sm:$0x3]
  %v250 = vrot.slane %v172, 1
  %v251 = vrot.slane %v172, 2
  %v252 = vrot.slane %v172, 3
  %v253 = vsel %vm209, %v172, %v250
  %v254 = vsel %vm211, %v251, %v252
  %v255 = vsel %vm156, %v253, %v254
  %v256 = vsel %vm214, %v172, %v250
  %v257 = vsel %vm216, %v251, %v252
  %v258 = vsel %vm218, %v256, %v257
  %v259 = vrot.slane %v258, 1
  %264 = vrot.lane.b32.xlu0 %v78, 64
  %v265 = vpop.permute.xlu0 %264
  %266 = vrot.lane.b32.xlu0 %v79, 64
  %v267 = vpop.permute.xlu0 %266
  %268 = vrot.lane.b32.xlu0 %v80, 64
  %v269 = vpop.permute.xlu0 %268
  %270 = vrot.lane.b32.xlu0 %v81, 64
  %v271 = vpop.permute.xlu0 %270
  %v276 = vmul.f32 %v225, %v265
  %v277 = vmul.f32 %v226, %v267
  %v278 = vmul.f32 %v227, %v269
  %v279 = vmul.f32 %v228, %v271
  %v280 = vperm.slane %v255, 0
  %v281 = vperm.slane %v259, 0
  %285 = vset.pattern.permute.xlu0 0
  %286 = vperm.xlu0 %285, %v245
  %v287 = vpop.permute.xlu0 %286
  %290 = vset.pattern.permute.xlu0 0
  %291 = vperm.xlu0 %290, %v246
  %v292 = vpop.permute.xlu0 %291
  %v294 = vmul.f32 %v280, %v287
  %v295 = vmul.f32 %v280, %v292
  %v296 = vmul.f32 %v281, %v287
  %v297 = vmul.f32 %v281, %v292
  %302 = vrot.lane.b32.xlu0 %v294, 64
  %v303 = vpop.permute.xlu0 %302
  %304 = vrot.lane.b32.xlu0 %v295, 64
  %v305 = vpop.permute.xlu0 %304
  %306 = vrot.lane.b32.xlu0 %v296, 64
  %v307 = vpop.permute.xlu0 %306
  %308 = vrot.lane.b32.xlu0 %v297, 64
  %v309 = vpop.permute.xlu0 %308
  %v314 = vadd.f32 %v276, %v303
  %v315 = vadd.f32 %v277, %v305
  %v316 = vadd.f32 %v278, %v307
  %v317 = vadd.f32 %v279, %v309
  %322 = vrot.lane.b32.xlu0 %v82, 64
  %v323 = vpop.permute.xlu0 %322
  %324 = vrot.lane.b32.xlu0 %v83, 64
  %v325 = vpop.permute.xlu0 %324
  %326 = vrot.lane.b32.xlu0 %v84, 64
  %v327 = vpop.permute.xlu0 %326
  %328 = vrot.lane.b32.xlu0 %v85, 64
  %v329 = vpop.permute.xlu0 %328
  %v334 = vmul.f32 %v225, %v323
  %v335 = vmul.f32 %v226, %v325
  %v336 = vmul.f32 %v227, %v327
  %v337 = vmul.f32 %v228, %v329
  %339 = vset.pattern.permute.xlu0 0
  %340 = vperm.xlu0 %339, %v247
  %v341 = vpop.permute.xlu0 %340
  %344 = vset.pattern.permute.xlu0 0
  %345 = vperm.xlu0 %344, %v248
  %v346 = vpop.permute.xlu0 %345
  %v348 = vmul.f32 %v280, %v341
  %v349 = vmul.f32 %v280, %v346
  %v350 = vmul.f32 %v281, %v341
  %v351 = vmul.f32 %v281, %v346
  %356 = vrot.lane.b32.xlu0 %v348, 64
  %v357 = vpop.permute.xlu0 %356
  %358 = vrot.lane.b32.xlu0 %v349, 64
  %v359 = vpop.permute.xlu0 %358
  %360 = vrot.lane.b32.xlu0 %v350, 64
  %v361 = vpop.permute.xlu0 %360
  %362 = vrot.lane.b32.xlu0 %v351, 64
  %v363 = vpop.permute.xlu0 %362
  %v368 = vadd.f32 %v334, %v357
  %v369 = vadd.f32 %v335, %v359
  %v370 = vadd.f32 %v336, %v361
  %v371 = vadd.f32 %v337, %v363
  %v372 = vmul.f32 %v314, %v314
  %v373 = vmul.f32 %v315, %v315
  %v374 = vmul.f32 %v316, %v316
  %v375 = vmul.f32 %v317, %v317
  %v376 = vmul.f32 %v368, %v368
  %v377 = vmul.f32 %v369, %v369
  %v378 = vmul.f32 %v370, %v370
  %v379 = vmul.f32 %v371, %v371
  %v380 = vadd.f32 %v372, %v376
  %v381 = vadd.f32 %v373, %v377
  %v382 = vadd.f32 %v374, %v378
  %v383 = vadd.f32 %v375, %v379
  %385 = vset.pattern.permute.xlu0 0
  %386 = vperm.xlu0 %385, %v73
  %v387 = vpop.permute.xlu0 %386
  %390 = vset.pattern.permute.xlu0 0
  %391 = vperm.xlu0 %390, %v74
  %v392 = vpop.permute.xlu0 %391
  %v394 = vmul.f32 %v380, %v387
  %v395 = vmul.f32 %v381, %v392
  %v396 = vmul.f32 %v382, %v387
  %v397 = vmul.f32 %v383, %v392
  %vm398 = vcmask 1048064
  %v399 = vsel %vm398, %v394, 0.0
  %vm400 = vcmask 1041920
  %v401 = vsel %vm400, %v395, 0.0
  %v402 = vadd.f32 %v399, %v401
  %v403 = vrot.slane %v402, 4
  %v404 = vadd.f32 %v402, %v403
  %v405 = vrot.slane %v404, 2
  %v406 = vadd.f32 %v404, %v405
  %v407 = vrot.slane %v406, 1
  %v408 = vadd.f32 %v406, %v407
  %v409 = vsel %vm398, %v396, 0.0
  %v410 = vsel %vm400, %v397, 0.0
  %v411 = vadd.f32 %v409, %v410
  %v412 = vrot.slane %v411, 4
  %v413 = vadd.f32 %v411, %v412
  %v414 = vrot.slane %v413, 2
  %v415 = vadd.f32 %v413, %v414
  %v416 = vrot.slane %v415, 1
  %v417 = vadd.f32 %v415, %v416
  %v419 = vperm.slane %v75, 0
  %420 = vrot.lane.b32.xlu0 %v419, 64
  %v421 = vpop.permute.xlu0 %420
  %v423 = vadd.f32 %v408, %v421
  %v424 = vadd.f32 %v417, %v421
  %v425 = vtanh.pop %v423
  %v426 = vtanh.pop %v424
  %vm430 = vcmask 1044484
  %v431 = vsel %vm430, %v425, %v425
  %vm432 = vcmask 1046534
  %v433 = vsel %vm432, %v425, %v431
  %v434 = vrot.slane %v426, 7
  %v435 = vsel %vm214, %v434, %v433
  %v436 = vsel %vm216, %v434, %v435
  %vm437 = vcmask 1045509
  %v438 = vsel %vm437, %v434, %v436
  %vm439 = vcmask 1047559
  %v440 = vsel %vm439, %v434, %v438
  %441 = vrot.lane.b32.xlu0 %v440, 64
  %v442 = vpop.permute.xlu0 %441
  %v444 = vmul.f32 %v207, %v442
  %s445 = scalar_lea.vmem %s0, 6
  %v446 = vld [vmem:[%s445] sm:$0x3f]
  %v448 = vsel %vm87, %v444, 0
  %450 = vmatpush.msra.mxu0 0.0
  %451 = vmatpush.msra.mxu0 0.0
  %452 = vmatpush.msra.mxu0 0.0
  %453 = vmatpush.msra.mxu0 0.0
  %454 = vmatpush.msra.mxu0 0.0
  %455 = vmatpush.msra.mxu0 0.0
  %456 = vmatpush.msra.mxu0 0.0
  %457 = vmatpush.msra.mxu0 0.0
  %458 = vmatpush.msra.mxu0 %v70
  %459 = vmatpush.msra.mxu0 %v67
  %460 = vmatpush.msra.mxu0 %v64
  %461 = vmatpush.msra.mxu0 %v61
  %462 = vmatpush.msra.mxu0 %v58
  %463 = vmatpush.msra.mxu0 %v55
  %464 = vmatpush.msra.mxu0 %v52
  %465 = vmatpush.msra.mxu0 %v49
  %466 = vmatmul.f32.gmra.mxu0 %v448
  %v467 = vpop.f32.mrf.mxu0
  %v468 = vadd.f32 0.0, %v467
  %469 = vdwg.mxu0
  %470 = vmatpush.msra.mxu0 0.0
  %471 = vmatpush.msra.mxu0 0.0
  %472 = vmatpush.msra.mxu0 0.0
  %473 = vmatpush.msra.mxu0 0.0
  %474 = vmatpush.msra.mxu0 0.0
  %475 = vmatpush.msra.mxu0 0.0
  %476 = vmatpush.msra.mxu0 0.0
  %477 = vmatpush.msra.mxu0 0.0
  %478 = vmatpush.msra.mxu0 %v71
  %479 = vmatpush.msra.mxu0 %v68
  %480 = vmatpush.msra.mxu0 %v65
  %481 = vmatpush.msra.mxu0 %v62
  %482 = vmatpush.msra.mxu0 %v59
  %483 = vmatpush.msra.mxu0 %v56
  %484 = vmatpush.msra.mxu0 %v53
  %485 = vmatpush.msra.mxu0 %v50
  %486 = vmatmul.f32.gmra.mxu0 %v448
  %v487 = vpop.f32.mrf.mxu0
  %v488 = vadd.f32 0.0, %v487
  %489 = vdwg.mxu0
  %490 = vmatpush.msra.mxu0 0.0
  %491 = vmatpush.msra.mxu0 0.0
  %492 = vmatpush.msra.mxu0 0.0
  %493 = vmatpush.msra.mxu0 0.0
  %494 = vmatpush.msra.mxu0 0.0
  %495 = vmatpush.msra.mxu0 0.0
  %496 = vmatpush.msra.mxu0 0.0
  %497 = vmatpush.msra.mxu0 0.0
  %498 = vmatpush.msra.mxu0 %v72
  %499 = vmatpush.msra.mxu0 %v69
  %500 = vmatpush.msra.mxu0 %v66
  %501 = vmatpush.msra.mxu0 %v63
  %502 = vmatpush.msra.mxu0 %v60
  %503 = vmatpush.msra.mxu0 %v57
  %504 = vmatpush.msra.mxu0 %v54
  %505 = vmatpush.msra.mxu0 %v51
  %506 = vmatmul.f32.gmra.mxu0 %v448
  %v507 = vpop.f32.mrf.mxu0
  %v508 = vadd.f32 0.0, %v507
  %509 = vdwg.mxu0
  %v513 = vrot.slane %v488, 6
  %v514 = vrot.slane %v508, 4
  %v515 = vsel %vm156, %v468, %v513
  %v516 = vsel %vm158, %v515, %v514
  %v518 = vadd.f32 %v446, %v516
  %v519 = vmul.f32 %v518, 0.16666667
  %v520 = vadd.f32 %v519, 0.5
  %v521 = vmax.f32 %v520, 0.0
  %v522 = vmin.f32 %v521, 1.0
  %524 = vrot.lane.b32.xlu0 %v518, 64
  %v525 = vpop.permute.xlu0 %524
  %v526 = vrot.slane %v525, 2
  %v528 = vtanh.pop %v526
  %v529 = vmul.f32 %v522, %v528
  %v530 = vrot.slane %v518, 4
  %v532 = vmul.f32 %v530, 0.16666667
  %v533 = vadd.f32 %v532, 0.5
  %v534 = vmax.f32 %v533, 0.0
  %v535 = vmin.f32 %v534, 1.0
  %v536 = vperm.slane %v535, 0
  %v537 = vlaneseq
  %v538 = vshrl.u32 %v537, 7
  %540 = vset.pattern.permute.xlu0 %v538
  %541 = vperm.xlu0 %540, %v536
  %v542 = vpop.permute.xlu0 %541
  %v543 = vlaneseq
  %v544 = vshrl.u32 %v543, 7
  %v545 = vadd.s32 %v544, 8
  %546 = vset.pattern.permute.xlu0 %v545
  %547 = vperm.xlu0 %546, %v536
  %v548 = vpop.permute.xlu0 %547
  %v549 = vperm.slane %v535, 1
  %v550 = vlaneseq
  %v551 = vshrl.u32 %v550, 7
  %553 = vset.pattern.permute.xlu0 %v551
  %554 = vperm.xlu0 %553, %v549
  %v555 = vpop.permute.xlu0 %554
  %v556 = vlaneseq
  %v557 = vshrl.u32 %v556, 7
  %v558 = vadd.s32 %v557, 8
  %559 = vset.pattern.permute.xlu0 %v558
  %560 = vperm.xlu0 %559, %v549
  %v561 = vpop.permute.xlu0 %560
  %v563 = vrot.slane %v522, 1
  %v564 = vrot.slane %v522, 2
  %v565 = vrot.slane %v522, 3
  %v566 = vsel %vm209, %v522, %v563
  %v567 = vsel %vm211, %v564, %v565
  %v568 = vsel %vm156, %v566, %v567
  %v569 = vsel %vm214, %v522, %v563
  %v570 = vsel %vm216, %v564, %v565
  %v571 = vsel %vm218, %v569, %v570
  %v572 = vrot.slane %v571, 1
  %v573 = vperm.slane %v568, 0
  %v574 = vperm.slane %v572, 0
  %v577 = vmul.f32 %v542, %v573
  %v578 = vmul.f32 %v548, %v573
  %v579 = vmul.f32 %v555, %v574
  %v580 = vmul.f32 %v561, %v574
  %s581 = sadd.s32 %s76, 2
  %p582 = scmp.lt.s32.totalorder %s581, 0
  %s583 = ssub.s32 0, %s581
  %s584 = scalar_select %p582, %s583, %s581
  %s585 = sdiv.u32.pop %s584, 10
  %s586 = srem.u32.pop %s584, 10
  %s587 = ssub.s32 0, %s586
  %s588 = scalar_select %p582, %s587, %s586
  %p589 = scmp.ne.s32.totalorder %s588, 0
  %p590 = scmp.lt.s32.totalorder %s588, 0
  %p591 = pnand %p590, %p589
  %p592 = pneg %p591
  %s593 = sadd.s32 %s588, 10
  %s594 = scalar_select %p592, %s593, %s588
  %s595 = smul.u32 %s594, 32
  %s596 = scalar_lea.vmem %s1, %s595
  %v597 = vld [vmem:[%s596] sm:$0xff]
  %v598 = vld [vmem:[%s596 + $0x8] sm:$0x3]
  %v599 = vld [vmem:[%s596 + $0x10] sm:$0xff]
  %v600 = vld [vmem:[%s596 + $0x18] sm:$0x3]
  %v602 = vrot.slane %v529, 1
  %v603 = vrot.slane %v529, 2
  %v604 = vrot.slane %v529, 3
  %v605 = vsel %vm209, %v529, %v602
  %v606 = vsel %vm211, %v603, %v604
  %v607 = vsel %vm156, %v605, %v606
  %v608 = vsel %vm214, %v529, %v602
  %v609 = vsel %vm216, %v603, %v604
  %v610 = vsel %vm218, %v608, %v609
  %v611 = vrot.slane %v610, 1
  %v612 = vmul.f32 %v577, %v314
  %v613 = vmul.f32 %v578, %v315
  %v614 = vmul.f32 %v579, %v316
  %v615 = vmul.f32 %v580, %v317
  %v616 = vperm.slane %v607, 0
  %v617 = vperm.slane %v611, 0
  %621 = vset.pattern.permute.xlu0 0
  %622 = vperm.xlu0 %621, %v597
  %v623 = vpop.permute.xlu0 %622
  %626 = vset.pattern.permute.xlu0 0
  %627 = vperm.xlu0 %626, %v598
  %v628 = vpop.permute.xlu0 %627
  %v630 = vmul.f32 %v616, %v623
  %v631 = vmul.f32 %v616, %v628
  %v632 = vmul.f32 %v617, %v623
  %v633 = vmul.f32 %v617, %v628
  %638 = vrot.lane.b32.xlu0 %v630, 64
  %v639 = vpop.permute.xlu0 %638
  %640 = vrot.lane.b32.xlu0 %v631, 64
  %v641 = vpop.permute.xlu0 %640
  %642 = vrot.lane.b32.xlu0 %v632, 64
  %v643 = vpop.permute.xlu0 %642
  %644 = vrot.lane.b32.xlu0 %v633, 64
  %v645 = vpop.permute.xlu0 %644
  %v650 = vadd.f32 %v612, %v639
  %v651 = vadd.f32 %v613, %v641
  %v652 = vadd.f32 %v614, %v643
  %v653 = vadd.f32 %v615, %v645
  %v654 = vmul.f32 %v577, %v368
  %v655 = vmul.f32 %v578, %v369
  %v656 = vmul.f32 %v579, %v370
  %v657 = vmul.f32 %v580, %v371
  %659 = vset.pattern.permute.xlu0 0
  %660 = vperm.xlu0 %659, %v599
  %v661 = vpop.permute.xlu0 %660
  %664 = vset.pattern.permute.xlu0 0
  %665 = vperm.xlu0 %664, %v600
  %v666 = vpop.permute.xlu0 %665
  %v668 = vmul.f32 %v616, %v661
  %v669 = vmul.f32 %v616, %v666
  %v670 = vmul.f32 %v617, %v661
  %v671 = vmul.f32 %v617, %v666
  %676 = vrot.lane.b32.xlu0 %v668, 64
  %v677 = vpop.permute.xlu0 %676
  %678 = vrot.lane.b32.xlu0 %v669, 64
  %v679 = vpop.permute.xlu0 %678
  %680 = vrot.lane.b32.xlu0 %v670, 64
  %v681 = vpop.permute.xlu0 %680
  %682 = vrot.lane.b32.xlu0 %v671, 64
  %v683 = vpop.permute.xlu0 %682
  %v688 = vadd.f32 %v654, %v677
  %v689 = vadd.f32 %v655, %v679
  %v690 = vadd.f32 %v656, %v681
  %v691 = vadd.f32 %v657, %v683
  %v692 = vmul.f32 %v650, %v650
  %v693 = vmul.f32 %v651, %v651
  %v694 = vmul.f32 %v652, %v652
  %v695 = vmul.f32 %v653, %v653
  %v696 = vmul.f32 %v688, %v688
  %v697 = vmul.f32 %v689, %v689
  %v698 = vmul.f32 %v690, %v690
  %v699 = vmul.f32 %v691, %v691
  %v700 = vadd.f32 %v692, %v696
  %v701 = vadd.f32 %v693, %v697
  %v702 = vadd.f32 %v694, %v698
  %v703 = vadd.f32 %v695, %v699
  %v704 = vmul.f32 %v700, %v387
  %v705 = vmul.f32 %v701, %v392
  %v706 = vmul.f32 %v702, %v387
  %v707 = vmul.f32 %v703, %v392
  %v708 = vsel %vm398, %v704, 0.0
  %v709 = vsel %vm400, %v705, 0.0
  %v710 = vadd.f32 %v708, %v709
  %v711 = vrot.slane %v710, 4
  %v712 = vadd.f32 %v710, %v711
  %v713 = vrot.slane %v712, 2
  %v714 = vadd.f32 %v712, %v713
  %v715 = vrot.slane %v714, 1
  %v716 = vadd.f32 %v714, %v715
  %v717 = vsel %vm398, %v706, 0.0
  %v718 = vsel %vm400, %v707, 0.0
  %v719 = vadd.f32 %v717, %v718
  %v720 = vrot.slane %v719, 4
  %v721 = vadd.f32 %v719, %v720
  %v722 = vrot.slane %v721, 2
  %v723 = vadd.f32 %v721, %v722
  %v724 = vrot.slane %v723, 1
  %v725 = vadd.f32 %v723, %v724
  %v726 = vadd.f32 %v716, %v421
  %v727 = vadd.f32 %v725, %v421
  %v728 = vtanh.pop %v726
  %v729 = vtanh.pop %v727
  %v733 = vsel %vm430, %v728, %v728
  %v734 = vsel %vm432, %v728, %v733
  %v735 = vrot.slane %v729, 7
  %v736 = vsel %vm214, %v735, %v734
  %v737 = vsel %vm216, %v735, %v736
  %v738 = vsel %vm437, %v735, %v737
  %v739 = vsel %vm439, %v735, %v738
  %740 = vrot.lane.b32.xlu0 %v739, 64
  %v741 = vpop.permute.xlu0 %740
  %v743 = vmul.f32 %v564, %v741
  %s744 = scalar_lea.vmem %s0, 12
  %v745 = vld [vmem:[%s744] sm:$0x3f]
  %v747 = vsel %vm87, %v743, 0
  %749 = vmatpush.msra.mxu0 0.0
  %750 = vmatpush.msra.mxu0 0.0
  %751 = vmatpush.msra.mxu0 0.0
  %752 = vmatpush.msra.mxu0 0.0
  %753 = vmatpush.msra.mxu0 0.0
  %754 = vmatpush.msra.mxu0 0.0
  %755 = vmatpush.msra.mxu0 0.0
  %756 = vmatpush.msra.mxu0 0.0
  %757 = vmatpush.msra.mxu0 %v70
  %758 = vmatpush.msra.mxu0 %v67
  %759 = vmatpush.msra.mxu0 %v64
  %760 = vmatpush.msra.mxu0 %v61
  %761 = vmatpush.msra.mxu0 %v58
  %762 = vmatpush.msra.mxu0 %v55
  %763 = vmatpush.msra.mxu0 %v52
  %764 = vmatpush.msra.mxu0 %v49
  %765 = vmatmul.f32.gmra.mxu0 %v747
  %v766 = vpop.f32.mrf.mxu0
  %v767 = vadd.f32 0.0, %v766
  %768 = vdwg.mxu0
  %769 = vmatpush.msra.mxu0 0.0
  %770 = vmatpush.msra.mxu0 0.0
  %771 = vmatpush.msra.mxu0 0.0
  %772 = vmatpush.msra.mxu0 0.0
  %773 = vmatpush.msra.mxu0 0.0
  %774 = vmatpush.msra.mxu0 0.0
  %775 = vmatpush.msra.mxu0 0.0
  %776 = vmatpush.msra.mxu0 0.0
  %777 = vmatpush.msra.mxu0 %v71
  %778 = vmatpush.msra.mxu0 %v68
  %779 = vmatpush.msra.mxu0 %v65
  %780 = vmatpush.msra.mxu0 %v62
  %781 = vmatpush.msra.mxu0 %v59
  %782 = vmatpush.msra.mxu0 %v56
  %783 = vmatpush.msra.mxu0 %v53
  %784 = vmatpush.msra.mxu0 %v50
  %785 = vmatmul.f32.gmra.mxu0 %v747
  %v786 = vpop.f32.mrf.mxu0
  %v787 = vadd.f32 0.0, %v786
  %788 = vdwg.mxu0
  %789 = vmatpush.msra.mxu0 0.0
  %790 = vmatpush.msra.mxu0 0.0
  %791 = vmatpush.msra.mxu0 0.0
  %792 = vmatpush.msra.mxu0 0.0
  %793 = vmatpush.msra.mxu0 0.0
  %794 = vmatpush.msra.mxu0 0.0
  %795 = vmatpush.msra.mxu0 0.0
  %796 = vmatpush.msra.mxu0 0.0
  %797 = vmatpush.msra.mxu0 %v72
  %798 = vmatpush.msra.mxu0 %v69
  %799 = vmatpush.msra.mxu0 %v66
  %800 = vmatpush.msra.mxu0 %v63
  %801 = vmatpush.msra.mxu0 %v60
  %802 = vmatpush.msra.mxu0 %v57
  %803 = vmatpush.msra.mxu0 %v54
  %804 = vmatpush.msra.mxu0 %v51
  %805 = vmatmul.f32.gmra.mxu0 %v747
  %v806 = vpop.f32.mrf.mxu0
  %v807 = vadd.f32 0.0, %v806
  %808 = vdwg.mxu0
  %v812 = vrot.slane %v787, 6
  %v813 = vrot.slane %v807, 4
  %v814 = vsel %vm156, %v767, %v812
  %v815 = vsel %vm158, %v814, %v813
  %v817 = vadd.f32 %v745, %v815
  %v818 = vmul.f32 %v817, 0.16666667
  %v819 = vadd.f32 %v818, 0.5
  %v820 = vmax.f32 %v819, 0.0
  %v821 = vmin.f32 %v820, 1.0
  %823 = vrot.lane.b32.xlu0 %v817, 64
  %v824 = vpop.permute.xlu0 %823
  %v825 = vrot.slane %v824, 2
  %v827 = vtanh.pop %v825
  %v828 = vmul.f32 %v821, %v827
  %v829 = vrot.slane %v817, 4
  %v831 = vmul.f32 %v829, 0.16666667
  %v832 = vadd.f32 %v831, 0.5
  %v833 = vmax.f32 %v832, 0.0
  %v834 = vmin.f32 %v833, 1.0
  %v835 = vperm.slane %v834, 0
  %v836 = vlaneseq
  %v837 = vshrl.u32 %v836, 7
  %839 = vset.pattern.permute.xlu0 %v837
  %840 = vperm.xlu0 %839, %v835
  %v841 = vpop.permute.xlu0 %840
  %v842 = vlaneseq
  %v843 = vshrl.u32 %v842, 7
  %v844 = vadd.s32 %v843, 8
  %845 = vset.pattern.permute.xlu0 %v844
  %846 = vperm.xlu0 %845, %v835
  %v847 = vpop.permute.xlu0 %846
  %v848 = vperm.slane %v834, 1
  %v849 = vlaneseq
  %v850 = vshrl.u32 %v849, 7
  %852 = vset.pattern.permute.xlu0 %v850
  %853 = vperm.xlu0 %852, %v848
  %v854 = vpop.permute.xlu0 %853
  %v855 = vlaneseq
  %v856 = vshrl.u32 %v855, 7
  %v857 = vadd.s32 %v856, 8
  %858 = vset.pattern.permute.xlu0 %v857
  %859 = vperm.xlu0 %858, %v848
  %v860 = vpop.permute.xlu0 %859
  %v862 = vrot.slane %v821, 1
  %v863 = vrot.slane %v821, 2
  %v864 = vrot.slane %v821, 3
  %v865 = vsel %vm209, %v821, %v862
  %v866 = vsel %vm211, %v863, %v864
  %v867 = vsel %vm156, %v865, %v866
  %v868 = vsel %vm214, %v821, %v862
  %v869 = vsel %vm216, %v863, %v864
  %v870 = vsel %vm218, %v868, %v869
  %v871 = vrot.slane %v870, 1
  %v872 = vperm.slane %v867, 0
  %v873 = vperm.slane %v871, 0
  %v876 = vmul.f32 %v841, %v872
  %v877 = vmul.f32 %v847, %v872
  %v878 = vmul.f32 %v854, %v873
  %v879 = vmul.f32 %v860, %v873
  %s880 = sadd.s32 %s76, 3
  %p881 = scmp.lt.s32.totalorder %s880, 0
  %s882 = ssub.s32 0, %s880
  %s883 = scalar_select %p881, %s882, %s880
  %s884 = sdiv.u32.pop %s883, 10
  %s885 = srem.u32.pop %s883, 10
  %s886 = ssub.s32 0, %s885
  %s887 = scalar_select %p881, %s886, %s885
  %p888 = scmp.ne.s32.totalorder %s887, 0
  %p889 = scmp.lt.s32.totalorder %s887, 0
  %p890 = pnand %p889, %p888
  %p891 = pneg %p890
  %s892 = sadd.s32 %s887, 10
  %s893 = scalar_select %p891, %s892, %s887
  %s894 = smul.u32 %s893, 32
  %s895 = scalar_lea.vmem %s1, %s894
  %v896 = vld [vmem:[%s895] sm:$0xff]
  %v897 = vld [vmem:[%s895 + $0x8] sm:$0x3]
  %v898 = vld [vmem:[%s895 + $0x10] sm:$0xff]
  %v899 = vld [vmem:[%s895 + $0x18] sm:$0x3]
  %v901 = vrot.slane %v828, 1
  %v902 = vrot.slane %v828, 2
  %v903 = vrot.slane %v828, 3
  %v904 = vsel %vm209, %v828, %v901
  %v905 = vsel %vm211, %v902, %v903
  %v906 = vsel %vm156, %v904, %v905
  %v907 = vsel %vm214, %v828, %v901
  %v908 = vsel %vm216, %v902, %v903
  %v909 = vsel %vm218, %v907, %v908
  %v910 = vrot.slane %v909, 1
  %v911 = vmul.f32 %v876, %v650
  %v912 = vmul.f32 %v877, %v651
  %v913 = vmul.f32 %v878, %v652
  %v914 = vmul.f32 %v879, %v653
  %v915 = vperm.slane %v906, 0
  %v916 = vperm.slane %v910, 0
  %920 = vset.pattern.permute.xlu0 0
  %921 = vperm.xlu0 %920, %v896
  %v922 = vpop.permute.xlu0 %921
  %925 = vset.pattern.permute.xlu0 0
  %926 = vperm.xlu0 %925, %v897
  %v927 = vpop.permute.xlu0 %926
  %v929 = vmul.f32 %v915, %v922
  %v930 = vmul.f32 %v915, %v927
  %v931 = vmul.f32 %v916, %v922
  %v932 = vmul.f32 %v916, %v927
  %937 = vrot.lane.b32.xlu0 %v929, 64
  %v938 = vpop.permute.xlu0 %937
  %939 = vrot.lane.b32.xlu0 %v930, 64
  %v940 = vpop.permute.xlu0 %939
  %941 = vrot.lane.b32.xlu0 %v931, 64
  %v942 = vpop.permute.xlu0 %941
  %943 = vrot.lane.b32.xlu0 %v932, 64
  %v944 = vpop.permute.xlu0 %943
  %v949 = vadd.f32 %v911, %v938
  %v950 = vadd.f32 %v912, %v940
  %v951 = vadd.f32 %v913, %v942
  %v952 = vadd.f32 %v914, %v944
  %v953 = vmul.f32 %v876, %v688
  %v954 = vmul.f32 %v877, %v689
  %v955 = vmul.f32 %v878, %v690
  %v956 = vmul.f32 %v879, %v691
  %958 = vset.pattern.permute.xlu0 0
  %959 = vperm.xlu0 %958, %v898
  %v960 = vpop.permute.xlu0 %959
  %963 = vset.pattern.permute.xlu0 0
  %964 = vperm.xlu0 %963, %v899
  %v965 = vpop.permute.xlu0 %964
  %v967 = vmul.f32 %v915, %v960
  %v968 = vmul.f32 %v915, %v965
  %v969 = vmul.f32 %v916, %v960
  %v970 = vmul.f32 %v916, %v965
  %975 = vrot.lane.b32.xlu0 %v967, 64
  %v976 = vpop.permute.xlu0 %975
  %977 = vrot.lane.b32.xlu0 %v968, 64
  %v978 = vpop.permute.xlu0 %977
  %979 = vrot.lane.b32.xlu0 %v969, 64
  %v980 = vpop.permute.xlu0 %979
  %981 = vrot.lane.b32.xlu0 %v970, 64
  %v982 = vpop.permute.xlu0 %981
  %v987 = vadd.f32 %v953, %v976
  %v988 = vadd.f32 %v954, %v978
  %v989 = vadd.f32 %v955, %v980
  %v990 = vadd.f32 %v956, %v982
  %v991 = vmul.f32 %v949, %v949
  %v992 = vmul.f32 %v950, %v950
  %v993 = vmul.f32 %v951, %v951
  %v994 = vmul.f32 %v952, %v952
  %v995 = vmul.f32 %v987, %v987
  %v996 = vmul.f32 %v988, %v988
  %v997 = vmul.f32 %v989, %v989
  %v998 = vmul.f32 %v990, %v990
  %v999 = vadd.f32 %v991, %v995
  %v1000 = vadd.f32 %v992, %v996
  %v1001 = vadd.f32 %v993, %v997
  %v1002 = vadd.f32 %v994, %v998
  %v1003 = vmul.f32 %v999, %v387
  %v1004 = vmul.f32 %v1000, %v392
  %v1005 = vmul.f32 %v1001, %v387
  %v1006 = vmul.f32 %v1002, %v392
  %v1007 = vsel %vm398, %v1003, 0.0
  %v1008 = vsel %vm400, %v1004, 0.0
  %v1009 = vadd.f32 %v1007, %v1008
  %v1010 = vrot.slane %v1009, 4
  %v1011 = vadd.f32 %v1009, %v1010
  %v1012 = vrot.slane %v1011, 2
  %v1013 = vadd.f32 %v1011, %v1012
  %v1014 = vrot.slane %v1013, 1
  %v1015 = vadd.f32 %v1013, %v1014
  %v1016 = vsel %vm398, %v1005, 0.0
  %v1017 = vsel %vm400, %v1006, 0.0
  %v1018 = vadd.f32 %v1016, %v1017
  %v1019 = vrot.slane %v1018, 4
  %v1020 = vadd.f32 %v1018, %v1019
  %v1021 = vrot.slane %v1020, 2
  %v1022 = vadd.f32 %v1020, %v1021
  %v1023 = vrot.slane %v1022, 1
  %v1024 = vadd.f32 %v1022, %v1023
  %v1025 = vadd.f32 %v1015, %v421
  %v1026 = vadd.f32 %v1024, %v421
  %v1027 = vtanh.pop %v1025
  %v1028 = vtanh.pop %v1026
  %v1032 = vsel %vm430, %v1027, %v1027
  %v1033 = vsel %vm432, %v1027, %v1032
  %v1034 = vrot.slane %v1028, 7
  %v1035 = vsel %vm214, %v1034, %v1033
  %v1036 = vsel %vm216, %v1034, %v1035
  %v1037 = vsel %vm437, %v1034, %v1036
  %v1038 = vsel %vm439, %v1034, %v1037
  %1039 = vrot.lane.b32.xlu0 %v1038, 64
  %v1040 = vpop.permute.xlu0 %1039
  %v1042 = vmul.f32 %v863, %v1040
  %s1043 = scalar_lea.vmem %s0, 18
  %v1044 = vld [vmem:[%s1043] sm:$0x3f]
  %v1046 = vsel %vm87, %v1042, 0
  %1048 = vmatpush.msra.mxu0 0.0
  %1049 = vmatpush.msra.mxu0 0.0
  %1050 = vmatpush.msra.mxu0 0.0
  %1051 = vmatpush.msra.mxu0 0.0
  %1052 = vmatpush.msra.mxu0 0.0
  %1053 = vmatpush.msra.mxu0 0.0
  %1054 = vmatpush.msra.mxu0 0.0
  %1055 = vmatpush.msra.mxu0 0.0
  %1056 = vmatpush.msra.mxu0 %v70
  %1057 = vmatpush.msra.mxu0 %v67
  %1058 = vmatpush.msra.mxu0 %v64
  %1059 = vmatpush.msra.mxu0 %v61
  %1060 = vmatpush.msra.mxu0 %v58
  %1061 = vmatpush.msra.mxu0 %v55
  %1062 = vmatpush.msra.mxu0 %v52
  %1063 = vmatpush.msra.mxu0 %v49
  %1064 = vmatmul.f32.gmra.mxu0 %v1046
  %v1065 = vpop.f32.mrf.mxu0
  %v1066 = vadd.f32 0.0, %v1065
  %1067 = vdwg.mxu0
  %1068 = vmatpush.msra.mxu0 0.0
  %1069 = vmatpush.msra.mxu0 0.0
  %1070 = vmatpush.msra.mxu0 0.0
  %1071 = vmatpush.msra.mxu0 0.0
  %1072 = vmatpush.msra.mxu0 0.0
  %1073 = vmatpush.msra.mxu0 0.0
  %1074 = vmatpush.msra.mxu0 0.0
  %1075 = vmatpush.msra.mxu0 0.0
  %1076 = vmatpush.msra.mxu0 %v71
  %1077 = vmatpush.msra.mxu0 %v68
  %1078 = vmatpush.msra.mxu0 %v65
  %1079 = vmatpush.msra.mxu0 %v62
  %1080 = vmatpush.msra.mxu0 %v59
  %1081 = vmatpush.msra.mxu0 %v56
  %1082 = vmatpush.msra.mxu0 %v53
  %1083 = vmatpush.msra.mxu0 %v50
  %1084 = vmatmul.f32.gmra.mxu0 %v1046
  %v1085 = vpop.f32.mrf.mxu0
  %v1086 = vadd.f32 0.0, %v1085
  %1087 = vdwg.mxu0
  %1088 = vmatpush.msra.mxu0 0.0
  %1089 = vmatpush.msra.mxu0 0.0
  %1090 = vmatpush.msra.mxu0 0.0
  %1091 = vmatpush.msra.mxu0 0.0
  %1092 = vmatpush.msra.mxu0 0.0
  %1093 = vmatpush.msra.mxu0 0.0
  %1094 = vmatpush.msra.mxu0 0.0
  %1095 = vmatpush.msra.mxu0 0.0
  %1096 = vmatpush.msra.mxu0 %v72
  %1097 = vmatpush.msra.mxu0 %v69
  %1098 = vmatpush.msra.mxu0 %v66
  %1099 = vmatpush.msra.mxu0 %v63
  %1100 = vmatpush.msra.mxu0 %v60
  %1101 = vmatpush.msra.mxu0 %v57
  %1102 = vmatpush.msra.mxu0 %v54
  %1103 = vmatpush.msra.mxu0 %v51
  %1104 = vmatmul.f32.gmra.mxu0 %v1046
  %v1105 = vpop.f32.mrf.mxu0
  %v1106 = vadd.f32 0.0, %v1105
  %1107 = vdwg.mxu0
  %v1111 = vrot.slane %v1086, 6
  %v1112 = vrot.slane %v1106, 4
  %v1113 = vsel %vm156, %v1066, %v1111
  %v1114 = vsel %vm158, %v1113, %v1112
  %v1116 = vadd.f32 %v1044, %v1114
  %v1117 = vmul.f32 %v1116, 0.16666667
  %v1118 = vadd.f32 %v1117, 0.5
  %v1119 = vmax.f32 %v1118, 0.0
  %v1120 = vmin.f32 %v1119, 1.0
  %1122 = vrot.lane.b32.xlu0 %v1116, 64
  %v1123 = vpop.permute.xlu0 %1122
  %v1124 = vrot.slane %v1123, 2
  %v1126 = vtanh.pop %v1124
  %v1127 = vmul.f32 %v1120, %v1126
  %v1128 = vrot.slane %v1116, 4
  %v1130 = vmul.f32 %v1128, 0.16666667
  %v1131 = vadd.f32 %v1130, 0.5
  %v1132 = vmax.f32 %v1131, 0.0
  %v1133 = vmin.f32 %v1132, 1.0
  %v1134 = vperm.slane %v1133, 0
  %v1135 = vlaneseq
  %v1136 = vshrl.u32 %v1135, 7
  %1138 = vset.pattern.permute.xlu0 %v1136
  %1139 = vperm.xlu0 %1138, %v1134
  %v1140 = vpop.permute.xlu0 %1139
  %v1141 = vlaneseq
  %v1142 = vshrl.u32 %v1141, 7
  %v1143 = vadd.s32 %v1142, 8
  %1144 = vset.pattern.permute.xlu0 %v1143
  %1145 = vperm.xlu0 %1144, %v1134
  %v1146 = vpop.permute.xlu0 %1145
  %v1147 = vperm.slane %v1133, 1
  %v1148 = vlaneseq
  %v1149 = vshrl.u32 %v1148, 7
  %1151 = vset.pattern.permute.xlu0 %v1149
  %1152 = vperm.xlu0 %1151, %v1147
  %v1153 = vpop.permute.xlu0 %1152
  %v1154 = vlaneseq
  %v1155 = vshrl.u32 %v1154, 7
  %v1156 = vadd.s32 %v1155, 8
  %1157 = vset.pattern.permute.xlu0 %v1156
  %1158 = vperm.xlu0 %1157, %v1147
  %v1159 = vpop.permute.xlu0 %1158
  %v1161 = vrot.slane %v1120, 1
  %v1162 = vrot.slane %v1120, 2
  %v1163 = vrot.slane %v1120, 3
  %v1164 = vsel %vm209, %v1120, %v1161
  %v1165 = vsel %vm211, %v1162, %v1163
  %v1166 = vsel %vm156, %v1164, %v1165
  %v1167 = vsel %vm214, %v1120, %v1161
  %v1168 = vsel %vm216, %v1162, %v1163
  %v1169 = vsel %vm218, %v1167, %v1168
  %v1170 = vrot.slane %v1169, 1
  %v1171 = vperm.slane %v1166, 0
  %v1172 = vperm.slane %v1170, 0
  %v1175 = vmul.f32 %v1140, %v1171
  %v1176 = vmul.f32 %v1146, %v1171
  %v1177 = vmul.f32 %v1153, %v1172
  %v1178 = vmul.f32 %v1159, %v1172
  %s1179 = sadd.s32 %s76, 4
  %p1180 = scmp.lt.s32.totalorder %s1179, 0
  %s1181 = ssub.s32 0, %s1179
  %s1182 = scalar_select %p1180, %s1181, %s1179
  %s1183 = sdiv.u32.pop %s1182, 10
  %s1184 = srem.u32.pop %s1182, 10
  %s1185 = ssub.s32 0, %s1184
  %s1186 = scalar_select %p1180, %s1185, %s1184
  %p1187 = scmp.ne.s32.totalorder %s1186, 0
  %p1188 = scmp.lt.s32.totalorder %s1186, 0
  %p1189 = pnand %p1188, %p1187
  %p1190 = pneg %p1189
  %s1191 = sadd.s32 %s1186, 10
  %s1192 = scalar_select %p1190, %s1191, %s1186
  %s1193 = smul.u32 %s1192, 32
  %s1194 = scalar_lea.vmem %s1, %s1193
  %v1195 = vld [vmem:[%s1194] sm:$0xff]
  %v1196 = vld [vmem:[%s1194 + $0x8] sm:$0x3]
  %v1197 = vld [vmem:[%s1194 + $0x10] sm:$0xff]
  %v1198 = vld [vmem:[%s1194 + $0x18] sm:$0x3]
  %v1200 = vrot.slane %v1127, 1
  %v1201 = vrot.slane %v1127, 2
  %v1202 = vrot.slane %v1127, 3
  %v1203 = vsel %vm209, %v1127, %v1200
  %v1204 = vsel %vm211, %v1201, %v1202
  %v1205 = vsel %vm156, %v1203, %v1204
  %v1206 = vsel %vm214, %v1127, %v1200
  %v1207 = vsel %vm216, %v1201, %v1202
  %v1208 = vsel %vm218, %v1206, %v1207
  %v1209 = vrot.slane %v1208, 1
  %v1210 = vmul.f32 %v1175, %v949
  %v1211 = vmul.f32 %v1176, %v950
  %v1212 = vmul.f32 %v1177, %v951
  %v1213 = vmul.f32 %v1178, %v952
  %v1214 = vperm.slane %v1205, 0
  %v1215 = vperm.slane %v1209, 0
  %1219 = vset.pattern.permute.xlu0 0
  %1220 = vperm.xlu0 %1219, %v1195
  %v1221 = vpop.permute.xlu0 %1220
  %1224 = vset.pattern.permute.xlu0 0
  %1225 = vperm.xlu0 %1224, %v1196
  %v1226 = vpop.permute.xlu0 %1225
  %v1228 = vmul.f32 %v1214, %v1221
  %v1229 = vmul.f32 %v1214, %v1226
  %v1230 = vmul.f32 %v1215, %v1221
  %v1231 = vmul.f32 %v1215, %v1226
  %1236 = vrot.lane.b32.xlu0 %v1228, 64
  %v1237 = vpop.permute.xlu0 %1236
  %1238 = vrot.lane.b32.xlu0 %v1229, 64
  %v1239 = vpop.permute.xlu0 %1238
  %1240 = vrot.lane.b32.xlu0 %v1230, 64
  %v1241 = vpop.permute.xlu0 %1240
  %1242 = vrot.lane.b32.xlu0 %v1231, 64
  %v1243 = vpop.permute.xlu0 %1242
  %v1248 = vadd.f32 %v1210, %v1237
  %v1249 = vadd.f32 %v1211, %v1239
  %v1250 = vadd.f32 %v1212, %v1241
  %v1251 = vadd.f32 %v1213, %v1243
  %v1252 = vmul.f32 %v1175, %v987
  %v1253 = vmul.f32 %v1176, %v988
  %v1254 = vmul.f32 %v1177, %v989
  %v1255 = vmul.f32 %v1178, %v990
  %1257 = vset.pattern.permute.xlu0 0
  %1258 = vperm.xlu0 %1257, %v1197
  %v1259 = vpop.permute.xlu0 %1258
  %1262 = vset.pattern.permute.xlu0 0
  %1263 = vperm.xlu0 %1262, %v1198
  %v1264 = vpop.permute.xlu0 %1263
  %v1266 = vmul.f32 %v1214, %v1259
  %v1267 = vmul.f32 %v1214, %v1264
  %v1268 = vmul.f32 %v1215, %v1259
  %v1269 = vmul.f32 %v1215, %v1264
  %1274 = vrot.lane.b32.xlu0 %v1266, 64
  %v1275 = vpop.permute.xlu0 %1274
  %1276 = vrot.lane.b32.xlu0 %v1267, 64
  %v1277 = vpop.permute.xlu0 %1276
  %1278 = vrot.lane.b32.xlu0 %v1268, 64
  %v1279 = vpop.permute.xlu0 %1278
  %1280 = vrot.lane.b32.xlu0 %v1269, 64
  %v1281 = vpop.permute.xlu0 %1280
  %v1286 = vadd.f32 %v1252, %v1275
  %v1287 = vadd.f32 %v1253, %v1277
  %v1288 = vadd.f32 %v1254, %v1279
  %v1289 = vadd.f32 %v1255, %v1281
  %v1290 = vmul.f32 %v1248, %v1248
  %v1291 = vmul.f32 %v1249, %v1249
  %v1292 = vmul.f32 %v1250, %v1250
  %v1293 = vmul.f32 %v1251, %v1251
  %v1294 = vmul.f32 %v1286, %v1286
  %v1295 = vmul.f32 %v1287, %v1287
  %v1296 = vmul.f32 %v1288, %v1288
  %v1297 = vmul.f32 %v1289, %v1289
  %v1298 = vadd.f32 %v1290, %v1294
  %v1299 = vadd.f32 %v1291, %v1295
  %v1300 = vadd.f32 %v1292, %v1296
  %v1301 = vadd.f32 %v1293, %v1297
  %v1302 = vmul.f32 %v1298, %v387
  %v1303 = vmul.f32 %v1299, %v392
  %v1304 = vmul.f32 %v1300, %v387
  %v1305 = vmul.f32 %v1301, %v392
  %v1306 = vsel %vm398, %v1302, 0.0
  %v1307 = vsel %vm400, %v1303, 0.0
  %v1308 = vadd.f32 %v1306, %v1307
  %v1309 = vrot.slane %v1308, 4
  %v1310 = vadd.f32 %v1308, %v1309
  %v1311 = vrot.slane %v1310, 2
  %v1312 = vadd.f32 %v1310, %v1311
  %v1313 = vrot.slane %v1312, 1
  %v1314 = vadd.f32 %v1312, %v1313
  %v1315 = vsel %vm398, %v1304, 0.0
  %v1316 = vsel %vm400, %v1305, 0.0
  %v1317 = vadd.f32 %v1315, %v1316
  %v1318 = vrot.slane %v1317, 4
  %v1319 = vadd.f32 %v1317, %v1318
  %v1320 = vrot.slane %v1319, 2
  %v1321 = vadd.f32 %v1319, %v1320
  %v1322 = vrot.slane %v1321, 1
  %v1323 = vadd.f32 %v1321, %v1322
  %v1324 = vadd.f32 %v1314, %v421
  %v1325 = vadd.f32 %v1323, %v421
  %v1326 = vtanh.pop %v1324
  %v1327 = vtanh.pop %v1325
  %v1331 = vsel %vm430, %v1326, %v1326
  %v1332 = vsel %vm432, %v1326, %v1331
  %v1333 = vrot.slane %v1327, 7
  %v1334 = vsel %vm214, %v1333, %v1332
  %v1335 = vsel %vm216, %v1333, %v1334
  %v1336 = vsel %vm437, %v1333, %v1335
  %v1337 = vsel %vm439, %v1333, %v1336
  %1338 = vrot.lane.b32.xlu0 %v1337, 64
  %v1339 = vpop.permute.xlu0 %1338
  %v1341 = vmul.f32 %v1162, %v1339
  %s1342 = scalar_lea.vmem %s0, 24
  %v1343 = vld [vmem:[%s1342] sm:$0x3f]
  %v1345 = vsel %vm87, %v1341, 0
  %1347 = vmatpush.msra.mxu0 0.0
  %1348 = vmatpush.msra.mxu0 0.0
  %1349 = vmatpush.msra.mxu0 0.0
  %1350 = vmatpush.msra.mxu0 0.0
  %1351 = vmatpush.msra.mxu0 0.0
  %1352 = vmatpush.msra.mxu0 0.0
  %1353 = vmatpush.msra.mxu0 0.0
  %1354 = vmatpush.msra.mxu0 0.0
  %1355 = vmatpush.msra.mxu0 %v70
  %1356 = vmatpush.msra.mxu0 %v67
  %1357 = vmatpush.msra.mxu0 %v64
  %1358 = vmatpush.msra.mxu0 %v61
  %1359 = vmatpush.msra.mxu0 %v58
  %1360 = vmatpush.msra.mxu0 %v55
  %1361 = vmatpush.msra.mxu0 %v52
  %1362 = vmatpush.msra.mxu0 %v49
  %1363 = vmatmul.f32.gmra.mxu0 %v1345
  %v1364 = vpop.f32.mrf.mxu0
  %v1365 = vadd.f32 0.0, %v1364
  %1366 = vdwg.mxu0
  %1367 = vmatpush.msra.mxu0 0.0
  %1368 = vmatpush.msra.mxu0 0.0
  %1369 = vmatpush.msra.mxu0 0.0
  %1370 = vmatpush.msra.mxu0 0.0
  %1371 = vmatpush.msra.mxu0 0.0
  %1372 = vmatpush.msra.mxu0 0.0
  %1373 = vmatpush.msra.mxu0 0.0
  %1374 = vmatpush.msra.mxu0 0.0
  %1375 = vmatpush.msra.mxu0 %v71
  %1376 = vmatpush.msra.mxu0 %v68
  %1377 = vmatpush.msra.mxu0 %v65
  %1378 = vmatpush.msra.mxu0 %v62
  %1379 = vmatpush.msra.mxu0 %v59
  %1380 = vmatpush.msra.mxu0 %v56
  %1381 = vmatpush.msra.mxu0 %v53
  %1382 = vmatpush.msra.mxu0 %v50
  %1383 = vmatmul.f32.gmra.mxu0 %v1345
  %v1384 = vpop.f32.mrf.mxu0
  %v1385 = vadd.f32 0.0, %v1384
  %1386 = vdwg.mxu0
  %1387 = vmatpush.msra.mxu0 0.0
  %1388 = vmatpush.msra.mxu0 0.0
  %1389 = vmatpush.msra.mxu0 0.0
  %1390 = vmatpush.msra.mxu0 0.0
  %1391 = vmatpush.msra.mxu0 0.0
  %1392 = vmatpush.msra.mxu0 0.0
  %1393 = vmatpush.msra.mxu0 0.0
  %1394 = vmatpush.msra.mxu0 0.0
  %1395 = vmatpush.msra.mxu0 %v72
  %1396 = vmatpush.msra.mxu0 %v69
  %1397 = vmatpush.msra.mxu0 %v66
  %1398 = vmatpush.msra.mxu0 %v63
  %1399 = vmatpush.msra.mxu0 %v60
  %1400 = vmatpush.msra.mxu0 %v57
  %1401 = vmatpush.msra.mxu0 %v54
  %1402 = vmatpush.msra.mxu0 %v51
  %1403 = vmatmul.f32.gmra.mxu0 %v1345
  %v1404 = vpop.f32.mrf.mxu0
  %v1405 = vadd.f32 0.0, %v1404
  %1406 = vdwg.mxu0
  %v1410 = vrot.slane %v1385, 6
  %v1411 = vrot.slane %v1405, 4
  %v1412 = vsel %vm156, %v1365, %v1410
  %v1413 = vsel %vm158, %v1412, %v1411
  %v1415 = vadd.f32 %v1343, %v1413
  %v1416 = vmul.f32 %v1415, 0.16666667
  %v1417 = vadd.f32 %v1416, 0.5
  %v1418 = vmax.f32 %v1417, 0.0
  %v1419 = vmin.f32 %v1418, 1.0
  %1421 = vrot.lane.b32.xlu0 %v1415, 64
  %v1422 = vpop.permute.xlu0 %1421
  %v1423 = vrot.slane %v1422, 2
  %v1425 = vtanh.pop %v1423
  %v1426 = vmul.f32 %v1419, %v1425
  %v1427 = vrot.slane %v1415, 4
  %v1429 = vmul.f32 %v1427, 0.16666667
  %v1430 = vadd.f32 %v1429, 0.5
  %v1431 = vmax.f32 %v1430, 0.0
  %v1432 = vmin.f32 %v1431, 1.0
  %v1433 = vperm.slane %v1432, 0
  %v1434 = vlaneseq
  %v1435 = vshrl.u32 %v1434, 7
  %1437 = vset.pattern.permute.xlu0 %v1435
  %1438 = vperm.xlu0 %1437, %v1433
  %v1439 = vpop.permute.xlu0 %1438
  %v1440 = vlaneseq
  %v1441 = vshrl.u32 %v1440, 7
  %v1442 = vadd.s32 %v1441, 8
  %1443 = vset.pattern.permute.xlu0 %v1442
  %1444 = vperm.xlu0 %1443, %v1433
  %v1445 = vpop.permute.xlu0 %1444
  %v1446 = vperm.slane %v1432, 1
  %v1447 = vlaneseq
  %v1448 = vshrl.u32 %v1447, 7
  %1450 = vset.pattern.permute.xlu0 %v1448
  %1451 = vperm.xlu0 %1450, %v1446
  %v1452 = vpop.permute.xlu0 %1451
  %v1453 = vlaneseq
  %v1454 = vshrl.u32 %v1453, 7
  %v1455 = vadd.s32 %v1454, 8
  %1456 = vset.pattern.permute.xlu0 %v1455
  %1457 = vperm.xlu0 %1456, %v1446
  %v1458 = vpop.permute.xlu0 %1457
  %v1460 = vrot.slane %v1419, 1
  %v1461 = vrot.slane %v1419, 2
  %v1462 = vrot.slane %v1419, 3
  %v1463 = vsel %vm209, %v1419, %v1460
  %v1464 = vsel %vm211, %v1461, %v1462
  %v1465 = vsel %vm156, %v1463, %v1464
  %v1466 = vsel %vm214, %v1419, %v1460
  %v1467 = vsel %vm216, %v1461, %v1462
  %v1468 = vsel %vm218, %v1466, %v1467
  %v1469 = vrot.slane %v1468, 1
  %v1470 = vperm.slane %v1465, 0
  %v1471 = vperm.slane %v1469, 0
  %v1474 = vmul.f32 %v1439, %v1470
  %v1475 = vmul.f32 %v1445, %v1470
  %v1476 = vmul.f32 %v1452, %v1471
  %v1477 = vmul.f32 %v1458, %v1471
  %s1478 = sadd.s32 %s76, 5
  %p1479 = scmp.lt.s32.totalorder %s1478, 0
  %s1480 = ssub.s32 0, %s1478
  %s1481 = scalar_select %p1479, %s1480, %s1478
  %s1482 = sdiv.u32.pop %s1481, 10
  %s1483 = srem.u32.pop %s1481, 10
  %s1484 = ssub.s32 0, %s1483
  %s1485 = scalar_select %p1479, %s1484, %s1483
  %p1486 = scmp.ne.s32.totalorder %s1485, 0
  %p1487 = scmp.lt.s32.totalorder %s1485, 0
  %p1488 = pnand %p1487, %p1486
  %p1489 = pneg %p1488
  %s1490 = sadd.s32 %s1485, 10
  %s1491 = scalar_select %p1489, %s1490, %s1485
  %s1492 = smul.u32 %s1491, 32
  %s1493 = scalar_lea.vmem %s1, %s1492
  %v1494 = vld [vmem:[%s1493] sm:$0xff]
  %v1495 = vld [vmem:[%s1493 + $0x8] sm:$0x3]
  %v1496 = vld [vmem:[%s1493 + $0x10] sm:$0xff]
  %v1497 = vld [vmem:[%s1493 + $0x18] sm:$0x3]
  %v1499 = vrot.slane %v1426, 1
  %v1500 = vrot.slane %v1426, 2
  %v1501 = vrot.slane %v1426, 3
  %v1502 = vsel %vm209, %v1426, %v1499
  %v1503 = vsel %vm211, %v1500, %v1501
  %v1504 = vsel %vm156, %v1502, %v1503
  %v1505 = vsel %vm214, %v1426, %v1499
  %v1506 = vsel %vm216, %v1500, %v1501
  %v1507 = vsel %vm218, %v1505, %v1506
  %v1508 = vrot.slane %v1507, 1
  %v1509 = vmul.f32 %v1474, %v1248
  %v1510 = vmul.f32 %v1475, %v1249
  %v1511 = vmul.f32 %v1476, %v1250
  %v1512 = vmul.f32 %v1477, %v1251
  %v1513 = vperm.slane %v1504, 0
  %v1514 = vperm.slane %v1508, 0
  %1518 = vset.pattern.permute.xlu0 0
  %1519 = vperm.xlu0 %1518, %v1494
  %v1520 = vpop.permute.xlu0 %1519
  %1523 = vset.pattern.permute.xlu0 0
  %1524 = vperm.xlu0 %1523, %v1495
  %v1525 = vpop.permute.xlu0 %1524
  %v1527 = vmul.f32 %v1513, %v1520
  %v1528 = vmul.f32 %v1513, %v1525
  %v1529 = vmul.f32 %v1514, %v1520
  %v1530 = vmul.f32 %v1514, %v1525
  %1535 = vrot.lane.b32.xlu0 %v1527, 64
  %v1536 = vpop.permute.xlu0 %1535
  %1537 = vrot.lane.b32.xlu0 %v1528, 64
  %v1538 = vpop.permute.xlu0 %1537
  %1539 = vrot.lane.b32.xlu0 %v1529, 64
  %v1540 = vpop.permute.xlu0 %1539
  %1541 = vrot.lane.b32.xlu0 %v1530, 64
  %v1542 = vpop.permute.xlu0 %1541
  %v1547 = vadd.f32 %v1509, %v1536
  %v1548 = vadd.f32 %v1510, %v1538
  %v1549 = vadd.f32 %v1511, %v1540
  %v1550 = vadd.f32 %v1512, %v1542
  %v1551 = vmul.f32 %v1474, %v1286
  %v1552 = vmul.f32 %v1475, %v1287
  %v1553 = vmul.f32 %v1476, %v1288
  %v1554 = vmul.f32 %v1477, %v1289
  %1556 = vset.pattern.permute.xlu0 0
  %1557 = vperm.xlu0 %1556, %v1496
  %v1558 = vpop.permute.xlu0 %1557
  %1561 = vset.pattern.permute.xlu0 0
  %1562 = vperm.xlu0 %1561, %v1497
  %v1563 = vpop.permute.xlu0 %1562
  %v1565 = vmul.f32 %v1513, %v1558
  %v1566 = vmul.f32 %v1513, %v1563
  %v1567 = vmul.f32 %v1514, %v1558
  %v1568 = vmul.f32 %v1514, %v1563
  %1573 = vrot.lane.b32.xlu0 %v1565, 64
  %v1574 = vpop.permute.xlu0 %1573
  %1575 = vrot.lane.b32.xlu0 %v1566, 64
  %v1576 = vpop.permute.xlu0 %1575
  %1577 = vrot.lane.b32.xlu0 %v1567, 64
  %v1578 = vpop.permute.xlu0 %1577
  %1579 = vrot.lane.b32.xlu0 %v1568, 64
  %v1580 = vpop.permute.xlu0 %1579
  %v1585 = vadd.f32 %v1551, %v1574
  %v1586 = vadd.f32 %v1552, %v1576
  %v1587 = vadd.f32 %v1553, %v1578
  %v1588 = vadd.f32 %v1554, %v1580
  %v1589 = vmul.f32 %v1547, %v1547
  %v1590 = vmul.f32 %v1548, %v1548
  %v1591 = vmul.f32 %v1549, %v1549
  %v1592 = vmul.f32 %v1550, %v1550
  %v1593 = vmul.f32 %v1585, %v1585
  %v1594 = vmul.f32 %v1586, %v1586
  %v1595 = vmul.f32 %v1587, %v1587
  %v1596 = vmul.f32 %v1588, %v1588
  %v1597 = vadd.f32 %v1589, %v1593
  %v1598 = vadd.f32 %v1590, %v1594
  %v1599 = vadd.f32 %v1591, %v1595
  %v1600 = vadd.f32 %v1592, %v1596
  %v1601 = vmul.f32 %v1597, %v387
  %v1602 = vmul.f32 %v1598, %v392
  %v1603 = vmul.f32 %v1599, %v387
  %v1604 = vmul.f32 %v1600, %v392
  %v1605 = vsel %vm398, %v1601, 0.0
  %v1606 = vsel %vm400, %v1602, 0.0
  %v1607 = vadd.f32 %v1605, %v1606
  %v1608 = vrot.slane %v1607, 4
  %v1609 = vadd.f32 %v1607, %v1608
  %v1610 = vrot.slane %v1609, 2
  %v1611 = vadd.f32 %v1609, %v1610
  %v1612 = vrot.slane %v1611, 1
  %v1613 = vadd.f32 %v1611, %v1612
  %v1614 = vsel %vm398, %v1603, 0.0
  %v1615 = vsel %vm400, %v1604, 0.0
  %v1616 = vadd.f32 %v1614, %v1615
  %v1617 = vrot.slane %v1616, 4
  %v1618 = vadd.f32 %v1616, %v1617
  %v1619 = vrot.slane %v1618, 2
  %v1620 = vadd.f32 %v1618, %v1619
  %v1621 = vrot.slane %v1620, 1
  %v1622 = vadd.f32 %v1620, %v1621
  %v1623 = vadd.f32 %v1613, %v421
  %v1624 = vadd.f32 %v1622, %v421
  %v1625 = vtanh.pop %v1623
  %v1626 = vtanh.pop %v1624
  %v1630 = vsel %vm430, %v1625, %v1625
  %v1631 = vsel %vm432, %v1625, %v1630
  %v1632 = vrot.slane %v1626, 7
  %v1633 = vsel %vm214, %v1632, %v1631
  %v1634 = vsel %vm216, %v1632, %v1633
  %v1635 = vsel %vm437, %v1632, %v1634
  %v1636 = vsel %vm439, %v1632, %v1635
  %1637 = vrot.lane.b32.xlu0 %v1636, 64
  %v1638 = vpop.permute.xlu0 %1637
  %v1640 = vmul.f32 %v1461, %v1638
  %s1641 = scalar_lea.vmem %s0, 30
  %v1642 = vld [vmem:[%s1641] sm:$0x3f]
  %v1644 = vsel %vm87, %v1640, 0
  %1646 = vmatpush.msra.mxu0 0.0
  %1647 = vmatpush.msra.mxu0 0.0
  %1648 = vmatpush.msra.mxu0 0.0
  %1649 = vmatpush.msra.mxu0 0.0
  %1650 = vmatpush.msra.mxu0 0.0
  %1651 = vmatpush.msra.mxu0 0.0
  %1652 = vmatpush.msra.mxu0 0.0
  %1653 = vmatpush.msra.mxu0 0.0
  %1654 = vmatpush.msra.mxu0 %v70
  %1655 = vmatpush.msra.mxu0 %v67
  %1656 = vmatpush.msra.mxu0 %v64
  %1657 = vmatpush.msra.mxu0 %v61
  %1658 = vmatpush.msra.mxu0 %v58
  %1659 = vmatpush.msra.mxu0 %v55
  %1660 = vmatpush.msra.mxu0 %v52
  %1661 = vmatpush.msra.mxu0 %v49
  %1662 = vmatmul.f32.gmra.mxu0 %v1644
  %v1663 = vpop.f32.mrf.mxu0
  %v1664 = vadd.f32 0.0, %v1663
  %1665 = vdwg.mxu0
  %1666 = vmatpush.msra.mxu0 0.0
  %1667 = vmatpush.msra.mxu0 0.0
  %1668 = vmatpush.msra.mxu0 0.0
  %1669 = vmatpush.msra.mxu0 0.0
  %1670 = vmatpush.msra.mxu0 0.0
  %1671 = vmatpush.msra.mxu0 0.0
  %1672 = vmatpush.msra.mxu0 0.0
  %1673 = vmatpush.msra.mxu0 0.0
  %1674 = vmatpush.msra.mxu0 %v71
  %1675 = vmatpush.msra.mxu0 %v68
  %1676 = vmatpush.msra.mxu0 %v65
  %1677 = vmatpush.msra.mxu0 %v62
  %1678 = vmatpush.msra.mxu0 %v59
  %1679 = vmatpush.msra.mxu0 %v56
  %1680 = vmatpush.msra.mxu0 %v53
  %1681 = vmatpush.msra.mxu0 %v50
  %1682 = vmatmul.f32.gmra.mxu0 %v1644
  %v1683 = vpop.f32.mrf.mxu0
  %v1684 = vadd.f32 0.0, %v1683
  %1685 = vdwg.mxu0
  %1686 = vmatpush.msra.mxu0 0.0
  %1687 = vmatpush.msra.mxu0 0.0
  %1688 = vmatpush.msra.mxu0 0.0
  %1689 = vmatpush.msra.mxu0 0.0
  %1690 = vmatpush.msra.mxu0 0.0
  %1691 = vmatpush.msra.mxu0 0.0
  %1692 = vmatpush.msra.mxu0 0.0
  %1693 = vmatpush.msra.mxu0 0.0
  %1694 = vmatpush.msra.mxu0 %v72
  %1695 = vmatpush.msra.mxu0 %v69
  %1696 = vmatpush.msra.mxu0 %v66
  %1697 = vmatpush.msra.mxu0 %v63
  %1698 = vmatpush.msra.mxu0 %v60
  %1699 = vmatpush.msra.mxu0 %v57
  %1700 = vmatpush.msra.mxu0 %v54
  %1701 = vmatpush.msra.mxu0 %v51
  %1702 = vmatmul.f32.gmra.mxu0 %v1644
  %v1703 = vpop.f32.mrf.mxu0
  %v1704 = vadd.f32 0.0, %v1703
  %1705 = vdwg.mxu0
  %v1709 = vrot.slane %v1684, 6
  %v1710 = vrot.slane %v1704, 4
  %v1711 = vsel %vm156, %v1664, %v1709
  %v1712 = vsel %vm158, %v1711, %v1710
  %v1714 = vadd.f32 %v1642, %v1712
  %v1715 = vmul.f32 %v1714, 0.16666667
  %v1716 = vadd.f32 %v1715, 0.5
  %v1717 = vmax.f32 %v1716, 0.0
  %v1718 = vmin.f32 %v1717, 1.0
  %1720 = vrot.lane.b32.xlu0 %v1714, 64
  %v1721 = vpop.permute.xlu0 %1720
  %v1722 = vrot.slane %v1721, 2
  %v1724 = vtanh.pop %v1722
  %v1725 = vmul.f32 %v1718, %v1724
  %v1726 = vrot.slane %v1714, 4
  %v1728 = vmul.f32 %v1726, 0.16666667
  %v1729 = vadd.f32 %v1728, 0.5
  %v1730 = vmax.f32 %v1729, 0.0
  %v1731 = vmin.f32 %v1730, 1.0
  %v1732 = vperm.slane %v1731, 0
  %v1733 = vlaneseq
  %v1734 = vshrl.u32 %v1733, 7
  %1736 = vset.pattern.permute.xlu0 %v1734
  %1737 = vperm.xlu0 %1736, %v1732
  %v1738 = vpop.permute.xlu0 %1737
  %v1739 = vlaneseq
  %v1740 = vshrl.u32 %v1739, 7
  %v1741 = vadd.s32 %v1740, 8
  %1742 = vset.pattern.permute.xlu0 %v1741
  %1743 = vperm.xlu0 %1742, %v1732
  %v1744 = vpop.permute.xlu0 %1743
  %v1745 = vperm.slane %v1731, 1
  %v1746 = vlaneseq
  %v1747 = vshrl.u32 %v1746, 7
  %1749 = vset.pattern.permute.xlu0 %v1747
  %1750 = vperm.xlu0 %1749, %v1745
  %v1751 = vpop.permute.xlu0 %1750
  %v1752 = vlaneseq
  %v1753 = vshrl.u32 %v1752, 7
  %v1754 = vadd.s32 %v1753, 8
  %1755 = vset.pattern.permute.xlu0 %v1754
  %1756 = vperm.xlu0 %1755, %v1745
  %v1757 = vpop.permute.xlu0 %1756
  %v1759 = vrot.slane %v1718, 1
  %v1760 = vrot.slane %v1718, 2
  %v1761 = vrot.slane %v1718, 3
  %v1762 = vsel %vm209, %v1718, %v1759
  %v1763 = vsel %vm211, %v1760, %v1761
  %v1764 = vsel %vm156, %v1762, %v1763
  %v1765 = vsel %vm214, %v1718, %v1759
  %v1766 = vsel %vm216, %v1760, %v1761
  %v1767 = vsel %vm218, %v1765, %v1766
  %v1768 = vrot.slane %v1767, 1
  %v1769 = vperm.slane %v1764, 0
  %v1770 = vperm.slane %v1768, 0
  %v1773 = vmul.f32 %v1738, %v1769
  %v1774 = vmul.f32 %v1744, %v1769
  %v1775 = vmul.f32 %v1751, %v1770
  %v1776 = vmul.f32 %v1757, %v1770
  %s1777 = sadd.s32 %s76, 6
  %p1778 = scmp.lt.s32.totalorder %s1777, 0
  %s1779 = ssub.s32 0, %s1777
  %s1780 = scalar_select %p1778, %s1779, %s1777
  %s1781 = sdiv.u32.pop %s1780, 10
  %s1782 = srem.u32.pop %s1780, 10
  %s1783 = ssub.s32 0, %s1782
  %s1784 = scalar_select %p1778, %s1783, %s1782
  %p1785 = scmp.ne.s32.totalorder %s1784, 0
  %p1786 = scmp.lt.s32.totalorder %s1784, 0
  %p1787 = pnand %p1786, %p1785
  %p1788 = pneg %p1787
  %s1789 = sadd.s32 %s1784, 10
  %s1790 = scalar_select %p1788, %s1789, %s1784
  %s1791 = smul.u32 %s1790, 32
  %s1792 = scalar_lea.vmem %s1, %s1791
  %v1793 = vld [vmem:[%s1792] sm:$0xff]
  %v1794 = vld [vmem:[%s1792 + $0x8] sm:$0x3]
  %v1795 = vld [vmem:[%s1792 + $0x10] sm:$0xff]
  %v1796 = vld [vmem:[%s1792 + $0x18] sm:$0x3]
  %v1798 = vrot.slane %v1725, 1
  %v1799 = vrot.slane %v1725, 2
  %v1800 = vrot.slane %v1725, 3
  %v1801 = vsel %vm209, %v1725, %v1798
  %v1802 = vsel %vm211, %v1799, %v1800
  %v1803 = vsel %vm156, %v1801, %v1802
  %v1804 = vsel %vm214, %v1725, %v1798
  %v1805 = vsel %vm216, %v1799, %v1800
  %v1806 = vsel %vm218, %v1804, %v1805
  %v1807 = vrot.slane %v1806, 1
  %v1808 = vmul.f32 %v1773, %v1547
  %v1809 = vmul.f32 %v1774, %v1548
  %v1810 = vmul.f32 %v1775, %v1549
  %v1811 = vmul.f32 %v1776, %v1550
  %v1812 = vperm.slane %v1803, 0
  %v1813 = vperm.slane %v1807, 0
  %1817 = vset.pattern.permute.xlu0 0
  %1818 = vperm.xlu0 %1817, %v1793
  %v1819 = vpop.permute.xlu0 %1818
  %1822 = vset.pattern.permute.xlu0 0
  %1823 = vperm.xlu0 %1822, %v1794
  %v1824 = vpop.permute.xlu0 %1823
  %v1826 = vmul.f32 %v1812, %v1819
  %v1827 = vmul.f32 %v1812, %v1824
  %v1828 = vmul.f32 %v1813, %v1819
  %v1829 = vmul.f32 %v1813, %v1824
  %1834 = vrot.lane.b32.xlu0 %v1826, 64
  %v1835 = vpop.permute.xlu0 %1834
  %1836 = vrot.lane.b32.xlu0 %v1827, 64
  %v1837 = vpop.permute.xlu0 %1836
  %1838 = vrot.lane.b32.xlu0 %v1828, 64
  %v1839 = vpop.permute.xlu0 %1838
  %1840 = vrot.lane.b32.xlu0 %v1829, 64
  %v1841 = vpop.permute.xlu0 %1840
  %v1846 = vadd.f32 %v1808, %v1835
  %v1847 = vadd.f32 %v1809, %v1837
  %v1848 = vadd.f32 %v1810, %v1839
  %v1849 = vadd.f32 %v1811, %v1841
  %v1850 = vmul.f32 %v1773, %v1585
  %v1851 = vmul.f32 %v1774, %v1586
  %v1852 = vmul.f32 %v1775, %v1587
  %v1853 = vmul.f32 %v1776, %v1588
  %1855 = vset.pattern.permute.xlu0 0
  %1856 = vperm.xlu0 %1855, %v1795
  %v1857 = vpop.permute.xlu0 %1856
  %1860 = vset.pattern.permute.xlu0 0
  %1861 = vperm.xlu0 %1860, %v1796
  %v1862 = vpop.permute.xlu0 %1861
  %v1864 = vmul.f32 %v1812, %v1857
  %v1865 = vmul.f32 %v1812, %v1862
  %v1866 = vmul.f32 %v1813, %v1857
  %v1867 = vmul.f32 %v1813, %v1862
  %1872 = vrot.lane.b32.xlu0 %v1864, 64
  %v1873 = vpop.permute.xlu0 %1872
  %1874 = vrot.lane.b32.xlu0 %v1865, 64
  %v1875 = vpop.permute.xlu0 %1874
  %1876 = vrot.lane.b32.xlu0 %v1866, 64
  %v1877 = vpop.permute.xlu0 %1876
  %1878 = vrot.lane.b32.xlu0 %v1867, 64
  %v1879 = vpop.permute.xlu0 %1878
  %v1884 = vadd.f32 %v1850, %v1873
  %v1885 = vadd.f32 %v1851, %v1875
  %v1886 = vadd.f32 %v1852, %v1877
  %v1887 = vadd.f32 %v1853, %v1879
  %v1888 = vmul.f32 %v1846, %v1846
  %v1889 = vmul.f32 %v1847, %v1847
  %v1890 = vmul.f32 %v1848, %v1848
  %v1891 = vmul.f32 %v1849, %v1849
  %v1892 = vmul.f32 %v1884, %v1884
  %v1893 = vmul.f32 %v1885, %v1885
  %v1894 = vmul.f32 %v1886, %v1886
  %v1895 = vmul.f32 %v1887, %v1887
  %v1896 = vadd.f32 %v1888, %v1892
  %v1897 = vadd.f32 %v1889, %v1893
  %v1898 = vadd.f32 %v1890, %v1894
  %v1899 = vadd.f32 %v1891, %v1895
  %v1900 = vmul.f32 %v1896, %v387
  %v1901 = vmul.f32 %v1897, %v392
  %v1902 = vmul.f32 %v1898, %v387
  %v1903 = vmul.f32 %v1899, %v392
  %v1904 = vsel %vm398, %v1900, 0.0
  %v1905 = vsel %vm400, %v1901, 0.0
  %v1906 = vadd.f32 %v1904, %v1905
  %v1907 = vrot.slane %v1906, 4
  %v1908 = vadd.f32 %v1906, %v1907
  %v1909 = vrot.slane %v1908, 2
  %v1910 = vadd.f32 %v1908, %v1909
  %v1911 = vrot.slane %v1910, 1
  %v1912 = vadd.f32 %v1910, %v1911
  %v1913 = vsel %vm398, %v1902, 0.0
  %v1914 = vsel %vm400, %v1903, 0.0
  %v1915 = vadd.f32 %v1913, %v1914
  %v1916 = vrot.slane %v1915, 4
  %v1917 = vadd.f32 %v1915, %v1916
  %v1918 = vrot.slane %v1917, 2
  %v1919 = vadd.f32 %v1917, %v1918
  %v1920 = vrot.slane %v1919, 1
  %v1921 = vadd.f32 %v1919, %v1920
  %v1922 = vadd.f32 %v1912, %v421
  %v1923 = vadd.f32 %v1921, %v421
  %v1924 = vtanh.pop %v1922
  %v1925 = vtanh.pop %v1923
  %v1929 = vsel %vm430, %v1924, %v1924
  %v1930 = vsel %vm432, %v1924, %v1929
  %v1931 = vrot.slane %v1925, 7
  %v1932 = vsel %vm214, %v1931, %v1930
  %v1933 = vsel %vm216, %v1931, %v1932
  %v1934 = vsel %vm437, %v1931, %v1933
  %v1935 = vsel %vm439, %v1931, %v1934
  %1936 = vrot.lane.b32.xlu0 %v1935, 64
  %v1937 = vpop.permute.xlu0 %1936
  %v1939 = vmul.f32 %v1760, %v1937
  %s1940 = scalar_lea.vmem %s0, 36
  %v1941 = vld [vmem:[%s1940] sm:$0x3f]
  %v1943 = vsel %vm87, %v1939, 0
  %1945 = vmatpush.msra.mxu0 0.0
  %1946 = vmatpush.msra.mxu0 0.0
  %1947 = vmatpush.msra.mxu0 0.0
  %1948 = vmatpush.msra.mxu0 0.0
  %1949 = vmatpush.msra.mxu0 0.0
  %1950 = vmatpush.msra.mxu0 0.0
  %1951 = vmatpush.msra.mxu0 0.0
  %1952 = vmatpush.msra.mxu0 0.0
  %1953 = vmatpush.msra.mxu0 %v70
  %1954 = vmatpush.msra.mxu0 %v67
  %1955 = vmatpush.msra.mxu0 %v64
  %1956 = vmatpush.msra.mxu0 %v61
  %1957 = vmatpush.msra.mxu0 %v58
  %1958 = vmatpush.msra.mxu0 %v55
  %1959 = vmatpush.msra.mxu0 %v52
  %1960 = vmatpush.msra.mxu0 %v49
  %1961 = vmatmul.f32.gmra.mxu0 %v1943
  %v1962 = vpop.f32.mrf.mxu0
  %v1963 = vadd.f32 0.0, %v1962
  %1964 = vdwg.mxu0
  %1965 = vmatpush.msra.mxu0 0.0
  %1966 = vmatpush.msra.mxu0 0.0
  %1967 = vmatpush.msra.mxu0 0.0
  %1968 = vmatpush.msra.mxu0 0.0
  %1969 = vmatpush.msra.mxu0 0.0
  %1970 = vmatpush.msra.mxu0 0.0
  %1971 = vmatpush.msra.mxu0 0.0
  %1972 = vmatpush.msra.mxu0 0.0
  %1973 = vmatpush.msra.mxu0 %v71
  %1974 = vmatpush.msra.mxu0 %v68
  %1975 = vmatpush.msra.mxu0 %v65
  %1976 = vmatpush.msra.mxu0 %v62
  %1977 = vmatpush.msra.mxu0 %v59
  %1978 = vmatpush.msra.mxu0 %v56
  %1979 = vmatpush.msra.mxu0 %v53
  %1980 = vmatpush.msra.mxu0 %v50
  %1981 = vmatmul.f32.gmra.mxu0 %v1943
  %v1982 = vpop.f32.mrf.mxu0
  %v1983 = vadd.f32 0.0, %v1982
  %1984 = vdwg.mxu0
  %1985 = vmatpush.msra.mxu0 0.0
  %1986 = vmatpush.msra.mxu0 0.0
  %1987 = vmatpush.msra.mxu0 0.0
  %1988 = vmatpush.msra.mxu0 0.0
  %1989 = vmatpush.msra.mxu0 0.0
  %1990 = vmatpush.msra.mxu0 0.0
  %1991 = vmatpush.msra.mxu0 0.0
  %1992 = vmatpush.msra.mxu0 0.0
  %1993 = vmatpush.msra.mxu0 %v72
  %1994 = vmatpush.msra.mxu0 %v69
  %1995 = vmatpush.msra.mxu0 %v66
  %1996 = vmatpush.msra.mxu0 %v63
  %1997 = vmatpush.msra.mxu0 %v60
  %1998 = vmatpush.msra.mxu0 %v57
  %1999 = vmatpush.msra.mxu0 %v54
  %2000 = vmatpush.msra.mxu0 %v51
  %2001 = vmatmul.f32.gmra.mxu0 %v1943
  %v2002 = vpop.f32.mrf.mxu0
  %v2003 = vadd.f32 0.0, %v2002
  %2004 = vdwg.mxu0
  %v2008 = vrot.slane %v1983, 6
  %v2009 = vrot.slane %v2003, 4
  %v2010 = vsel %vm156, %v1963, %v2008
  %v2011 = vsel %vm158, %v2010, %v2009
  %v2013 = vadd.f32 %v1941, %v2011
  %v2014 = vmul.f32 %v2013, 0.16666667
  %v2015 = vadd.f32 %v2014, 0.5
  %v2016 = vmax.f32 %v2015, 0.0
  %v2017 = vmin.f32 %v2016, 1.0
  %2019 = vrot.lane.b32.xlu0 %v2013, 64
  %v2020 = vpop.permute.xlu0 %2019
  %v2021 = vrot.slane %v2020, 2
  %v2023 = vtanh.pop %v2021
  %v2024 = vmul.f32 %v2017, %v2023
  %v2025 = vrot.slane %v2013, 4
  %v2027 = vmul.f32 %v2025, 0.16666667
  %v2028 = vadd.f32 %v2027, 0.5
  %v2029 = vmax.f32 %v2028, 0.0
  %v2030 = vmin.f32 %v2029, 1.0
  %v2031 = vperm.slane %v2030, 0
  %v2032 = vlaneseq
  %v2033 = vshrl.u32 %v2032, 7
  %2035 = vset.pattern.permute.xlu0 %v2033
  %2036 = vperm.xlu0 %2035, %v2031
  %v2037 = vpop.permute.xlu0 %2036
  %v2038 = vlaneseq
  %v2039 = vshrl.u32 %v2038, 7
  %v2040 = vadd.s32 %v2039, 8
  %2041 = vset.pattern.permute.xlu0 %v2040
  %2042 = vperm.xlu0 %2041, %v2031
  %v2043 = vpop.permute.xlu0 %2042
  %v2044 = vperm.slane %v2030, 1
  %v2045 = vlaneseq
  %v2046 = vshrl.u32 %v2045, 7
  %2048 = vset.pattern.permute.xlu0 %v2046
  %2049 = vperm.xlu0 %2048, %v2044
  %v2050 = vpop.permute.xlu0 %2049
  %v2051 = vlaneseq
  %v2052 = vshrl.u32 %v2051, 7
  %v2053 = vadd.s32 %v2052, 8
  %2054 = vset.pattern.permute.xlu0 %v2053
  %2055 = vperm.xlu0 %2054, %v2044
  %v2056 = vpop.permute.xlu0 %2055
  %v2058 = vrot.slane %v2017, 1
  %v2059 = vrot.slane %v2017, 2
  %v2060 = vrot.slane %v2017, 3
  %v2061 = vsel %vm209, %v2017, %v2058
  %v2062 = vsel %vm211, %v2059, %v2060
  %v2063 = vsel %vm156, %v2061, %v2062
  %v2064 = vsel %vm214, %v2017, %v2058
  %v2065 = vsel %vm216, %v2059, %v2060
  %v2066 = vsel %vm218, %v2064, %v2065
  %v2067 = vrot.slane %v2066, 1
  %v2068 = vperm.slane %v2063, 0
  %v2069 = vperm.slane %v2067, 0
  %v2072 = vmul.f32 %v2037, %v2068
  %v2073 = vmul.f32 %v2043, %v2068
  %v2074 = vmul.f32 %v2050, %v2069
  %v2075 = vmul.f32 %v2056, %v2069
  %s2076 = sadd.s32 %s76, 7
  %p2077 = scmp.lt.s32.totalorder %s2076, 0
  %s2078 = ssub.s32 0, %s2076
  %s2079 = scalar_select %p2077, %s2078, %s2076
  %s2080 = sdiv.u32.pop %s2079, 10
  %s2081 = srem.u32.pop %s2079, 10
  %s2082 = ssub.s32 0, %s2081
  %s2083 = scalar_select %p2077, %s2082, %s2081
  %p2084 = scmp.ne.s32.totalorder %s2083, 0
  %p2085 = scmp.lt.s32.totalorder %s2083, 0
  %p2086 = pnand %p2085, %p2084
  %p2087 = pneg %p2086
  %s2088 = sadd.s32 %s2083, 10
  %s2089 = scalar_select %p2087, %s2088, %s2083
  %s2090 = smul.u32 %s2089, 32
  %s2091 = scalar_lea.vmem %s1, %s2090
  %v2092 = vld [vmem:[%s2091] sm:$0xff]
  %v2093 = vld [vmem:[%s2091 + $0x8] sm:$0x3]
  %v2094 = vld [vmem:[%s2091 + $0x10] sm:$0xff]
  %v2095 = vld [vmem:[%s2091 + $0x18] sm:$0x3]
  %v2097 = vrot.slane %v2024, 1
  %v2098 = vrot.slane %v2024, 2
  %v2099 = vrot.slane %v2024, 3
  %v2100 = vsel %vm209, %v2024, %v2097
  %v2101 = vsel %vm211, %v2098, %v2099
  %v2102 = vsel %vm156, %v2100, %v2101
  %v2103 = vsel %vm214, %v2024, %v2097
  %v2104 = vsel %vm216, %v2098, %v2099
  %v2105 = vsel %vm218, %v2103, %v2104
  %v2106 = vrot.slane %v2105, 1
  %v2107 = vmul.f32 %v2072, %v1846
  %v2108 = vmul.f32 %v2073, %v1847
  %v2109 = vmul.f32 %v2074, %v1848
  %v2110 = vmul.f32 %v2075, %v1849
  %v2111 = vperm.slane %v2102, 0
  %v2112 = vperm.slane %v2106, 0
  %2116 = vset.pattern.permute.xlu0 0
  %2117 = vperm.xlu0 %2116, %v2092
  %v2118 = vpop.permute.xlu0 %2117
  %2121 = vset.pattern.permute.xlu0 0
  %2122 = vperm.xlu0 %2121, %v2093
  %v2123 = vpop.permute.xlu0 %2122
  %v2125 = vmul.f32 %v2111, %v2118
  %v2126 = vmul.f32 %v2111, %v2123
  %v2127 = vmul.f32 %v2112, %v2118
  %v2128 = vmul.f32 %v2112, %v2123
  %2133 = vrot.lane.b32.xlu0 %v2125, 64
  %v2134 = vpop.permute.xlu0 %2133
  %2135 = vrot.lane.b32.xlu0 %v2126, 64
  %v2136 = vpop.permute.xlu0 %2135
  %2137 = vrot.lane.b32.xlu0 %v2127, 64
  %v2138 = vpop.permute.xlu0 %2137
  %2139 = vrot.lane.b32.xlu0 %v2128, 64
  %v2140 = vpop.permute.xlu0 %2139
  %v2145 = vadd.f32 %v2107, %v2134
  %v2146 = vadd.f32 %v2108, %v2136
  %v2147 = vadd.f32 %v2109, %v2138
  %v2148 = vadd.f32 %v2110, %v2140
  %v2149 = vmul.f32 %v2072, %v1884
  %v2150 = vmul.f32 %v2073, %v1885
  %v2151 = vmul.f32 %v2074, %v1886
  %v2152 = vmul.f32 %v2075, %v1887
  %2154 = vset.pattern.permute.xlu0 0
  %2155 = vperm.xlu0 %2154, %v2094
  %v2156 = vpop.permute.xlu0 %2155
  %2159 = vset.pattern.permute.xlu0 0
  %2160 = vperm.xlu0 %2159, %v2095
  %v2161 = vpop.permute.xlu0 %2160
  %v2163 = vmul.f32 %v2111, %v2156
  %v2164 = vmul.f32 %v2111, %v2161
  %v2165 = vmul.f32 %v2112, %v2156
  %v2166 = vmul.f32 %v2112, %v2161
  %2171 = vrot.lane.b32.xlu0 %v2163, 64
  %v2172 = vpop.permute.xlu0 %2171
  %2173 = vrot.lane.b32.xlu0 %v2164, 64
  %v2174 = vpop.permute.xlu0 %2173
  %2175 = vrot.lane.b32.xlu0 %v2165, 64
  %v2176 = vpop.permute.xlu0 %2175
  %2177 = vrot.lane.b32.xlu0 %v2166, 64
  %v2178 = vpop.permute.xlu0 %2177
  %v2183 = vadd.f32 %v2149, %v2172
  %v2184 = vadd.f32 %v2150, %v2174
  %v2185 = vadd.f32 %v2151, %v2176
  %v2186 = vadd.f32 %v2152, %v2178
  %v2187 = vmul.f32 %v2145, %v2145
  %v2188 = vmul.f32 %v2146, %v2146
  %v2189 = vmul.f32 %v2147, %v2147
  %v2190 = vmul.f32 %v2148, %v2148
  %v2191 = vmul.f32 %v2183, %v2183
  %v2192 = vmul.f32 %v2184, %v2184
  %v2193 = vmul.f32 %v2185, %v2185
  %v2194 = vmul.f32 %v2186, %v2186
  %v2195 = vadd.f32 %v2187, %v2191
  %v2196 = vadd.f32 %v2188, %v2192
  %v2197 = vadd.f32 %v2189, %v2193
  %v2198 = vadd.f32 %v2190, %v2194
  %v2199 = vmul.f32 %v2195, %v387
  %v2200 = vmul.f32 %v2196, %v392
  %v2201 = vmul.f32 %v2197, %v387
  %v2202 = vmul.f32 %v2198, %v392
  %v2203 = vsel %vm398, %v2199, 0.0
  %v2204 = vsel %vm400, %v2200, 0.0
  %v2205 = vadd.f32 %v2203, %v2204
  %v2206 = vrot.slane %v2205, 4
  %v2207 = vadd.f32 %v2205, %v2206
  %v2208 = vrot.slane %v2207, 2
  %v2209 = vadd.f32 %v2207, %v2208
  %v2210 = vrot.slane %v2209, 1
  %v2211 = vadd.f32 %v2209, %v2210
  %v2212 = vsel %vm398, %v2201, 0.0
  %v2213 = vsel %vm400, %v2202, 0.0
  %v2214 = vadd.f32 %v2212, %v2213
  %v2215 = vrot.slane %v2214, 4
  %v2216 = vadd.f32 %v2214, %v2215
  %v2217 = vrot.slane %v2216, 2
  %v2218 = vadd.f32 %v2216, %v2217
  %v2219 = vrot.slane %v2218, 1
  %v2220 = vadd.f32 %v2218, %v2219
  %v2221 = vadd.f32 %v2211, %v421
  %v2222 = vadd.f32 %v2220, %v421
  %v2223 = vtanh.pop %v2221
  %v2224 = vtanh.pop %v2222
  %v2228 = vsel %vm430, %v2223, %v2223
  %v2229 = vsel %vm432, %v2223, %v2228
  %v2230 = vrot.slane %v2224, 7
  %v2231 = vsel %vm214, %v2230, %v2229
  %v2232 = vsel %vm216, %v2230, %v2231
  %v2233 = vsel %vm437, %v2230, %v2232
  %v2234 = vsel %vm439, %v2230, %v2233
  %2235 = vrot.lane.b32.xlu0 %v2234, 64
  %v2236 = vpop.permute.xlu0 %2235
  %v2238 = vmul.f32 %v2059, %v2236
  %s2239 = scalar_lea.vmem %s0, 42
  %v2240 = vld [vmem:[%s2239] sm:$0x3f]
  %v2242 = vsel %vm87, %v2238, 0
  %2244 = vmatpush.msra.mxu0 0.0
  %2245 = vmatpush.msra.mxu0 0.0
  %2246 = vmatpush.msra.mxu0 0.0
  %2247 = vmatpush.msra.mxu0 0.0
  %2248 = vmatpush.msra.mxu0 0.0
  %2249 = vmatpush.msra.mxu0 0.0
  %2250 = vmatpush.msra.mxu0 0.0
  %2251 = vmatpush.msra.mxu0 0.0
  %2252 = vmatpush.msra.mxu0 %v70
  %2253 = vmatpush.msra.mxu0 %v67
  %2254 = vmatpush.msra.mxu0 %v64
  %2255 = vmatpush.msra.mxu0 %v61
  %2256 = vmatpush.msra.mxu0 %v58
  %2257 = vmatpush.msra.mxu0 %v55
  %2258 = vmatpush.msra.mxu0 %v52
  %2259 = vmatpush.msra.mxu0 %v49
  %2260 = vmatmul.f32.gmra.mxu0 %v2242
  %v2261 = vpop.f32.mrf.mxu0
  %v2262 = vadd.f32 0.0, %v2261
  %2263 = vdwg.mxu0
  %2264 = vmatpush.msra.mxu0 0.0
  %2265 = vmatpush.msra.mxu0 0.0
  %2266 = vmatpush.msra.mxu0 0.0
  %2267 = vmatpush.msra.mxu0 0.0
  %2268 = vmatpush.msra.mxu0 0.0
  %2269 = vmatpush.msra.mxu0 0.0
  %2270 = vmatpush.msra.mxu0 0.0
  %2271 = vmatpush.msra.mxu0 0.0
  %2272 = vmatpush.msra.mxu0 %v71
  %2273 = vmatpush.msra.mxu0 %v68
  %2274 = vmatpush.msra.mxu0 %v65
  %2275 = vmatpush.msra.mxu0 %v62
  %2276 = vmatpush.msra.mxu0 %v59
  %2277 = vmatpush.msra.mxu0 %v56
  %2278 = vmatpush.msra.mxu0 %v53
  %2279 = vmatpush.msra.mxu0 %v50
  %2280 = vmatmul.f32.gmra.mxu0 %v2242
  %v2281 = vpop.f32.mrf.mxu0
  %v2282 = vadd.f32 0.0, %v2281
  %2283 = vdwg.mxu0
  %2284 = vmatpush.msra.mxu0 0.0
  %2285 = vmatpush.msra.mxu0 0.0
  %2286 = vmatpush.msra.mxu0 0.0
  %2287 = vmatpush.msra.mxu0 0.0
  %2288 = vmatpush.msra.mxu0 0.0
  %2289 = vmatpush.msra.mxu0 0.0
  %2290 = vmatpush.msra.mxu0 0.0
  %2291 = vmatpush.msra.mxu0 0.0
  %2292 = vmatpush.msra.mxu0 %v72
  %2293 = vmatpush.msra.mxu0 %v69
  %2294 = vmatpush.msra.mxu0 %v66
  %2295 = vmatpush.msra.mxu0 %v63
  %2296 = vmatpush.msra.mxu0 %v60
  %2297 = vmatpush.msra.mxu0 %v57
  %2298 = vmatpush.msra.mxu0 %v54
  %2299 = vmatpush.msra.mxu0 %v51
  %2300 = vmatmul.f32.gmra.mxu0 %v2242
  %v2301 = vpop.f32.mrf.mxu0
  %v2302 = vadd.f32 0.0, %v2301
  %2303 = vdwg.mxu0
  %v2307 = vrot.slane %v2282, 6
  %v2308 = vrot.slane %v2302, 4
  %v2309 = vsel %vm156, %v2262, %v2307
  %v2310 = vsel %vm158, %v2309, %v2308
  %v2312 = vadd.f32 %v2240, %v2310
  %v2313 = vmul.f32 %v2312, 0.16666667
  %v2314 = vadd.f32 %v2313, 0.5
  %v2315 = vmax.f32 %v2314, 0.0
  %v2316 = vmin.f32 %v2315, 1.0
  %2318 = vrot.lane.b32.xlu0 %v2312, 64
  %v2319 = vpop.permute.xlu0 %2318
  %v2320 = vrot.slane %v2319, 2
  %v2322 = vtanh.pop %v2320
  %v2323 = vmul.f32 %v2316, %v2322
  %v2324 = vrot.slane %v2312, 4
  %v2326 = vmul.f32 %v2324, 0.16666667
  %v2327 = vadd.f32 %v2326, 0.5
  %v2328 = vmax.f32 %v2327, 0.0
  %v2329 = vmin.f32 %v2328, 1.0
  %v2330 = vperm.slane %v2329, 0
  %v2331 = vlaneseq
  %v2332 = vshrl.u32 %v2331, 7
  %2334 = vset.pattern.permute.xlu0 %v2332
  %2335 = vperm.xlu0 %2334, %v2330
  %v2336 = vpop.permute.xlu0 %2335
  %v2337 = vlaneseq
  %v2338 = vshrl.u32 %v2337, 7
  %v2339 = vadd.s32 %v2338, 8
  %2340 = vset.pattern.permute.xlu0 %v2339
  %2341 = vperm.xlu0 %2340, %v2330
  %v2342 = vpop.permute.xlu0 %2341
  %v2343 = vperm.slane %v2329, 1
  %v2344 = vlaneseq
  %v2345 = vshrl.u32 %v2344, 7
  %2347 = vset.pattern.permute.xlu0 %v2345
  %2348 = vperm.xlu0 %2347, %v2343
  %v2349 = vpop.permute.xlu0 %2348
  %v2350 = vlaneseq
  %v2351 = vshrl.u32 %v2350, 7
  %v2352 = vadd.s32 %v2351, 8
  %2353 = vset.pattern.permute.xlu0 %v2352
  %2354 = vperm.xlu0 %2353, %v2343
  %v2355 = vpop.permute.xlu0 %2354
  %v2357 = vrot.slane %v2316, 1
  %v2358 = vrot.slane %v2316, 2
  %v2359 = vrot.slane %v2316, 3
  %v2360 = vsel %vm209, %v2316, %v2357
  %v2361 = vsel %vm211, %v2358, %v2359
  %v2362 = vsel %vm156, %v2360, %v2361
  %v2363 = vsel %vm214, %v2316, %v2357
  %v2364 = vsel %vm216, %v2358, %v2359
  %v2365 = vsel %vm218, %v2363, %v2364
  %v2366 = vrot.slane %v2365, 1
  %v2367 = vperm.slane %v2362, 0
  %v2368 = vperm.slane %v2366, 0
  %v2371 = vmul.f32 %v2336, %v2367
  %v2372 = vmul.f32 %v2342, %v2367
  %v2373 = vmul.f32 %v2349, %v2368
  %v2374 = vmul.f32 %v2355, %v2368
  %s2375 = sadd.s32 %s76, 8
  %p2376 = scmp.lt.s32.totalorder %s2375, 0
  %s2377 = ssub.s32 0, %s2375
  %s2378 = scalar_select %p2376, %s2377, %s2375
  %s2379 = sdiv.u32.pop %s2378, 10
  %s2380 = srem.u32.pop %s2378, 10
  %s2381 = ssub.s32 0, %s2380
  %s2382 = scalar_select %p2376, %s2381, %s2380
  %p2383 = scmp.ne.s32.totalorder %s2382, 0
  %p2384 = scmp.lt.s32.totalorder %s2382, 0
  %p2385 = pnand %p2384, %p2383
  %p2386 = pneg %p2385
  %s2387 = sadd.s32 %s2382, 10
  %s2388 = scalar_select %p2386, %s2387, %s2382
  %s2389 = smul.u32 %s2388, 32
  %s2390 = scalar_lea.vmem %s1, %s2389
  %v2391 = vld [vmem:[%s2390] sm:$0xff]
  %v2392 = vld [vmem:[%s2390 + $0x8] sm:$0x3]
  %v2393 = vld [vmem:[%s2390 + $0x10] sm:$0xff]
  %v2394 = vld [vmem:[%s2390 + $0x18] sm:$0x3]
  %v2396 = vrot.slane %v2323, 1
  %v2397 = vrot.slane %v2323, 2
  %v2398 = vrot.slane %v2323, 3
  %v2399 = vsel %vm209, %v2323, %v2396
  %v2400 = vsel %vm211, %v2397, %v2398
  %v2401 = vsel %vm156, %v2399, %v2400
  %v2402 = vsel %vm214, %v2323, %v2396
  %v2403 = vsel %vm216, %v2397, %v2398
  %v2404 = vsel %vm218, %v2402, %v2403
  %v2405 = vrot.slane %v2404, 1
  %v2406 = vmul.f32 %v2371, %v2145
  %v2407 = vmul.f32 %v2372, %v2146
  %v2408 = vmul.f32 %v2373, %v2147
  %v2409 = vmul.f32 %v2374, %v2148
  %v2410 = vperm.slane %v2401, 0
  %v2411 = vperm.slane %v2405, 0
  %2415 = vset.pattern.permute.xlu0 0
  %2416 = vperm.xlu0 %2415, %v2391
  %v2417 = vpop.permute.xlu0 %2416
  %2420 = vset.pattern.permute.xlu0 0
  %2421 = vperm.xlu0 %2420, %v2392
  %v2422 = vpop.permute.xlu0 %2421
  %v2424 = vmul.f32 %v2410, %v2417
  %v2425 = vmul.f32 %v2410, %v2422
  %v2426 = vmul.f32 %v2411, %v2417
  %v2427 = vmul.f32 %v2411, %v2422
  %2432 = vrot.lane.b32.xlu0 %v2424, 64
  %v2433 = vpop.permute.xlu0 %2432
  %2434 = vrot.lane.b32.xlu0 %v2425, 64
  %v2435 = vpop.permute.xlu0 %2434
  %2436 = vrot.lane.b32.xlu0 %v2426, 64
  %v2437 = vpop.permute.xlu0 %2436
  %2438 = vrot.lane.b32.xlu0 %v2427, 64
  %v2439 = vpop.permute.xlu0 %2438
  %v2444 = vadd.f32 %v2406, %v2433
  %v2445 = vadd.f32 %v2407, %v2435
  %v2446 = vadd.f32 %v2408, %v2437
  %v2447 = vadd.f32 %v2409, %v2439
  %v2448 = vmul.f32 %v2371, %v2183
  %v2449 = vmul.f32 %v2372, %v2184
  %v2450 = vmul.f32 %v2373, %v2185
  %v2451 = vmul.f32 %v2374, %v2186
  %2453 = vset.pattern.permute.xlu0 0
  %2454 = vperm.xlu0 %2453, %v2393
  %v2455 = vpop.permute.xlu0 %2454
  %2458 = vset.pattern.permute.xlu0 0
  %2459 = vperm.xlu0 %2458, %v2394
  %v2460 = vpop.permute.xlu0 %2459
  %v2462 = vmul.f32 %v2410, %v2455
  %v2463 = vmul.f32 %v2410, %v2460
  %v2464 = vmul.f32 %v2411, %v2455
  %v2465 = vmul.f32 %v2411, %v2460
  %2470 = vrot.lane.b32.xlu0 %v2462, 64
  %v2471 = vpop.permute.xlu0 %2470
  %2472 = vrot.lane.b32.xlu0 %v2463, 64
  %v2473 = vpop.permute.xlu0 %2472
  %2474 = vrot.lane.b32.xlu0 %v2464, 64
  %v2475 = vpop.permute.xlu0 %2474
  %2476 = vrot.lane.b32.xlu0 %v2465, 64
  %v2477 = vpop.permute.xlu0 %2476
  %v2482 = vadd.f32 %v2448, %v2471
  %v2483 = vadd.f32 %v2449, %v2473
  %v2484 = vadd.f32 %v2450, %v2475
  %v2485 = vadd.f32 %v2451, %v2477
  %v2486 = vmul.f32 %v2444, %v2444
  %v2487 = vmul.f32 %v2445, %v2445
  %v2488 = vmul.f32 %v2446, %v2446
  %v2489 = vmul.f32 %v2447, %v2447
  %v2490 = vmul.f32 %v2482, %v2482
  %v2491 = vmul.f32 %v2483, %v2483
  %v2492 = vmul.f32 %v2484, %v2484
  %v2493 = vmul.f32 %v2485, %v2485
  %v2494 = vadd.f32 %v2486, %v2490
  %v2495 = vadd.f32 %v2487, %v2491
  %v2496 = vadd.f32 %v2488, %v2492
  %v2497 = vadd.f32 %v2489, %v2493
  %v2498 = vmul.f32 %v2494, %v387
  %v2499 = vmul.f32 %v2495, %v392
  %v2500 = vmul.f32 %v2496, %v387
  %v2501 = vmul.f32 %v2497, %v392
  %v2502 = vsel %vm398, %v2498, 0.0
  %v2503 = vsel %vm400, %v2499, 0.0
  %v2504 = vadd.f32 %v2502, %v2503
  %v2505 = vrot.slane %v2504, 4
  %v2506 = vadd.f32 %v2504, %v2505
  %v2507 = vrot.slane %v2506, 2
  %v2508 = vadd.f32 %v2506, %v2507
  %v2509 = vrot.slane %v2508, 1
  %v2510 = vadd.f32 %v2508, %v2509
  %v2511 = vsel %vm398, %v2500, 0.0
  %v2512 = vsel %vm400, %v2501, 0.0
  %v2513 = vadd.f32 %v2511, %v2512
  %v2514 = vrot.slane %v2513, 4
  %v2515 = vadd.f32 %v2513, %v2514
  %v2516 = vrot.slane %v2515, 2
  %v2517 = vadd.f32 %v2515, %v2516
  %v2518 = vrot.slane %v2517, 1
  %v2519 = vadd.f32 %v2517, %v2518
  %v2520 = vadd.f32 %v2510, %v421
  %v2521 = vadd.f32 %v2519, %v421
  %v2522 = vtanh.pop %v2520
  %v2523 = vtanh.pop %v2521
  %v2527 = vsel %vm430, %v2522, %v2522
  %v2528 = vsel %vm432, %v2522, %v2527
  %v2529 = vrot.slane %v2523, 7
  %v2530 = vsel %vm214, %v2529, %v2528
  %v2531 = vsel %vm216, %v2529, %v2530
  %v2532 = vsel %vm437, %v2529, %v2531
  %v2533 = vsel %vm439, %v2529, %v2532
  %2534 = vrot.lane.b32.xlu0 %v2533, 64
  %v2535 = vpop.permute.xlu0 %2534
  %v2537 = vmul.f32 %v2358, %v2535
  %vm2538 = vcmask 517120
  %2539 = vst.msk [vmem:[#allocation2] sm:$0x3] %vm2538, %v2537
  %2544 = vrot.lane.b32.xlu0 %v2444, 64
  %v2545 = vpop.permute.xlu0 %2544
  %2546 = vrot.lane.b32.xlu0 %v2445, 64
  %v2547 = vpop.permute.xlu0 %2546
  %2548 = vrot.lane.b32.xlu0 %v2446, 64
  %v2549 = vpop.permute.xlu0 %2548
  %2550 = vrot.lane.b32.xlu0 %v2447, 64
  %v2551 = vpop.permute.xlu0 %2550
  %2556 = vst.msk [vmem:[#allocation3] sm:$0xff] %vm87, %v2545
  %2557 = vst.msk [vmem:[#allocation3 + $0x8] sm:$0x3] %vm2538, %v2547
  %2558 = vst.msk [vmem:[#allocation3 + $0x10] sm:$0xff] %vm87, %v2549
  %2559 = vst.msk [vmem:[#allocation3 + $0x18] sm:$0x3] %vm2538, %v2551
  %2564 = vrot.lane.b32.xlu0 %v2482, 64
  %v2565 = vpop.permute.xlu0 %2564
  %2566 = vrot.lane.b32.xlu0 %v2483, 64
  %v2567 = vpop.permute.xlu0 %2566
  %2568 = vrot.lane.b32.xlu0 %v2484, 64
  %v2569 = vpop.permute.xlu0 %2568
  %2570 = vrot.lane.b32.xlu0 %v2485, 64
  %v2571 = vpop.permute.xlu0 %2570
  %2576 = vst.msk [vmem:[#allocation4] sm:$0xff] %vm87, %v2565
  %2577 = vst.msk [vmem:[#allocation4 + $0x8] sm:$0x3] %vm2538, %v2567
  %2578 = vst.msk [vmem:[#allocation4 + $0x10] sm:$0xff] %vm87, %v2569
  %2579 = vst.msk [vmem:[#allocation4 + $0x18] sm:$0x3] %vm2538, %v2571
  // Predicated region
  $region42: #{tpu_custom_call.1} parent=0 // pred_check
    %p2580 = pneg %p34
  $region43: #{tpu_custom_call.1} parent=0 // pred_check_branch
    %2582 = sbr.rel (%p2580) target = $region45
  $region44: #{tpu_custom_call.1} parent=0 // pred_region
    %v2583 = vld [vmem:[%s5] sm:$0xff]
    %v2584 = vld [vmem:[%s5 + $0x8] sm:$0xff]
    %v2585 = vld [vmem:[%s5 + $0x10] sm:$0xff]
    %v2586 = vld [vmem:[%s5 + $0x18] sm:$0xff]
    %v2587 = vld [vmem:[%s5 + $0x20] sm:$0xff]
    %v2588 = vld [vmem:[%s5 + $0x28] sm:$0xff]
    %v2589 = vld [vmem:[%s5 + $0x30] sm:$0xff]
    %v2590 = vld [vmem:[%s5 + $0x38] sm:$0xff]
    %v2591 = vld [vmem:[%s6] sm:$0x1]
    %v2593 = vperm.slane %v2591, 0
    %v2596 = vsel %vm87, %v2537, 0
    %2598 = vmatpush.msra.mxu0 0.0
    %2599 = vmatpush.msra.mxu0 0.0
    %2600 = vmatpush.msra.mxu0 0.0
    %2601 = vmatpush.msra.mxu0 0.0
    %2602 = vmatpush.msra.mxu0 0.0
    %2603 = vmatpush.msra.mxu0 0.0
    %2604 = vmatpush.msra.mxu0 0.0
    %2605 = vmatpush.msra.mxu0 0.0
    %2606 = vmatpush.msra.mxu0 %v2590
    %2607 = vmatpush.msra.mxu0 %v2589
    %2608 = vmatpush.msra.mxu0 %v2588
    %2609 = vmatpush.msra.mxu0 %v2587
    %2610 = vmatpush.msra.mxu0 %v2586
    %2611 = vmatpush.msra.mxu0 %v2585
    %2612 = vmatpush.msra.mxu0 %v2584
    %2613 = vmatpush.msra.mxu0 %v2583
    %2614 = vmatmul.f32.gmra.mxu0 %v2596
    %v2615 = vpop.f32.mrf.mxu0
    %v2616 = vadd.f32 %v2593, %v2615
    %2617 = vdwg.mxu0
    %v2618 = vld [vmem:[%s7] sm:$0xff]
    %v2619 = vld [vmem:[%s7 + $0x8] sm:$0xff]
    %v2620 = vld [vmem:[#allocation5] sm:$0x1]
    %v2622 = vperm.slane %v2620, 0
    %vm2624 = vcmask 130048
    %v2626 = vsel %vm2624, %v2616, 0
    %2628 = vmatpush.msra.mxu0 0.0
    %2629 = vmatpush.msra.mxu0 0.0
    %2630 = vmatpush.msra.mxu0 0.0
    %2631 = vmatpush.msra.mxu0 0.0
    %2632 = vmatpush.msra.mxu0 0.0
    %2633 = vmatpush.msra.mxu0 0.0
    %2634 = vmatpush.msra.mxu0 0.0
    %2635 = vmatpush.msra.mxu0 0.0
    %2636 = vmatpush.msra.mxu0 0.0
    %2637 = vmatpush.msra.mxu0 0.0
    %2638 = vmatpush.msra.mxu0 0.0
    %2639 = vmatpush.msra.mxu0 0.0
    %2640 = vmatpush.msra.mxu0 0.0
    %2641 = vmatpush.msra.mxu0 0.0
    %2642 = vmatpush.msra.mxu0 %v2619
    %2643 = vmatpush.msra.mxu0 %v2618
    %2644 = vmatmul.f32.gmra.mxu0 %v2626
    %v2645 = vpop.f32.mrf.mxu0
    %v2646 = vadd.f32 %v2622, %v2645
    %2647 = vdwg.mxu0
    %vm2648 = vcmask 1024
    %2649 = vst.msk [vmem:[%s9] sm:$0x3] %vm2648, %v2646
  $region45: #{tpu_custom_call.1} parent=0 // pred_fallthru
    _
  // Predicated region
  $region46: #{tpu_custom_call.1} parent=0 // pred_check
    _
  $region47: #{tpu_custom_call.1} parent=0 // pred_check_branch
    %2651 = sbr.rel (0) target = $region49
  $region48: #{tpu_custom_call.1} parent=0 // pred_region
    _
  $region49: #{tpu_custom_call.1} parent=0 // pred_fallthru
    _
  // Predicated region
  $region50: #{tpu_custom_call.1} parent=0 // pred_check
    _
  $region51: #{tpu_custom_call.1} parent=0 // pred_check_branch
    %2653 = sbr.rel (0) target = $region53
  $region52: #{tpu_custom_call.1} parent=0 // pred_region
    _
  $region53: #{tpu_custom_call.1} parent=0 // pred_fallthru
    _

</llo_original>
